<compile_context>
chip_gen: v6e
topology: v6e:2x2x1
jax: 0.10.0
libtpu: 0.0.40
codegen_flags: <defaults>
</compile_context>

<pallas_src>
import jax
import jax.numpy as jnp
from jax import lax
from jax.experimental import pallas as pl
from jax.experimental.pallas import tpu as pltpu

# ----- small, module-consistent sizes -------------------------------------
B = 2            # batch
S = 8            # seq_len
H = 32           # hidden_size
NH = 4           # nhead
DH = H // NH     # head dim
F = 64           # dim_feedforward
NUM_LAYERS = 2   # number of stacked EncoderBlocks
EPS = 1e-5       # layer_norm_eps
NEG = -1e30      # additive mask value (padded keys / cross-batch)
SCALE = 1.0 / (DH ** 0.5)
R = B * S        # batch folded into rows


def _layer_norm(x, gamma, beta):
    mu = jnp.mean(x, axis=-1, keepdims=True)
    var = jnp.mean((x - mu) ** 2, axis=-1, keepdims=True)
    return (x - mu) * lax.rsqrt(var + EPS) * gamma + beta


# ----- the fused Pallas kernel: all layers, all batches, one grid step ------
def encoder_stack_kernel(x_ref, mask_ref,
                         w_in_ref, b_in_ref, wo_ref, bo_ref,
                         g1_ref, b1_ref, w1_ref, w2_ref, g2_ref, b2_ref,
                         o_ref):
    x = x_ref[...]                                   # (R, H) activation carry
    mask = mask_ref[...]                             # (R, R) additive mask

    # Static, fully unrolled loop over the stacked encoder layers.
    for l in range(NUM_LAYERS):
        w_in = w_in_ref[l]                           # (H, 3H)
        b_in = b_in_ref[l]                           # (1, 3H)
        wo = wo_ref[l]                               # (H, H)
        bo = bo_ref[l]                               # (1, H)

        # --- fused QKV projection ---------------------------------------
        qkv = jnp.dot(x, w_in,
                      preferred_element_type=jnp.float32) + b_in   # (R, 3H)

        # --- multi-head self-attention (eval mode: no dropout) -----------
        # Static loop over heads; each head's context is pushed directly
        # through its slice of the output projection and accumulated,
        # avoiding a lane-concatenate of the head contexts.
        acc = None
        for h in range(NH):
            qh = qkv[:, h * DH:(h + 1) * DH] * SCALE             # (R, DH)
            kh = qkv[:, H + h * DH:H + (h + 1) * DH]             # (R, DH)
            vh = qkv[:, 2 * H + h * DH:2 * H + (h + 1) * DH]     # (R, DH)

            s = lax.dot_general(qh, kh, (((1,), (1,)), ((), ())),
                                preferred_element_type=jnp.float32)  # (R, R)
            s = s + mask
            m = jnp.max(s, axis=-1, keepdims=True)
            p = jnp.exp(s - m)
            inv = pl.reciprocal(jnp.sum(p, axis=-1, keepdims=True),
                                approx=True)
            attn = p * inv                                        # (R, R)

            ctx_h = jnp.dot(attn, vh,
                            preferred_element_type=jnp.float32)   # (R, DH)
            t = jnp.dot(ctx_h, wo[h * DH:(h + 1) * DH, :],
                        preferred_element_type=jnp.float32)       # (R, H)
            acc = t if acc is None else acc + t
        attn_out = acc + bo                                        # (R, H)

        # --- AddNorm 1 (dropout is identity in eval) ----------------------
        y1 = _layer_norm(x + attn_out, g1_ref[l], b1_ref[l])

        # --- PositionWiseFFN (relu, no biases) ----------------------------
        hid = jnp.maximum(
            jnp.dot(y1, w1_ref[l], preferred_element_type=jnp.float32), 0.0)
        ff = jnp.dot(hid, w2_ref[l], preferred_element_type=jnp.float32)

        # --- AddNorm 2 -----------------------------------------------------
        x = _layer_norm(y1 + ff, g2_ref[l], b2_ref[l])

    o_ref[...] = x.astype(o_ref.dtype)


def encoder_stack(x, mask2d, stacked):
    x2 = x.reshape(R, H)
    args = (x2, mask2d,
            stacked["w_in"], stacked["b_in"], stacked["wo"], stacked["bo"],
            stacked["g1"], stacked["b1"], stacked["w1"], stacked["w2"],
            stacked["g2"], stacked["b2"])
    # Every input is a single full-extent block resident in VMEM.
    in_specs = [pl.BlockSpec(a.shape, lambda i, _n=a.ndim: (0,) * _n)
                for a in args]
    out = pl.pallas_call(
        encoder_stack_kernel,
        out_shape=jax.ShapeDtypeStruct((R, H), jnp.float32),
        grid=(1,),
        in_specs=in_specs,
        out_specs=pl.BlockSpec((R, H), lambda i: (0, 0)),
        compiler_params=pltpu.CompilerParams(
            dimension_semantics=("arbitrary",)),
    )(*args)
    return out.reshape(B, S, H)


# ----- pure-JAX reference (per-batch, unfolded) for sanity checking ---------
def encoder_block_ref(x, add_mask, p):
    qkv = x @ p["w_in"] + p["b_in"]                       # (B, S, 3H)
    q = qkv[..., 0 * H:1 * H] * SCALE
    k = qkv[..., 1 * H:2 * H]
    v = qkv[..., 2 * H:3 * H]
    q4 = q.reshape(B, S, NH, DH)
    k4 = k.reshape(B, S, NH, DH)
    v4 = v.reshape(B, S, NH, DH)
    scores = jnp.einsum('bqhd,bkhd->bhqk', q4, k4) + add_mask[:, None, :, :]
    attn = jax.nn.softmax(scores, axis=-1)
    ctx = jnp.einsum('bhqk,bkhd->bqhd', attn, v4).reshape(B, S, H)
    attn_out = ctx @ p["wo"] + p["bo"]
    y1 = _layer_norm(x + attn_out, p["g1"], p["b1"])
    h = jnp.maximum(y1 @ p["w1"], 0.0) @ p["w2"]
    return _layer_norm(y1 + h, p["g2"], p["b2"])


def encoder_layer_ref(x, add_mask, params):
    out = x
    for p in params:
        out = encoder_block_ref(out, add_mask, p)
    return out


# ----- deterministic parameter construction --------------------------------
def make_params(key):
    layers = []
    for _ in range(NUM_LAYERS):
        key, *ks = jax.random.split(key, 7)
        p = {
            "w_in": jax.random.normal(ks[0], (H, 3 * H), jnp.float32) * (H ** -0.5),
            "b_in": jax.random.normal(ks[1], (1, 3 * H), jnp.float32) * 0.02,
            "wo":   jax.random.normal(ks[2], (H, H), jnp.float32) * (H ** -0.5),
            "bo":   jax.random.normal(ks[3], (1, H), jnp.float32) * 0.02,
            "g1":   jnp.ones((1, H), jnp.float32),
            "b1":   jnp.zeros((1, H), jnp.float32),
            "w1":   jax.random.normal(ks[4], (H, F), jnp.float32) * (H ** -0.5),
            "w2":   jax.random.normal(ks[5], (F, H), jnp.float32) * (F ** -0.5),
            "g2":   jnp.ones((1, H), jnp.float32),
            "b2":   jnp.zeros((1, H), jnp.float32),
        }
        layers.append(p)
    stacked = {k: jnp.stack([p[k] for p in layers]) for k in layers[0]}
    return layers, stacked, key


if __name__ == "__main__":
    key = jax.random.PRNGKey(0)
    layers, stacked, key = make_params(key)

    key, kx = jax.random.split(key)
    x = jax.random.normal(kx, (B, S, H), jnp.float32)

    # key_padding_mask: True = padded position (ignored as attention key).
    key_padding_mask = jnp.array(
        [[False] * S,
         [False] * (S - 2) + [True] * 2], dtype=bool)            # (B, S)

    # Additive key mask for the reference (B, 1, S).
    add = jnp.where(key_padding_mask, NEG, 0.0).astype(jnp.float32)  # (B, S)
    add_mask = add.reshape(B, 1, S)

    # Folded (B*S, B*S) mask for the kernel: block-diagonal over batches,
    # combined with the key-padding mask.
    batch_ids = jnp.repeat(jnp.arange(B), S)                         # (R,)
    same_batch = batch_ids[:, None] == batch_ids[None, :]            # (R, R)
    mask2d = jnp.where(same_batch, add.reshape(R)[None, :], NEG)
    mask2d = mask2d.astype(jnp.float32)

    out = encoder_stack(x, mask2d, stacked)
    out = jax.block_until_ready(out)

    ref = encoder_layer_ref(x, add_mask, layers)
    assert out.shape == (B, S, H)
    assert jnp.allclose(out, ref, rtol=1e-2, atol=1e-2), "mismatch vs reference"

    print("KERNEL_OK")
</pallas_src>

<mosaic_0001>
module attributes {stable_mosaic.version = 11 : i64} {
  func.func @encoder_stack_kernel(%arg0: i32, %arg1: memref<16x32xf32, #tpu.memory_space<vmem>>, %arg2: memref<16x16xf32, #tpu.memory_space<vmem>>, %arg3: memref<2x32x96xf32, #tpu.memory_space<vmem>>, %arg4: memref<2x1x96xf32, #tpu.memory_space<vmem>>, %arg5: memref<2x32x32xf32, #tpu.memory_space<vmem>>, %arg6: memref<2x1x32xf32, #tpu.memory_space<vmem>>, %arg7: memref<2x1x32xf32, #tpu.memory_space<vmem>>, %arg8: memref<2x1x32xf32, #tpu.memory_space<vmem>>, %arg9: memref<2x32x64xf32, #tpu.memory_space<vmem>>, %arg10: memref<2x64x32xf32, #tpu.memory_space<vmem>>, %arg11: memref<2x1x32xf32, #tpu.memory_space<vmem>>, %arg12: memref<2x1x32xf32, #tpu.memory_space<vmem>>, %arg13: memref<16x32xf32, #tpu.memory_space<vmem>>) attributes {dimension_semantics = [#tpu.dimension_semantics<arbitrary>], iteration_bounds = array<i64: 1>, scalar_prefetch = 0 : i64, scratch_operands = 0 : i64, tpu.core_type = #tpu.core_type<tc>, window_params = [{pipeline_mode = #tpu.pipeline_mode<synchronous>, transform_indices = @transform_0, window_bounds = array<i64: 16, 32>}, {pipeline_mode = #tpu.pipeline_mode<synchronous>, transform_indices = @transform_1, window_bounds = array<i64: 16, 16>}, {pipeline_mode = #tpu.pipeline_mode<synchronous>, transform_indices = @transform_2, window_bounds = array<i64: 2, 32, 96>}, {pipeline_mode = #tpu.pipeline_mode<synchronous>, transform_indices = @transform_3, window_bounds = array<i64: 2, 1, 96>}, {pipeline_mode = #tpu.pipeline_mode<synchronous>, transform_indices = @transform_4, window_bounds = array<i64: 2, 32, 32>}, {pipeline_mode = #tpu.pipeline_mode<synchronous>, transform_indices = @transform_5, window_bounds = array<i64: 2, 1, 32>}, {pipeline_mode = #tpu.pipeline_mode<synchronous>, transform_indices = @transform_6, window_bounds = array<i64: 2, 1, 32>}, {pipeline_mode = #tpu.pipeline_mode<synchronous>, transform_indices = @transform_7, window_bounds = array<i64: 2, 1, 32>}, {pipeline_mode = #tpu.pipeline_mode<synchronous>, transform_indices = @transform_8, window_bounds = array<i64: 2, 32, 64>}, {pipeline_mode = #tpu.pipeline_mode<synchronous>, transform_indices = @transform_9, window_bounds = array<i64: 2, 64, 32>}, {pipeline_mode = #tpu.pipeline_mode<synchronous>, transform_indices = @transform_10, window_bounds = array<i64: 2, 1, 32>}, {pipeline_mode = #tpu.pipeline_mode<synchronous>, transform_indices = @transform_11, window_bounds = array<i64: 2, 1, 32>}, {pipeline_mode = #tpu.pipeline_mode<synchronous>, transform_indices = @transform_12, window_bounds = array<i64: 16, 32>}]} {
    %c0 = arith.constant 0 : index
    %c0_0 = arith.constant 0 : index
    %0 = vector.load %arg1[%c0, %c0_0] : memref<16x32xf32, #tpu.memory_space<vmem>>, vector<16x32xf32>
    %c0_1 = arith.constant 0 : index
    %c0_2 = arith.constant 0 : index
    %1 = vector.load %arg2[%c0_1, %c0_2] : memref<16x16xf32, #tpu.memory_space<vmem>>, vector<16x16xf32>
    %c0_3 = arith.constant 0 : index
    %c0_4 = arith.constant 0 : index
    %c0_5 = arith.constant 0 : index
    %2 = vector.load %arg3[%c0_3, %c0_4, %c0_5] : memref<2x32x96xf32, #tpu.memory_space<vmem>>, vector<1x32x96xf32>
    %3 = vector.shape_cast %2 : vector<1x32x96xf32> to vector<32x96xf32>
    %c0_6 = arith.constant 0 : index
    %c0_7 = arith.constant 0 : index
    %c0_8 = arith.constant 0 : index
    %4 = vector.load %arg4[%c0_6, %c0_7, %c0_8] : memref<2x1x96xf32, #tpu.memory_space<vmem>>, vector<1x1x96xf32>
    %5 = vector.shape_cast %4 : vector<1x1x96xf32> to vector<1x96xf32>
    %c0_9 = arith.constant 0 : index
    %c0_10 = arith.constant 0 : index
    %c0_11 = arith.constant 0 : index
    %6 = vector.load %arg5[%c0_9, %c0_10, %c0_11] : memref<2x32x32xf32, #tpu.memory_space<vmem>>, vector<1x32x32xf32>
    %7 = vector.shape_cast %6 : vector<1x32x32xf32> to vector<32x32xf32>
    %c0_12 = arith.constant 0 : index
    %c0_13 = arith.constant 0 : index
    %c0_14 = arith.constant 0 : index
    %8 = vector.load %arg6[%c0_12, %c0_13, %c0_14] : memref<2x1x32xf32, #tpu.memory_space<vmem>>, vector<1x1x32xf32>
    %9 = vector.shape_cast %8 : vector<1x1x32xf32> to vector<1x32xf32>
    %cst = arith.constant dense<0.000000e+00> : vector<16x96xf32>
    %10 = tpu.matmul %0, %3, %cst {dimension_numbers = #tpu.dot_dimension_numbers<[1], [0], [0], [1], [0, 0, 1, 1], [], []>} : vector<16x32xf32>, vector<32x96xf32>, vector<16x96xf32> -> vector<16x96xf32>
    %11 = vector.broadcast %5 : vector<1x96xf32> to vector<16x96xf32>
    %12 = arith.addf %10, %11 : vector<16x96xf32>
    %13 = vector.extract_strided_slice %12 {offsets = [0, 0], sizes = [16, 8], strides = [1, 1]} : vector<16x96xf32> to vector<16x8xf32>
    %cst_15 = arith.constant 0.353553385 : f32
    %14 = vector.broadcast %cst_15 : f32 to vector<16x8xf32>
    %15 = arith.mulf %13, %14 : vector<16x8xf32>
    %16 = vector.extract_strided_slice %12 {offsets = [0, 32], sizes = [16, 8], strides = [1, 1]} : vector<16x96xf32> to vector<16x8xf32>
    %17 = vector.extract_strided_slice %12 {offsets = [0, 64], sizes = [16, 8], strides = [1, 1]} : vector<16x96xf32> to vector<16x8xf32>
    %cst_16 = arith.constant dense<0.000000e+00> : vector<16x16xf32>
    %18 = tpu.matmul %15, %16, %cst_16 {dimension_numbers = #tpu.dot_dimension_numbers<[1], [1], [0], [0], [0, 0, 1, 0], [], []>} : vector<16x8xf32>, vector<16x8xf32>, vector<16x16xf32> -> vector<16x16xf32>
    %19 = arith.addf %18, %1 : vector<16x16xf32>
    %cst_17 = arith.constant dense<0xFF800000> : vector<16xf32>
    %20 = vector.multi_reduction <maximumf>, %19, %cst_17 [1] : vector<16x16xf32> to vector<16xf32>
    %21 = vector.shape_cast %20 : vector<16xf32> to vector<16x1xf32>
    %22 = vector.broadcast %21 : vector<16x1xf32> to vector<16x16xf32>
    %23 = arith.subf %19, %22 : vector<16x16xf32>
    %24 = math.exp %23 : vector<16x16xf32>
    %cst_18 = arith.constant dense<0.000000e+00> : vector<16xf32>
    %25 = vector.multi_reduction <add>, %24, %cst_18 [1] : vector<16x16xf32> to vector<16xf32>
    %26 = vector.shape_cast %25 : vector<16xf32> to vector<16x1xf32>
    %27 = tpu.reciprocal %26 {approx = true} : vector<16x1xf32> -> vector<16x1xf32>
    %28 = vector.broadcast %27 : vector<16x1xf32> to vector<16x16xf32>
    %29 = arith.mulf %24, %28 : vector<16x16xf32>
    %cst_19 = arith.constant dense<0.000000e+00> : vector<16x8xf32>
    %30 = tpu.matmul %29, %17, %cst_19 {dimension_numbers = #tpu.dot_dimension_numbers<[1], [0], [0], [1], [0, 0, 1, 1], [], []>} : vector<16x16xf32>, vector<16x8xf32>, vector<16x8xf32> -> vector<16x8xf32>
    %31 = vector.extract_strided_slice %7 {offsets = [0, 0], sizes = [8, 32], strides = [1, 1]} : vector<32x32xf32> to vector<8x32xf32>
    %cst_20 = arith.constant dense<0.000000e+00> : vector<16x32xf32>
    %32 = tpu.matmul %30, %31, %cst_20 {dimension_numbers = #tpu.dot_dimension_numbers<[1], [0], [0], [1], [0, 0, 1, 1], [], []>} : vector<16x8xf32>, vector<8x32xf32>, vector<16x32xf32> -> vector<16x32xf32>
    %33 = vector.extract_strided_slice %12 {offsets = [0, 8], sizes = [16, 8], strides = [1, 1]} : vector<16x96xf32> to vector<16x8xf32>
    %cst_21 = arith.constant 0.353553385 : f32
    %34 = vector.broadcast %cst_21 : f32 to vector<16x8xf32>
    %35 = arith.mulf %33, %34 : vector<16x8xf32>
    %36 = vector.extract_strided_slice %12 {offsets = [0, 40], sizes = [16, 8], strides = [1, 1]} : vector<16x96xf32> to vector<16x8xf32>
    %37 = vector.extract_strided_slice %12 {offsets = [0, 72], sizes = [16, 8], strides = [1, 1]} : vector<16x96xf32> to vector<16x8xf32>
    %cst_22 = arith.constant dense<0.000000e+00> : vector<16x16xf32>
    %38 = tpu.matmul %35, %36, %cst_22 {dimension_numbers = #tpu.dot_dimension_numbers<[1], [1], [0], [0], [0, 0, 1, 0], [], []>} : vector<16x8xf32>, vector<16x8xf32>, vector<16x16xf32> -> vector<16x16xf32>
    %39 = arith.addf %38, %1 : vector<16x16xf32>
    %cst_23 = arith.constant dense<0xFF800000> : vector<16xf32>
    %40 = vector.multi_reduction <maximumf>, %39, %cst_23 [1] : vector<16x16xf32> to vector<16xf32>
    %41 = vector.shape_cast %40 : vector<16xf32> to vector<16x1xf32>
    %42 = vector.broadcast %41 : vector<16x1xf32> to vector<16x16xf32>
    %43 = arith.subf %39, %42 : vector<16x16xf32>
    %44 = math.exp %43 : vector<16x16xf32>
    %cst_24 = arith.constant dense<0.000000e+00> : vector<16xf32>
    %45 = vector.multi_reduction <add>, %44, %cst_24 [1] : vector<16x16xf32> to vector<16xf32>
    %46 = vector.shape_cast %45 : vector<16xf32> to vector<16x1xf32>
    %47 = tpu.reciprocal %46 {approx = true} : vector<16x1xf32> -> vector<16x1xf32>
    %48 = vector.broadcast %47 : vector<16x1xf32> to vector<16x16xf32>
    %49 = arith.mulf %44, %48 : vector<16x16xf32>
    %cst_25 = arith.constant dense<0.000000e+00> : vector<16x8xf32>
    %50 = tpu.matmul %49, %37, %cst_25 {dimension_numbers = #tpu.dot_dimension_numbers<[1], [0], [0], [1], [0, 0, 1, 1], [], []>} : vector<16x16xf32>, vector<16x8xf32>, vector<16x8xf32> -> vector<16x8xf32>
    %51 = vector.extract_strided_slice %7 {offsets = [8, 0], sizes = [8, 32], strides = [1, 1]} : vector<32x32xf32> to vector<8x32xf32>
    %cst_26 = arith.constant dense<0.000000e+00> : vector<16x32xf32>
    %52 = tpu.matmul %50, %51, %cst_26 {dimension_numbers = #tpu.dot_dimension_numbers<[1], [0], [0], [1], [0, 0, 1, 1], [], []>} : vector<16x8xf32>, vector<8x32xf32>, vector<16x32xf32> -> vector<16x32xf32>
    %53 = arith.addf %32, %52 : vector<16x32xf32>
    %54 = vector.extract_strided_slice %12 {offsets = [0, 16], sizes = [16, 8], strides = [1, 1]} : vector<16x96xf32> to vector<16x8xf32>
    %cst_27 = arith.constant 0.353553385 : f32
    %55 = vector.broadcast %cst_27 : f32 to vector<16x8xf32>
    %56 = arith.mulf %54, %55 : vector<16x8xf32>
    %57 = vector.extract_strided_slice %12 {offsets = [0, 48], sizes = [16, 8], strides = [1, 1]} : vector<16x96xf32> to vector<16x8xf32>
    %58 = vector.extract_strided_slice %12 {offsets = [0, 80], sizes = [16, 8], strides = [1, 1]} : vector<16x96xf32> to vector<16x8xf32>
    %cst_28 = arith.constant dense<0.000000e+00> : vector<16x16xf32>
    %59 = tpu.matmul %56, %57, %cst_28 {dimension_numbers = #tpu.dot_dimension_numbers<[1], [1], [0], [0], [0, 0, 1, 0], [], []>} : vector<16x8xf32>, vector<16x8xf32>, vector<16x16xf32> -> vector<16x16xf32>
    %60 = arith.addf %59, %1 : vector<16x16xf32>
    %cst_29 = arith.constant dense<0xFF800000> : vector<16xf32>
    %61 = vector.multi_reduction <maximumf>, %60, %cst_29 [1] : vector<16x16xf32> to vector<16xf32>
    %62 = vector.shape_cast %61 : vector<16xf32> to vector<16x1xf32>
    %63 = vector.broadcast %62 : vector<16x1xf32> to vector<16x16xf32>
    %64 = arith.subf %60, %63 : vector<16x16xf32>
    %65 = math.exp %64 : vector<16x16xf32>
    %cst_30 = arith.constant dense<0.000000e+00> : vector<16xf32>
    %66 = vector.multi_reduction <add>, %65, %cst_30 [1] : vector<16x16xf32> to vector<16xf32>
    %67 = vector.shape_cast %66 : vector<16xf32> to vector<16x1xf32>
    %68 = tpu.reciprocal %67 {approx = true} : vector<16x1xf32> -> vector<16x1xf32>
    %69 = vector.broadcast %68 : vector<16x1xf32> to vector<16x16xf32>
    %70 = arith.mulf %65, %69 : vector<16x16xf32>
    %cst_31 = arith.constant dense<0.000000e+00> : vector<16x8xf32>
    %71 = tpu.matmul %70, %58, %cst_31 {dimension_numbers = #tpu.dot_dimension_numbers<[1], [0], [0], [1], [0, 0, 1, 1], [], []>} : vector<16x16xf32>, vector<16x8xf32>, vector<16x8xf32> -> vector<16x8xf32>
    %72 = vector.extract_strided_slice %7 {offsets = [16, 0], sizes = [8, 32], strides = [1, 1]} : vector<32x32xf32> to vector<8x32xf32>
    %cst_32 = arith.constant dense<0.000000e+00> : vector<16x32xf32>
    %73 = tpu.matmul %71, %72, %cst_32 {dimension_numbers = #tpu.dot_dimension_numbers<[1], [0], [0], [1], [0, 0, 1, 1], [], []>} : vector<16x8xf32>, vector<8x32xf32>, vector<16x32xf32> -> vector<16x32xf32>
    %74 = arith.addf %53, %73 : vector<16x32xf32>
    %75 = vector.extract_strided_slice %12 {offsets = [0, 24], sizes = [16, 8], strides = [1, 1]} : vector<16x96xf32> to vector<16x8xf32>
    %cst_33 = arith.constant 0.353553385 : f32
    %76 = vector.broadcast %cst_33 : f32 to vector<16x8xf32>
    %77 = arith.mulf %75, %76 : vector<16x8xf32>
    %78 = vector.extract_strided_slice %12 {offsets = [0, 56], sizes = [16, 8], strides = [1, 1]} : vector<16x96xf32> to vector<16x8xf32>
    %79 = vector.extract_strided_slice %12 {offsets = [0, 88], sizes = [16, 8], strides = [1, 1]} : vector<16x96xf32> to vector<16x8xf32>
    %cst_34 = arith.constant dense<0.000000e+00> : vector<16x16xf32>
    %80 = tpu.matmul %77, %78, %cst_34 {dimension_numbers = #tpu.dot_dimension_numbers<[1], [1], [0], [0], [0, 0, 1, 0], [], []>} : vector<16x8xf32>, vector<16x8xf32>, vector<16x16xf32> -> vector<16x16xf32>
    %81 = arith.addf %80, %1 : vector<16x16xf32>
    %cst_35 = arith.constant dense<0xFF800000> : vector<16xf32>
    %82 = vector.multi_reduction <maximumf>, %81, %cst_35 [1] : vector<16x16xf32> to vector<16xf32>
    %83 = vector.shape_cast %82 : vector<16xf32> to vector<16x1xf32>
    %84 = vector.broadcast %83 : vector<16x1xf32> to vector<16x16xf32>
    %85 = arith.subf %81, %84 : vector<16x16xf32>
    %86 = math.exp %85 : vector<16x16xf32>
    %cst_36 = arith.constant dense<0.000000e+00> : vector<16xf32>
    %87 = vector.multi_reduction <add>, %86, %cst_36 [1] : vector<16x16xf32> to vector<16xf32>
    %88 = vector.shape_cast %87 : vector<16xf32> to vector<16x1xf32>
    %89 = tpu.reciprocal %88 {approx = true} : vector<16x1xf32> -> vector<16x1xf32>
    %90 = vector.broadcast %89 : vector<16x1xf32> to vector<16x16xf32>
    %91 = arith.mulf %86, %90 : vector<16x16xf32>
    %cst_37 = arith.constant dense<0.000000e+00> : vector<16x8xf32>
    %92 = tpu.matmul %91, %79, %cst_37 {dimension_numbers = #tpu.dot_dimension_numbers<[1], [0], [0], [1], [0, 0, 1, 1], [], []>} : vector<16x16xf32>, vector<16x8xf32>, vector<16x8xf32> -> vector<16x8xf32>
    %93 = vector.extract_strided_slice %7 {offsets = [24, 0], sizes = [8, 32], strides = [1, 1]} : vector<32x32xf32> to vector<8x32xf32>
    %cst_38 = arith.constant dense<0.000000e+00> : vector<16x32xf32>
    %94 = tpu.matmul %92, %93, %cst_38 {dimension_numbers = #tpu.dot_dimension_numbers<[1], [0], [0], [1], [0, 0, 1, 1], [], []>} : vector<16x8xf32>, vector<8x32xf32>, vector<16x32xf32> -> vector<16x32xf32>
    %95 = arith.addf %74, %94 : vector<16x32xf32>
    %96 = vector.broadcast %9 : vector<1x32xf32> to vector<16x32xf32>
    %97 = arith.addf %95, %96 : vector<16x32xf32>
    %98 = arith.addf %0, %97 : vector<16x32xf32>
    %c0_39 = arith.constant 0 : index
    %c0_40 = arith.constant 0 : index
    %c0_41 = arith.constant 0 : index
    %99 = vector.load %arg7[%c0_39, %c0_40, %c0_41] : memref<2x1x32xf32, #tpu.memory_space<vmem>>, vector<1x1x32xf32>
    %100 = vector.shape_cast %99 : vector<1x1x32xf32> to vector<1x32xf32>
    %c0_42 = arith.constant 0 : index
    %c0_43 = arith.constant 0 : index
    %c0_44 = arith.constant 0 : index
    %101 = vector.load %arg8[%c0_42, %c0_43, %c0_44] : memref<2x1x32xf32, #tpu.memory_space<vmem>>, vector<1x1x32xf32>
    %102 = vector.shape_cast %101 : vector<1x1x32xf32> to vector<1x32xf32>
    %cst_45 = arith.constant dense<0.000000e+00> : vector<16xf32>
    %103 = vector.multi_reduction <add>, %98, %cst_45 [1] : vector<16x32xf32> to vector<16xf32>
    %104 = vector.shape_cast %103 : vector<16xf32> to vector<16x1xf32>
    %cst_46 = arith.constant 3.200000e+01 : f32
    %105 = vector.broadcast %cst_46 : f32 to vector<16x1xf32>
    %106 = arith.divf %104, %105 : vector<16x1xf32>
    %107 = vector.broadcast %106 : vector<16x1xf32> to vector<16x32xf32>
    %108 = arith.subf %98, %107 : vector<16x32xf32>
    %109 = arith.mulf %108, %108 : vector<16x32xf32>
    %cst_47 = arith.constant dense<0.000000e+00> : vector<16xf32>
    %110 = vector.multi_reduction <add>, %109, %cst_47 [1] : vector<16x32xf32> to vector<16xf32>
    %111 = vector.shape_cast %110 : vector<16xf32> to vector<16x1xf32>
    %cst_48 = arith.constant 3.200000e+01 : f32
    %112 = vector.broadcast %cst_48 : f32 to vector<16x1xf32>
    %113 = arith.divf %111, %112 : vector<16x1xf32>
    %114 = vector.broadcast %106 : vector<16x1xf32> to vector<16x32xf32>
    %115 = arith.subf %98, %114 : vector<16x32xf32>
    %cst_49 = arith.constant 9.99999974E-6 : f32
    %116 = vector.broadcast %cst_49 : f32 to vector<16x1xf32>
    %117 = arith.addf %113, %116 : vector<16x1xf32>
    %118 = math.rsqrt %117 : vector<16x1xf32>
    %119 = vector.broadcast %118 : vector<16x1xf32> to vector<16x32xf32>
    %120 = arith.mulf %115, %119 : vector<16x32xf32>
    %121 = vector.broadcast %100 : vector<1x32xf32> to vector<16x32xf32>
    %122 = arith.mulf %120, %121 : vector<16x32xf32>
    %123 = vector.broadcast %102 : vector<1x32xf32> to vector<16x32xf32>
    %124 = arith.addf %122, %123 : vector<16x32xf32>
    %c0_50 = arith.constant 0 : index
    %c0_51 = arith.constant 0 : index
    %c0_52 = arith.constant 0 : index
    %125 = vector.load %arg9[%c0_50, %c0_51, %c0_52] : memref<2x32x64xf32, #tpu.memory_space<vmem>>, vector<1x32x64xf32>
    %126 = vector.shape_cast %125 : vector<1x32x64xf32> to vector<32x64xf32>
    %cst_53 = arith.constant dense<0.000000e+00> : vector<16x64xf32>
    %127 = tpu.matmul %124, %126, %cst_53 {dimension_numbers = #tpu.dot_dimension_numbers<[1], [0], [0], [1], [0, 0, 1, 1], [], []>} : vector<16x32xf32>, vector<32x64xf32>, vector<16x64xf32> -> vector<16x64xf32>
    %cst_54 = arith.constant 0.000000e+00 : f32
    %128 = vector.broadcast %cst_54 : f32 to vector<16x64xf32>
    %129 = arith.maximumf %127, %128 : vector<16x64xf32>
    %c0_55 = arith.constant 0 : index
    %c0_56 = arith.constant 0 : index
    %c0_57 = arith.constant 0 : index
    %130 = vector.load %arg10[%c0_55, %c0_56, %c0_57] : memref<2x64x32xf32, #tpu.memory_space<vmem>>, vector<1x64x32xf32>
    %131 = vector.shape_cast %130 : vector<1x64x32xf32> to vector<64x32xf32>
    %cst_58 = arith.constant dense<0.000000e+00> : vector<16x32xf32>
    %132 = tpu.matmul %129, %131, %cst_58 {dimension_numbers = #tpu.dot_dimension_numbers<[1], [0], [0], [1], [0, 0, 1, 1], [], []>} : vector<16x64xf32>, vector<64x32xf32>, vector<16x32xf32> -> vector<16x32xf32>
    %133 = arith.addf %124, %132 : vector<16x32xf32>
    %c0_59 = arith.constant 0 : index
    %c0_60 = arith.constant 0 : index
    %c0_61 = arith.constant 0 : index
    %134 = vector.load %arg11[%c0_59, %c0_60, %c0_61] : memref<2x1x32xf32, #tpu.memory_space<vmem>>, vector<1x1x32xf32>
    %135 = vector.shape_cast %134 : vector<1x1x32xf32> to vector<1x32xf32>
    %c0_62 = arith.constant 0 : index
    %c0_63 = arith.constant 0 : index
    %c0_64 = arith.constant 0 : index
    %136 = vector.load %arg12[%c0_62, %c0_63, %c0_64] : memref<2x1x32xf32, #tpu.memory_space<vmem>>, vector<1x1x32xf32>
    %137 = vector.shape_cast %136 : vector<1x1x32xf32> to vector<1x32xf32>
    %cst_65 = arith.constant dense<0.000000e+00> : vector<16xf32>
    %138 = vector.multi_reduction <add>, %133, %cst_65 [1] : vector<16x32xf32> to vector<16xf32>
    %139 = vector.shape_cast %138 : vector<16xf32> to vector<16x1xf32>
    %cst_66 = arith.constant 3.200000e+01 : f32
    %140 = vector.broadcast %cst_66 : f32 to vector<16x1xf32>
    %141 = arith.divf %139, %140 : vector<16x1xf32>
    %142 = vector.broadcast %141 : vector<16x1xf32> to vector<16x32xf32>
    %143 = arith.subf %133, %142 : vector<16x32xf32>
    %144 = arith.mulf %143, %143 : vector<16x32xf32>
    %cst_67 = arith.constant dense<0.000000e+00> : vector<16xf32>
    %145 = vector.multi_reduction <add>, %144, %cst_67 [1] : vector<16x32xf32> to vector<16xf32>
    %146 = vector.shape_cast %145 : vector<16xf32> to vector<16x1xf32>
    %cst_68 = arith.constant 3.200000e+01 : f32
    %147 = vector.broadcast %cst_68 : f32 to vector<16x1xf32>
    %148 = arith.divf %146, %147 : vector<16x1xf32>
    %149 = vector.broadcast %141 : vector<16x1xf32> to vector<16x32xf32>
    %150 = arith.subf %133, %149 : vector<16x32xf32>
    %cst_69 = arith.constant 9.99999974E-6 : f32
    %151 = vector.broadcast %cst_69 : f32 to vector<16x1xf32>
    %152 = arith.addf %148, %151 : vector<16x1xf32>
    %153 = math.rsqrt %152 : vector<16x1xf32>
    %154 = vector.broadcast %153 : vector<16x1xf32> to vector<16x32xf32>
    %155 = arith.mulf %150, %154 : vector<16x32xf32>
    %156 = vector.broadcast %135 : vector<1x32xf32> to vector<16x32xf32>
    %157 = arith.mulf %155, %156 : vector<16x32xf32>
    %158 = vector.broadcast %137 : vector<1x32xf32> to vector<16x32xf32>
    %159 = arith.addf %157, %158 : vector<16x32xf32>
    %c1 = arith.constant 1 : index
    %c0_70 = arith.constant 0 : index
    %c0_71 = arith.constant 0 : index
    %160 = vector.load %arg3[%c1, %c0_70, %c0_71] : memref<2x32x96xf32, #tpu.memory_space<vmem>>, vector<1x32x96xf32>
    %161 = vector.shape_cast %160 : vector<1x32x96xf32> to vector<32x96xf32>
    %c1_72 = arith.constant 1 : index
    %c0_73 = arith.constant 0 : index
    %c0_74 = arith.constant 0 : index
    %162 = vector.load %arg4[%c1_72, %c0_73, %c0_74] : memref<2x1x96xf32, #tpu.memory_space<vmem>>, vector<1x1x96xf32>
    %163 = vector.shape_cast %162 : vector<1x1x96xf32> to vector<1x96xf32>
    %c1_75 = arith.constant 1 : index
    %c0_76 = arith.constant 0 : index
    %c0_77 = arith.constant 0 : index
    %164 = vector.load %arg5[%c1_75, %c0_76, %c0_77] : memref<2x32x32xf32, #tpu.memory_space<vmem>>, vector<1x32x32xf32>
    %165 = vector.shape_cast %164 : vector<1x32x32xf32> to vector<32x32xf32>
    %c1_78 = arith.constant 1 : index
    %c0_79 = arith.constant 0 : index
    %c0_80 = arith.constant 0 : index
    %166 = vector.load %arg6[%c1_78, %c0_79, %c0_80] : memref<2x1x32xf32, #tpu.memory_space<vmem>>, vector<1x1x32xf32>
    %167 = vector.shape_cast %166 : vector<1x1x32xf32> to vector<1x32xf32>
    %cst_81 = arith.constant dense<0.000000e+00> : vector<16x96xf32>
    %168 = tpu.matmul %159, %161, %cst_81 {dimension_numbers = #tpu.dot_dimension_numbers<[1], [0], [0], [1], [0, 0, 1, 1], [], []>} : vector<16x32xf32>, vector<32x96xf32>, vector<16x96xf32> -> vector<16x96xf32>
    %169 = vector.broadcast %163 : vector<1x96xf32> to vector<16x96xf32>
    %170 = arith.addf %168, %169 : vector<16x96xf32>
    %171 = vector.extract_strided_slice %170 {offsets = [0, 0], sizes = [16, 8], strides = [1, 1]} : vector<16x96xf32> to vector<16x8xf32>
    %cst_82 = arith.constant 0.353553385 : f32
    %172 = vector.broadcast %cst_82 : f32 to vector<16x8xf32>
    %173 = arith.mulf %171, %172 : vector<16x8xf32>
    %174 = vector.extract_strided_slice %170 {offsets = [0, 32], sizes = [16, 8], strides = [1, 1]} : vector<16x96xf32> to vector<16x8xf32>
    %175 = vector.extract_strided_slice %170 {offsets = [0, 64], sizes = [16, 8], strides = [1, 1]} : vector<16x96xf32> to vector<16x8xf32>
    %cst_83 = arith.constant dense<0.000000e+00> : vector<16x16xf32>
    %176 = tpu.matmul %173, %174, %cst_83 {dimension_numbers = #tpu.dot_dimension_numbers<[1], [1], [0], [0], [0, 0, 1, 0], [], []>} : vector<16x8xf32>, vector<16x8xf32>, vector<16x16xf32> -> vector<16x16xf32>
    %177 = arith.addf %176, %1 : vector<16x16xf32>
    %cst_84 = arith.constant dense<0xFF800000> : vector<16xf32>
    %178 = vector.multi_reduction <maximumf>, %177, %cst_84 [1] : vector<16x16xf32> to vector<16xf32>
    %179 = vector.shape_cast %178 : vector<16xf32> to vector<16x1xf32>
    %180 = vector.broadcast %179 : vector<16x1xf32> to vector<16x16xf32>
    %181 = arith.subf %177, %180 : vector<16x16xf32>
    %182 = math.exp %181 : vector<16x16xf32>
    %cst_85 = arith.constant dense<0.000000e+00> : vector<16xf32>
    %183 = vector.multi_reduction <add>, %182, %cst_85 [1] : vector<16x16xf32> to vector<16xf32>
    %184 = vector.shape_cast %183 : vector<16xf32> to vector<16x1xf32>
    %185 = tpu.reciprocal %184 {approx = true} : vector<16x1xf32> -> vector<16x1xf32>
    %186 = vector.broadcast %185 : vector<16x1xf32> to vector<16x16xf32>
    %187 = arith.mulf %182, %186 : vector<16x16xf32>
    %cst_86 = arith.constant dense<0.000000e+00> : vector<16x8xf32>
    %188 = tpu.matmul %187, %175, %cst_86 {dimension_numbers = #tpu.dot_dimension_numbers<[1], [0], [0], [1], [0, 0, 1, 1], [], []>} : vector<16x16xf32>, vector<16x8xf32>, vector<16x8xf32> -> vector<16x8xf32>
    %189 = vector.extract_strided_slice %165 {offsets = [0, 0], sizes = [8, 32], strides = [1, 1]} : vector<32x32xf32> to vector<8x32xf32>
    %cst_87 = arith.constant dense<0.000000e+00> : vector<16x32xf32>
    %190 = tpu.matmul %188, %189, %cst_87 {dimension_numbers = #tpu.dot_dimension_numbers<[1], [0], [0], [1], [0, 0, 1, 1], [], []>} : vector<16x8xf32>, vector<8x32xf32>, vector<16x32xf32> -> vector<16x32xf32>
    %191 = vector.extract_strided_slice %170 {offsets = [0, 8], sizes = [16, 8], strides = [1, 1]} : vector<16x96xf32> to vector<16x8xf32>
    %cst_88 = arith.constant 0.353553385 : f32
    %192 = vector.broadcast %cst_88 : f32 to vector<16x8xf32>
    %193 = arith.mulf %191, %192 : vector<16x8xf32>
    %194 = vector.extract_strided_slice %170 {offsets = [0, 40], sizes = [16, 8], strides = [1, 1]} : vector<16x96xf32> to vector<16x8xf32>
    %195 = vector.extract_strided_slice %170 {offsets = [0, 72], sizes = [16, 8], strides = [1, 1]} : vector<16x96xf32> to vector<16x8xf32>
    %cst_89 = arith.constant dense<0.000000e+00> : vector<16x16xf32>
    %196 = tpu.matmul %193, %194, %cst_89 {dimension_numbers = #tpu.dot_dimension_numbers<[1], [1], [0], [0], [0, 0, 1, 0], [], []>} : vector<16x8xf32>, vector<16x8xf32>, vector<16x16xf32> -> vector<16x16xf32>
    %197 = arith.addf %196, %1 : vector<16x16xf32>
    %cst_90 = arith.constant dense<0xFF800000> : vector<16xf32>
    %198 = vector.multi_reduction <maximumf>, %197, %cst_90 [1] : vector<16x16xf32> to vector<16xf32>
    %199 = vector.shape_cast %198 : vector<16xf32> to vector<16x1xf32>
    %200 = vector.broadcast %199 : vector<16x1xf32> to vector<16x16xf32>
    %201 = arith.subf %197, %200 : vector<16x16xf32>
    %202 = math.exp %201 : vector<16x16xf32>
    %cst_91 = arith.constant dense<0.000000e+00> : vector<16xf32>
    %203 = vector.multi_reduction <add>, %202, %cst_91 [1] : vector<16x16xf32> to vector<16xf32>
    %204 = vector.shape_cast %203 : vector<16xf32> to vector<16x1xf32>
    %205 = tpu.reciprocal %204 {approx = true} : vector<16x1xf32> -> vector<16x1xf32>
    %206 = vector.broadcast %205 : vector<16x1xf32> to vector<16x16xf32>
    %207 = arith.mulf %202, %206 : vector<16x16xf32>
    %cst_92 = arith.constant dense<0.000000e+00> : vector<16x8xf32>
    %208 = tpu.matmul %207, %195, %cst_92 {dimension_numbers = #tpu.dot_dimension_numbers<[1], [0], [0], [1], [0, 0, 1, 1], [], []>} : vector<16x16xf32>, vector<16x8xf32>, vector<16x8xf32> -> vector<16x8xf32>
    %209 = vector.extract_strided_slice %165 {offsets = [8, 0], sizes = [8, 32], strides = [1, 1]} : vector<32x32xf32> to vector<8x32xf32>
    %cst_93 = arith.constant dense<0.000000e+00> : vector<16x32xf32>
    %210 = tpu.matmul %208, %209, %cst_93 {dimension_numbers = #tpu.dot_dimension_numbers<[1], [0], [0], [1], [0, 0, 1, 1], [], []>} : vector<16x8xf32>, vector<8x32xf32>, vector<16x32xf32> -> vector<16x32xf32>
    %211 = arith.addf %190, %210 : vector<16x32xf32>
    %212 = vector.extract_strided_slice %170 {offsets = [0, 16], sizes = [16, 8], strides = [1, 1]} : vector<16x96xf32> to vector<16x8xf32>
    %cst_94 = arith.constant 0.353553385 : f32
    %213 = vector.broadcast %cst_94 : f32 to vector<16x8xf32>
    %214 = arith.mulf %212, %213 : vector<16x8xf32>
    %215 = vector.extract_strided_slice %170 {offsets = [0, 48], sizes = [16, 8], strides = [1, 1]} : vector<16x96xf32> to vector<16x8xf32>
    %216 = vector.extract_strided_slice %170 {offsets = [0, 80], sizes = [16, 8], strides = [1, 1]} : vector<16x96xf32> to vector<16x8xf32>
    %cst_95 = arith.constant dense<0.000000e+00> : vector<16x16xf32>
    %217 = tpu.matmul %214, %215, %cst_95 {dimension_numbers = #tpu.dot_dimension_numbers<[1], [1], [0], [0], [0, 0, 1, 0], [], []>} : vector<16x8xf32>, vector<16x8xf32>, vector<16x16xf32> -> vector<16x16xf32>
    %218 = arith.addf %217, %1 : vector<16x16xf32>
    %cst_96 = arith.constant dense<0xFF800000> : vector<16xf32>
    %219 = vector.multi_reduction <maximumf>, %218, %cst_96 [1] : vector<16x16xf32> to vector<16xf32>
    %220 = vector.shape_cast %219 : vector<16xf32> to vector<16x1xf32>
    %221 = vector.broadcast %220 : vector<16x1xf32> to vector<16x16xf32>
    %222 = arith.subf %218, %221 : vector<16x16xf32>
    %223 = math.exp %222 : vector<16x16xf32>
    %cst_97 = arith.constant dense<0.000000e+00> : vector<16xf32>
    %224 = vector.multi_reduction <add>, %223, %cst_97 [1] : vector<16x16xf32> to vector<16xf32>
    %225 = vector.shape_cast %224 : vector<16xf32> to vector<16x1xf32>
    %226 = tpu.reciprocal %225 {approx = true} : vector<16x1xf32> -> vector<16x1xf32>
    %227 = vector.broadcast %226 : vector<16x1xf32> to vector<16x16xf32>
    %228 = arith.mulf %223, %227 : vector<16x16xf32>
    %cst_98 = arith.constant dense<0.000000e+00> : vector<16x8xf32>
    %229 = tpu.matmul %228, %216, %cst_98 {dimension_numbers = #tpu.dot_dimension_numbers<[1], [0], [0], [1], [0, 0, 1, 1], [], []>} : vector<16x16xf32>, vector<16x8xf32>, vector<16x8xf32> -> vector<16x8xf32>
    %230 = vector.extract_strided_slice %165 {offsets = [16, 0], sizes = [8, 32], strides = [1, 1]} : vector<32x32xf32> to vector<8x32xf32>
    %cst_99 = arith.constant dense<0.000000e+00> : vector<16x32xf32>
    %231 = tpu.matmul %229, %230, %cst_99 {dimension_numbers = #tpu.dot_dimension_numbers<[1], [0], [0], [1], [0, 0, 1, 1], [], []>} : vector<16x8xf32>, vector<8x32xf32>, vector<16x32xf32> -> vector<16x32xf32>
    %232 = arith.addf %211, %231 : vector<16x32xf32>
    %233 = vector.extract_strided_slice %170 {offsets = [0, 24], sizes = [16, 8], strides = [1, 1]} : vector<16x96xf32> to vector<16x8xf32>
    %cst_100 = arith.constant 0.353553385 : f32
    %234 = vector.broadcast %cst_100 : f32 to vector<16x8xf32>
    %235 = arith.mulf %233, %234 : vector<16x8xf32>
    %236 = vector.extract_strided_slice %170 {offsets = [0, 56], sizes = [16, 8], strides = [1, 1]} : vector<16x96xf32> to vector<16x8xf32>
    %237 = vector.extract_strided_slice %170 {offsets = [0, 88], sizes = [16, 8], strides = [1, 1]} : vector<16x96xf32> to vector<16x8xf32>
    %cst_101 = arith.constant dense<0.000000e+00> : vector<16x16xf32>
    %238 = tpu.matmul %235, %236, %cst_101 {dimension_numbers = #tpu.dot_dimension_numbers<[1], [1], [0], [0], [0, 0, 1, 0], [], []>} : vector<16x8xf32>, vector<16x8xf32>, vector<16x16xf32> -> vector<16x16xf32>
    %239 = arith.addf %238, %1 : vector<16x16xf32>
    %cst_102 = arith.constant dense<0xFF800000> : vector<16xf32>
    %240 = vector.multi_reduction <maximumf>, %239, %cst_102 [1] : vector<16x16xf32> to vector<16xf32>
    %241 = vector.shape_cast %240 : vector<16xf32> to vector<16x1xf32>
    %242 = vector.broadcast %241 : vector<16x1xf32> to vector<16x16xf32>
    %243 = arith.subf %239, %242 : vector<16x16xf32>
    %244 = math.exp %243 : vector<16x16xf32>
    %cst_103 = arith.constant dense<0.000000e+00> : vector<16xf32>
    %245 = vector.multi_reduction <add>, %244, %cst_103 [1] : vector<16x16xf32> to vector<16xf32>
    %246 = vector.shape_cast %245 : vector<16xf32> to vector<16x1xf32>
    %247 = tpu.reciprocal %246 {approx = true} : vector<16x1xf32> -> vector<16x1xf32>
    %248 = vector.broadcast %247 : vector<16x1xf32> to vector<16x16xf32>
    %249 = arith.mulf %244, %248 : vector<16x16xf32>
    %cst_104 = arith.constant dense<0.000000e+00> : vector<16x8xf32>
    %250 = tpu.matmul %249, %237, %cst_104 {dimension_numbers = #tpu.dot_dimension_numbers<[1], [0], [0], [1], [0, 0, 1, 1], [], []>} : vector<16x16xf32>, vector<16x8xf32>, vector<16x8xf32> -> vector<16x8xf32>
    %251 = vector.extract_strided_slice %165 {offsets = [24, 0], sizes = [8, 32], strides = [1, 1]} : vector<32x32xf32> to vector<8x32xf32>
    %cst_105 = arith.constant dense<0.000000e+00> : vector<16x32xf32>
    %252 = tpu.matmul %250, %251, %cst_105 {dimension_numbers = #tpu.dot_dimension_numbers<[1], [0], [0], [1], [0, 0, 1, 1], [], []>} : vector<16x8xf32>, vector<8x32xf32>, vector<16x32xf32> -> vector<16x32xf32>
    %253 = arith.addf %232, %252 : vector<16x32xf32>
    %254 = vector.broadcast %167 : vector<1x32xf32> to vector<16x32xf32>
    %255 = arith.addf %253, %254 : vector<16x32xf32>
    %256 = arith.addf %159, %255 : vector<16x32xf32>
    %c1_106 = arith.constant 1 : index
    %c0_107 = arith.constant 0 : index
    %c0_108 = arith.constant 0 : index
    %257 = vector.load %arg7[%c1_106, %c0_107, %c0_108] : memref<2x1x32xf32, #tpu.memory_space<vmem>>, vector<1x1x32xf32>
    %258 = vector.shape_cast %257 : vector<1x1x32xf32> to vector<1x32xf32>
    %c1_109 = arith.constant 1 : index
    %c0_110 = arith.constant 0 : index
    %c0_111 = arith.constant 0 : index
    %259 = vector.load %arg8[%c1_109, %c0_110, %c0_111] : memref<2x1x32xf32, #tpu.memory_space<vmem>>, vector<1x1x32xf32>
    %260 = vector.shape_cast %259 : vector<1x1x32xf32> to vector<1x32xf32>
    %cst_112 = arith.constant dense<0.000000e+00> : vector<16xf32>
    %261 = vector.multi_reduction <add>, %256, %cst_112 [1] : vector<16x32xf32> to vector<16xf32>
    %262 = vector.shape_cast %261 : vector<16xf32> to vector<16x1xf32>
    %cst_113 = arith.constant 3.200000e+01 : f32
    %263 = vector.broadcast %cst_113 : f32 to vector<16x1xf32>
    %264 = arith.divf %262, %263 : vector<16x1xf32>
    %265 = vector.broadcast %264 : vector<16x1xf32> to vector<16x32xf32>
    %266 = arith.subf %256, %265 : vector<16x32xf32>
    %267 = arith.mulf %266, %266 : vector<16x32xf32>
    %cst_114 = arith.constant dense<0.000000e+00> : vector<16xf32>
    %268 = vector.multi_reduction <add>, %267, %cst_114 [1] : vector<16x32xf32> to vector<16xf32>
    %269 = vector.shape_cast %268 : vector<16xf32> to vector<16x1xf32>
    %cst_115 = arith.constant 3.200000e+01 : f32
    %270 = vector.broadcast %cst_115 : f32 to vector<16x1xf32>
    %271 = arith.divf %269, %270 : vector<16x1xf32>
    %272 = vector.broadcast %264 : vector<16x1xf32> to vector<16x32xf32>
    %273 = arith.subf %256, %272 : vector<16x32xf32>
    %cst_116 = arith.constant 9.99999974E-6 : f32
    %274 = vector.broadcast %cst_116 : f32 to vector<16x1xf32>
    %275 = arith.addf %271, %274 : vector<16x1xf32>
    %276 = math.rsqrt %275 : vector<16x1xf32>
    %277 = vector.broadcast %276 : vector<16x1xf32> to vector<16x32xf32>
    %278 = arith.mulf %273, %277 : vector<16x32xf32>
    %279 = vector.broadcast %258 : vector<1x32xf32> to vector<16x32xf32>
    %280 = arith.mulf %278, %279 : vector<16x32xf32>
    %281 = vector.broadcast %260 : vector<1x32xf32> to vector<16x32xf32>
    %282 = arith.addf %280, %281 : vector<16x32xf32>
    %c1_117 = arith.constant 1 : index
    %c0_118 = arith.constant 0 : index
    %c0_119 = arith.constant 0 : index
    %283 = vector.load %arg9[%c1_117, %c0_118, %c0_119] : memref<2x32x64xf32, #tpu.memory_space<vmem>>, vector<1x32x64xf32>
    %284 = vector.shape_cast %283 : vector<1x32x64xf32> to vector<32x64xf32>
    %cst_120 = arith.constant dense<0.000000e+00> : vector<16x64xf32>
    %285 = tpu.matmul %282, %284, %cst_120 {dimension_numbers = #tpu.dot_dimension_numbers<[1], [0], [0], [1], [0, 0, 1, 1], [], []>} : vector<16x32xf32>, vector<32x64xf32>, vector<16x64xf32> -> vector<16x64xf32>
    %cst_121 = arith.constant 0.000000e+00 : f32
    %286 = vector.broadcast %cst_121 : f32 to vector<16x64xf32>
    %287 = arith.maximumf %285, %286 : vector<16x64xf32>
    %c1_122 = arith.constant 1 : index
    %c0_123 = arith.constant 0 : index
    %c0_124 = arith.constant 0 : index
    %288 = vector.load %arg10[%c1_122, %c0_123, %c0_124] : memref<2x64x32xf32, #tpu.memory_space<vmem>>, vector<1x64x32xf32>
    %289 = vector.shape_cast %288 : vector<1x64x32xf32> to vector<64x32xf32>
    %cst_125 = arith.constant dense<0.000000e+00> : vector<16x32xf32>
    %290 = tpu.matmul %287, %289, %cst_125 {dimension_numbers = #tpu.dot_dimension_numbers<[1], [0], [0], [1], [0, 0, 1, 1], [], []>} : vector<16x64xf32>, vector<64x32xf32>, vector<16x32xf32> -> vector<16x32xf32>
    %291 = arith.addf %282, %290 : vector<16x32xf32>
    %c1_126 = arith.constant 1 : index
    %c0_127 = arith.constant 0 : index
    %c0_128 = arith.constant 0 : index
    %292 = vector.load %arg11[%c1_126, %c0_127, %c0_128] : memref<2x1x32xf32, #tpu.memory_space<vmem>>, vector<1x1x32xf32>
    %293 = vector.shape_cast %292 : vector<1x1x32xf32> to vector<1x32xf32>
    %c1_129 = arith.constant 1 : index
    %c0_130 = arith.constant 0 : index
    %c0_131 = arith.constant 0 : index
    %294 = vector.load %arg12[%c1_129, %c0_130, %c0_131] : memref<2x1x32xf32, #tpu.memory_space<vmem>>, vector<1x1x32xf32>
    %295 = vector.shape_cast %294 : vector<1x1x32xf32> to vector<1x32xf32>
    %cst_132 = arith.constant dense<0.000000e+00> : vector<16xf32>
    %296 = vector.multi_reduction <add>, %291, %cst_132 [1] : vector<16x32xf32> to vector<16xf32>
    %297 = vector.shape_cast %296 : vector<16xf32> to vector<16x1xf32>
    %cst_133 = arith.constant 3.200000e+01 : f32
    %298 = vector.broadcast %cst_133 : f32 to vector<16x1xf32>
    %299 = arith.divf %297, %298 : vector<16x1xf32>
    %300 = vector.broadcast %299 : vector<16x1xf32> to vector<16x32xf32>
    %301 = arith.subf %291, %300 : vector<16x32xf32>
    %302 = arith.mulf %301, %301 : vector<16x32xf32>
    %cst_134 = arith.constant dense<0.000000e+00> : vector<16xf32>
    %303 = vector.multi_reduction <add>, %302, %cst_134 [1] : vector<16x32xf32> to vector<16xf32>
    %304 = vector.shape_cast %303 : vector<16xf32> to vector<16x1xf32>
    %cst_135 = arith.constant 3.200000e+01 : f32
    %305 = vector.broadcast %cst_135 : f32 to vector<16x1xf32>
    %306 = arith.divf %304, %305 : vector<16x1xf32>
    %307 = vector.broadcast %299 : vector<16x1xf32> to vector<16x32xf32>
    %308 = arith.subf %291, %307 : vector<16x32xf32>
    %cst_136 = arith.constant 9.99999974E-6 : f32
    %309 = vector.broadcast %cst_136 : f32 to vector<16x1xf32>
    %310 = arith.addf %306, %309 : vector<16x1xf32>
    %311 = math.rsqrt %310 : vector<16x1xf32>
    %312 = vector.broadcast %311 : vector<16x1xf32> to vector<16x32xf32>
    %313 = arith.mulf %308, %312 : vector<16x32xf32>
    %314 = vector.broadcast %293 : vector<1x32xf32> to vector<16x32xf32>
    %315 = arith.mulf %313, %314 : vector<16x32xf32>
    %316 = vector.broadcast %295 : vector<1x32xf32> to vector<16x32xf32>
    %317 = arith.addf %315, %316 : vector<16x32xf32>
    %c0_137 = arith.constant 0 : index
    %c0_138 = arith.constant 0 : index
    %318 = vector.load %arg13[%c0_137, %c0_138] : memref<16x32xf32, #tpu.memory_space<vmem>>, vector<16x32xf32>
    tpu.vector_store %arg13[%c0_137, %c0_138], %317 {strides = array<i32>} : memref<16x32xf32, #tpu.memory_space<vmem>>, vector<16x32xf32>,
    return
  }
  func.func @transform_0(%arg0: i32) -> (i32, i32) {
    %c0_i32 = arith.constant 0 : i32
    %c0_i32_0 = arith.constant 0 : i32
    %c0_i32_1 = arith.constant 0 : i32
    return %c0_i32, %c0_i32_0 : i32, i32
  }
  func.func @transform_1(%arg0: i32) -> (i32, i32) {
    %c0_i32 = arith.constant 0 : i32
    %c0_i32_0 = arith.constant 0 : i32
    %c0_i32_1 = arith.constant 0 : i32
    return %c0_i32, %c0_i32_0 : i32, i32
  }
  func.func @transform_2(%arg0: i32) -> (i32, i32, i32) {
    %c0_i32 = arith.constant 0 : i32
    %c0_i32_0 = arith.constant 0 : i32
    %c0_i32_1 = arith.constant 0 : i32
    %c0_i32_2 = arith.constant 0 : i32
    return %c0_i32, %c0_i32_0, %c0_i32_1 : i32, i32, i32
  }
  func.func @transform_3(%arg0: i32) -> (i32, i32, i32) {
    %c0_i32 = arith.constant 0 : i32
    %c0_i32_0 = arith.constant 0 : i32
    %c0_i32_1 = arith.constant 0 : i32
    %c0_i32_2 = arith.constant 0 : i32
    return %c0_i32, %c0_i32_0, %c0_i32_1 : i32, i32, i32
  }
  func.func @transform_4(%arg0: i32) -> (i32, i32, i32) {
    %c0_i32 = arith.constant 0 : i32
    %c0_i32_0 = arith.constant 0 : i32
    %c0_i32_1 = arith.constant 0 : i32
    %c0_i32_2 = arith.constant 0 : i32
    return %c0_i32, %c0_i32_0, %c0_i32_1 : i32, i32, i32
  }
  func.func @transform_5(%arg0: i32) -> (i32, i32, i32) {
    %c0_i32 = arith.constant 0 : i32
    %c0_i32_0 = arith.constant 0 : i32
    %c0_i32_1 = arith.constant 0 : i32
    %c0_i32_2 = arith.constant 0 : i32
    return %c0_i32, %c0_i32_0, %c0_i32_1 : i32, i32, i32
  }
  func.func @transform_6(%arg0: i32) -> (i32, i32, i32) {
    %c0_i32 = arith.constant 0 : i32
    %c0_i32_0 = arith.constant 0 : i32
    %c0_i32_1 = arith.constant 0 : i32
    %c0_i32_2 = arith.constant 0 : i32
    return %c0_i32, %c0_i32_0, %c0_i32_1 : i32, i32, i32
  }
  func.func @transform_7(%arg0: i32) -> (i32, i32, i32) {
    %c0_i32 = arith.constant 0 : i32
    %c0_i32_0 = arith.constant 0 : i32
    %c0_i32_1 = arith.constant 0 : i32
    %c0_i32_2 = arith.constant 0 : i32
    return %c0_i32, %c0_i32_0, %c0_i32_1 : i32, i32, i32
  }
  func.func @transform_8(%arg0: i32) -> (i32, i32, i32) {
    %c0_i32 = arith.constant 0 : i32
    %c0_i32_0 = arith.constant 0 : i32
    %c0_i32_1 = arith.constant 0 : i32
    %c0_i32_2 = arith.constant 0 : i32
    return %c0_i32, %c0_i32_0, %c0_i32_1 : i32, i32, i32
  }
  func.func @transform_9(%arg0: i32) -> (i32, i32, i32) {
    %c0_i32 = arith.constant 0 : i32
    %c0_i32_0 = arith.constant 0 : i32
    %c0_i32_1 = arith.constant 0 : i32
    %c0_i32_2 = arith.constant 0 : i32
    return %c0_i32, %c0_i32_0, %c0_i32_1 : i32, i32, i32
  }
  func.func @transform_10(%arg0: i32) -> (i32, i32, i32) {
    %c0_i32 = arith.constant 0 : i32
    %c0_i32_0 = arith.constant 0 : i32
    %c0_i32_1 = arith.constant 0 : i32
    %c0_i32_2 = arith.constant 0 : i32
    return %c0_i32, %c0_i32_0, %c0_i32_1 : i32, i32, i32
  }
  func.func @transform_11(%arg0: i32) -> (i32, i32, i32) {
    %c0_i32 = arith.constant 0 : i32
    %c0_i32_0 = arith.constant 0 : i32
    %c0_i32_1 = arith.constant 0 : i32
    %c0_i32_2 = arith.constant 0 : i32
    return %c0_i32, %c0_i32_0, %c0_i32_1 : i32, i32, i32
  }
  func.func @transform_12(%arg0: i32) -> (i32, i32) {
    %c0_i32 = arith.constant 0 : i32
    %c0_i32_0 = arith.constant 0 : i32
    %c0_i32_1 = arith.constant 0 : i32
    return %c0_i32, %c0_i32_0 : i32, i32
  }
}

</mosaic_0001>

<llo_original>
// kernel: tpu_custom_call.1
$region0: #{tpu_custom_call.1}
  #allocation0 [shape = 'u32[]', space=smem, size = 0x4, offset = 0x4, fixed_abs, tag = 'smem constant byte address 0x4 - core index']
  #allocation1 [shape = 'u32[144,128]{1,0:T(1,128)}', space=vmem, size = 0x12000, scoped, tag = 'internal scratch']
  %s0 = inlined_call_operand.hbm [shape: f32[16,32], index: 0, kind: input, shape index: {}]
  %s1 = inlined_call_operand.hbm [shape: f32[16,16], index: 1, kind: input, shape index: {}]
  %s2 = inlined_call_operand.vmem [shape: f32[2,32,96], index: 2, kind: input, shape index: {}]
  %s3 = inlined_call_operand.vmem [shape: f32[2,1,96], index: 3, kind: input, shape index: {}]
  %s4 = inlined_call_operand.vmem [shape: f32[2,32,32], index: 4, kind: input, shape index: {}]
  %s5 = inlined_call_operand.vmem [shape: f32[2,1,32], index: 5, kind: input, shape index: {}]
  %s6 = inlined_call_operand.vmem [shape: f32[2,1,32], index: 6, kind: input, shape index: {}]
  %s7 = inlined_call_operand.vmem [shape: f32[2,1,32], index: 7, kind: input, shape index: {}]
  %s8 = inlined_call_operand.vmem [shape: f32[2,32,64], index: 8, kind: input, shape index: {}]
  %s9 = inlined_call_operand.vmem [shape: f32[2,64,32], index: 9, kind: input, shape index: {}]
  %s10 = inlined_call_operand.vmem [shape: f32[2,1,32], index: 10, kind: input, shape index: {}]
  %s11 = inlined_call_operand.vmem [shape: f32[2,1,32], index: 11, kind: input, shape index: {}]
  %s12 = inlined_call_operand.hbm [shape: f32[16,32], index: 12, kind: output, shape index: {}]
  %s13 = sld [smem:[#allocation0]]
  $region66: #{tpu_custom_call.1} parent=0
    _
  %s15 = ssub.s32 1, %s13
  %s16 = scalar_select 0, %s15, %s13
  $region1: #{tpu_custom_call.1} parent=0
    #allocation2 [shape = 'u8[8192]{0}', space=vmem, size = 0x2000, scoped, tag = 'input window, operand 0, single buffered']
    #allocation3 [shape = 's32[1]{0}', space=sflag, size = 0x4, scoped, tag = 'scoped memory for tpu_custom_call.1']
    #allocation4 [shape = 's32[1]{0}', space=sflag, size = 0x4, scoped, tag = 'scoped memory for tpu_custom_call.1']
    #allocation5 [shape = 'u8[8192]{0}', space=vmem, size = 0x2000, scoped, tag = 'input window, operand 1, single buffered']
    #allocation6 [shape = 's32[1]{0}', space=sflag, size = 0x4, scoped, tag = 'scoped memory for tpu_custom_call.1']
    #allocation7 [shape = 'u8[8192]{0}', space=vmem, size = 0x2000, scoped, tag = 'output window, operand 0, single buffered']
    %17 = vsyncpa [#allocation3], 0
    %18 = vsyncpa [#allocation6], 0
    %19 = vsyncpa [#allocation4], 0
    // Predicated region
    $region2: #{tpu_custom_call.1} parent=1 // pred_check
      _
    $region3: #{tpu_custom_call.1} parent=1 // pred_check_branch
      %21 = sbr.rel (0) target = $region5
    $region4: #{tpu_custom_call.1} parent=1 // pred_region
      %s23 = ssub.s32 256, 256
      %24 = vsyncadd [#allocation3], %s23
      %s25 = sshll.u32 [#allocation2], 4
      %s26 = int_to_ptr.vmem [resolvable:$true] %s25
      %31 = dma.hbm_to_vmem [thread:$0]  %s0, 256, %s26, [#allocation3], 128, 128, 8
    $region5: #{tpu_custom_call.1} parent=1 // pred_fallthru
      _
    // Predicated region
    $region6: #{tpu_custom_call.1} parent=1 // pred_check
      _
    $region7: #{tpu_custom_call.1} parent=1 // pred_check_branch
      %33 = sbr.rel (0) target = $region9
    $region8: #{tpu_custom_call.1} parent=1 // pred_region
      %s35 = ssub.s32 256, 256
      %36 = vsyncadd [#allocation6], %s35
      %s37 = sshll.u32 [#allocation5], 4
      %s38 = int_to_ptr.vmem [resolvable:$true] %s37
      %43 = dma.hbm_to_vmem [thread:$0]  %s1, 256, %s38, [#allocation6], 128, 128, 8
    $region9: #{tpu_custom_call.1} parent=1 // pred_fallthru
      _
    // Predicated region
    $region10: #{tpu_custom_call.1} parent=1 // pred_check
      _
    $region11: #{tpu_custom_call.1} parent=1 // pred_check_branch
      %45 = sbr.rel (0) target = $region13
    $region12: #{tpu_custom_call.1} parent=1 // pred_region
      _
    $region13: #{tpu_custom_call.1} parent=1 // pred_fallthru
      _
    // Predicated region
    $region14: #{tpu_custom_call.1} parent=1 // pred_check
      _
    $region15: #{tpu_custom_call.1} parent=1 // pred_check_branch
      %47 = sbr.rel (0) target = $region17
    $region16: #{tpu_custom_call.1} parent=1 // pred_region
      _
    $region17: #{tpu_custom_call.1} parent=1 // pred_fallthru
      _
    // Predicated region
    $region18: #{tpu_custom_call.1} parent=1 // pred_check
      _
    $region19: #{tpu_custom_call.1} parent=1 // pred_check_branch
      %49 = sbr.rel (0) target = $region21
    $region20: #{tpu_custom_call.1} parent=1 // pred_region
      _
    $region21: #{tpu_custom_call.1} parent=1 // pred_fallthru
      _
    // Predicated region
    $region22: #{tpu_custom_call.1} parent=1 // pred_check
      _
    $region23: #{tpu_custom_call.1} parent=1 // pred_check_branch
      %51 = sbr.rel (0) target = $region25
    $region24: #{tpu_custom_call.1} parent=1 // pred_region
      _
    $region25: #{tpu_custom_call.1} parent=1 // pred_fallthru
      _
    // Predicated region
    $region26: #{tpu_custom_call.1} parent=1 // pred_check
      _
    $region27: #{tpu_custom_call.1} parent=1 // pred_check_branch
      %53 = sbr.rel (0) target = $region29
    $region28: #{tpu_custom_call.1} parent=1 // pred_region
      _
    $region29: #{tpu_custom_call.1} parent=1 // pred_fallthru
      _
    // Predicated region
    $region30: #{tpu_custom_call.1} parent=1 // pred_check
      _
    $region31: #{tpu_custom_call.1} parent=1 // pred_check_branch
      %55 = sbr.rel (0) target = $region33
    $region32: #{tpu_custom_call.1} parent=1 // pred_region
      _
    $region33: #{tpu_custom_call.1} parent=1 // pred_fallthru
      _
    // Predicated region
    $region34: #{tpu_custom_call.1} parent=1 // pred_check
      _
    $region35: #{tpu_custom_call.1} parent=1 // pred_check_branch
      %57 = sbr.rel (0) target = $region37
    $region36: #{tpu_custom_call.1} parent=1 // pred_region
      _
    $region37: #{tpu_custom_call.1} parent=1 // pred_fallthru
      _
    // Predicated region
    $region38: #{tpu_custom_call.1} parent=1 // pred_check
      _
    $region39: #{tpu_custom_call.1} parent=1 // pred_check_branch
      %59 = sbr.rel (0) target = $region41
    $region40: #{tpu_custom_call.1} parent=1 // pred_region
      _
    $region41: #{tpu_custom_call.1} parent=1 // pred_fallthru
      _
    // Predicated region
    $region42: #{tpu_custom_call.1} parent=1 // pred_check
      _
    $region43: #{tpu_custom_call.1} parent=1 // pred_check_branch
      %61 = sbr.rel (0) target = $region45
    $region44: #{tpu_custom_call.1} parent=1 // pred_region
      _
    $region45: #{tpu_custom_call.1} parent=1 // pred_fallthru
      _
    // Predicated region
    $region46: #{tpu_custom_call.1} parent=1 // pred_check
      _
    $region47: #{tpu_custom_call.1} parent=1 // pred_check_branch
      %63 = sbr.rel (0) target = $region49
    $region48: #{tpu_custom_call.1} parent=1 // pred_region
      _
    $region49: #{tpu_custom_call.1} parent=1 // pred_fallthru
      _
    // Predicated region
    $region50: #{tpu_custom_call.1} parent=1 // pred_check
      _
    $region51: #{tpu_custom_call.1} parent=1 // pred_check_branch
      %65 = sbr.rel (0) target = $region53
    $region52: #{tpu_custom_call.1} parent=1 // pred_region
      %66 = dma.done [#allocation3], 256
    $region53: #{tpu_custom_call.1} parent=1 // pred_fallthru
      _
    // Predicated region
    $region54: #{tpu_custom_call.1} parent=1 // pred_check
      _
    $region55: #{tpu_custom_call.1} parent=1 // pred_check_branch
      %68 = sbr.rel (0) target = $region57
    $region56: #{tpu_custom_call.1} parent=1 // pred_region
      %69 = dma.done [#allocation6], 256
    $region57: #{tpu_custom_call.1} parent=1 // pred_fallthru
      _
    %v70 = vld [vmem:[#allocation2] sm:$0xff]
    %v71 = vld [vmem:[#allocation2 + $0x8] sm:$0xff]
    %v72 = vld [vmem:[#allocation5] sm:$0xff]
    %v73 = vld [vmem:[#allocation5 + $0x8] sm:$0xff]
    %v74 = vld [vmem:[%s2] sm:$0xff]
    %v75 = vld [vmem:[%s2 + $0x8] sm:$0xff]
    %v76 = vld [vmem:[%s2 + $0x10] sm:$0xff]
    %v77 = vld [vmem:[%s2 + $0x18] sm:$0xff]
    %v78 = vld [vmem:[%s3] sm:$0x1]
    %v79 = vld [vmem:[%s4] sm:$0xff]
    %v80 = vld [vmem:[%s4 + $0x8] sm:$0xff]
    %v81 = vld [vmem:[%s4 + $0x10] sm:$0xff]
    %v82 = vld [vmem:[%s4 + $0x18] sm:$0xff]
    %v83 = vld [vmem:[%s5] sm:$0x1]
    %v85 = vlaneseq
    %v86 = vshrl.u32 %v85, 7
    %v87 = vsub.s32 0, %v86
    %v88 = vrot.slane %v78, %v87
    %vm90 = vcmask 261120
    %v92 = vsel %vm90, %v70, 0
    %v95 = vsel %vm90, %v71, 0
    %97 = vmatprep.subr.mxu0 0.0
    %98 = vmatpush1.msra.mxu0 0.0
    %99 = vmatprep.subr.mxu0 0.0
    %100 = vmatpush1.msra.mxu0 0.0
    %101 = vmatprep.subr.mxu0 0.0
    %102 = vmatpush1.msra.mxu0 0.0
    %103 = vmatprep.subr.mxu0 0.0
    %104 = vmatpush1.msra.mxu0 0.0
    %105 = vmatprep.subr.mxu0 0.0
    %106 = vmatpush1.msra.mxu0 0.0
    %107 = vmatprep.subr.mxu0 0.0
    %108 = vmatpush1.msra.mxu0 0.0
    %109 = vmatprep.subr.mxu0 0.0
    %110 = vmatpush1.msra.mxu0 0.0
    %111 = vmatprep.subr.mxu0 0.0
    %112 = vmatpush1.msra.mxu0 0.0
    %113 = vmatprep.subr.mxu0 0.0
    %114 = vmatpush1.msra.mxu0 0.0
    %115 = vmatprep.subr.mxu0 0.0
    %116 = vmatpush1.msra.mxu0 0.0
    %117 = vmatprep.subr.mxu0 0.0
    %118 = vmatpush1.msra.mxu0 0.0
    %119 = vmatprep.subr.mxu0 0.0
    %120 = vmatpush1.msra.mxu0 0.0
    %121 = vmatprep.subr.mxu0 0.0
    %122 = vmatpush1.msra.mxu0 %v77
    %123 = vmatprep.subr.mxu0 0.0
    %124 = vmatpush1.msra.mxu0 %v76
    %125 = vmatprep.subr.mxu0 0.0
    %126 = vmatpush1.msra.mxu0 %v75
    %127 = vmatprep.subr.mxu0 0.0
    %128 = vmatpush1.msra.mxu0 %v74
    %129 = vmatprep.subr.mxu0 0.0
    %130 = vmatpush2.msra.mxu0 0.0
    %131 = vmatprep.subr.mxu0 0.0
    %132 = vmatpush2.msra.mxu0 0.0
    %133 = vmatprep.subr.mxu0 0.0
    %134 = vmatpush2.msra.mxu0 0.0
    %135 = vmatprep.subr.mxu0 0.0
    %136 = vmatpush2.msra.mxu0 0.0
    %137 = vmatprep.subr.mxu0 0.0
    %138 = vmatpush2.msra.mxu0 0.0
    %139 = vmatprep.subr.mxu0 0.0
    %140 = vmatpush2.msra.mxu0 0.0
    %141 = vmatprep.subr.mxu0 0.0
    %142 = vmatpush2.msra.mxu0 0.0
    %143 = vmatprep.subr.mxu0 0.0
    %144 = vmatpush2.msra.mxu0 0.0
    %145 = vmatprep.subr.mxu0 0.0
    %146 = vmatpush2.msra.mxu0 0.0
    %147 = vmatprep.subr.mxu0 0.0
    %148 = vmatpush2.msra.mxu0 0.0
    %149 = vmatprep.subr.mxu0 0.0
    %150 = vmatpush2.msra.mxu0 0.0
    %151 = vmatprep.subr.mxu0 0.0
    %152 = vmatpush2.msra.mxu0 0.0
    %153 = vmatprep.subr.mxu0 0.0
    %154 = vmatpush2.msra.mxu0 0.0
    %155 = vmatprep.subr.mxu0 0.0
    %156 = vmatpush2.msra.mxu0 0.0
    %157 = vmatprep.subr.mxu0 0.0
    %158 = vmatpush2.msra.mxu0 0.0
    %159 = vmatprep.subr.mxu0 0.0
    %160 = vmatpush2.msra.mxu0 0.0
    %161 = vmatprep.mubr.f32.mxu0 0.0
    %162 = vmatmul.mubr.f32.gmra.mxu0 %v92
    %v163 = vpop.f32.mrf.mxu0
    %v164 = vadd.f32 %v88, %v163
    %v165 = vpop.f32.mrf.mxu0
    %166 = vmatprep.mubr.f32.mxu0 0.0
    %167 = vmatmul.mubr.f32.gmra.mxu0 %v95
    %v168 = vpop.f32.mrf.mxu0
    %v169 = vadd.f32 %v88, %v168
    %v170 = vpop.f32.mrf.mxu0
    %171 = vdwg.mxu0
    %v172 = vmul.f32 %v164, 0.35355338
    %v173 = vmul.f32 %v169, 0.35355338
    %176 = vrot.lane.b32.xlu0 %v164, 96
    %v177 = vpop.permute.xlu0 %176
    %178 = vrot.lane.b32.xlu0 %v169, 96
    %v179 = vpop.permute.xlu0 %178
    %vm180 = vcmask 64512
    %v182 = vsel %vm180, %v172, 0
    %v185 = vsel %vm180, %v173, 0
    %v187 = vsel %vm180, %v177, 0
    %v189 = vsel %vm180, %v179, 0
    %191 = vmatprep.subr.mxu0 0.0
    %192 = vmatpush1.xpose.msra.mxu0 0.0
    %193 = vmatprep.subr.mxu0 0.0
    %194 = vmatpush1.xpose.msra.mxu0 0.0
    %195 = vmatprep.subr.mxu0 0.0
    %196 = vmatpush1.xpose.msra.mxu0 0.0
    %197 = vmatprep.subr.mxu0 0.0
    %198 = vmatpush1.xpose.msra.mxu0 0.0
    %199 = vmatprep.subr.mxu0 0.0
    %200 = vmatpush1.xpose.msra.mxu0 0.0
    %201 = vmatprep.subr.mxu0 0.0
    %202 = vmatpush1.xpose.msra.mxu0 0.0
    %203 = vmatprep.subr.mxu0 0.0
    %204 = vmatpush1.xpose.msra.mxu0 0.0
    %205 = vmatprep.subr.mxu0 0.0
    %206 = vmatpush1.xpose.msra.mxu0 0.0
    %207 = vmatprep.subr.mxu0 0.0
    %208 = vmatpush1.xpose.msra.mxu0 0.0
    %209 = vmatprep.subr.mxu0 0.0
    %210 = vmatpush1.xpose.msra.mxu0 0.0
    %211 = vmatprep.subr.mxu0 0.0
    %212 = vmatpush1.xpose.msra.mxu0 0.0
    %213 = vmatprep.subr.mxu0 0.0
    %214 = vmatpush1.xpose.msra.mxu0 0.0
    %215 = vmatprep.subr.mxu0 0.0
    %216 = vmatpush1.xpose.msra.mxu0 0.0
    %217 = vmatprep.subr.mxu0 0.0
    %218 = vmatpush1.xpose.msra.mxu0 0.0
    %219 = vmatprep.subr.mxu0 0.0
    %220 = vmatpush1.xpose.msra.mxu0 %v189
    %221 = vmatprep.subr.mxu0 0.0
    %222 = vmatpush1.xpose.msra.mxu0 %v187
    %223 = vmatprep.subr.mxu0 0.0
    %224 = vmatpush2.xpose.msra.mxu0 0.0
    %225 = vmatprep.subr.mxu0 0.0
    %226 = vmatpush2.xpose.msra.mxu0 0.0
    %227 = vmatprep.subr.mxu0 0.0
    %228 = vmatpush2.xpose.msra.mxu0 0.0
    %229 = vmatprep.subr.mxu0 0.0
    %230 = vmatpush2.xpose.msra.mxu0 0.0
    %231 = vmatprep.subr.mxu0 0.0
    %232 = vmatpush2.xpose.msra.mxu0 0.0
    %233 = vmatprep.subr.mxu0 0.0
    %234 = vmatpush2.xpose.msra.mxu0 0.0
    %235 = vmatprep.subr.mxu0 0.0
    %236 = vmatpush2.xpose.msra.mxu0 0.0
    %237 = vmatprep.subr.mxu0 0.0
    %238 = vmatpush2.xpose.msra.mxu0 0.0
    %239 = vmatprep.subr.mxu0 0.0
    %240 = vmatpush2.xpose.msra.mxu0 0.0
    %241 = vmatprep.subr.mxu0 0.0
    %242 = vmatpush2.xpose.msra.mxu0 0.0
    %243 = vmatprep.subr.mxu0 0.0
    %244 = vmatpush2.xpose.msra.mxu0 0.0
    %245 = vmatprep.subr.mxu0 0.0
    %246 = vmatpush2.xpose.msra.mxu0 0.0
    %247 = vmatprep.subr.mxu0 0.0
    %248 = vmatpush2.xpose.msra.mxu0 0.0
    %249 = vmatprep.subr.mxu0 0.0
    %250 = vmatpush2.xpose.msra.mxu0 0.0
    %251 = vmatprep.subr.mxu0 0.0
    %252 = vmatpush2.xpose.msra.mxu0 0.0
    %253 = vmatprep.subr.mxu0 0.0
    %254 = vmatpush2.xpose.msra.mxu0 0.0
    %255 = vmatprep.mubr.f32.mxu0 0.0
    %256 = vmatmul.mubr.f32.gmra.mxu0 %v182
    %v257 = vpop.f32.mrf.mxu0
    %v258 = vadd.f32 %v72, %v257
    %v259 = vpop.f32.mrf.mxu0
    %260 = vmatprep.mubr.f32.mxu0 0.0
    %261 = vmatmul.mubr.f32.gmra.mxu0 %v185
    %v262 = vpop.f32.mrf.mxu0
    %v263 = vadd.f32 %v73, %v262
    %v264 = vpop.f32.mrf.mxu0
    %265 = vdwg.mxu0
    %vm266 = vcmask 130048
    %v267 = vsel %vm266, %v258, -inf
    %268 = vmax.xlane.f32.xlu0 %v267
    %v269 = vpop.xlane.xlu0 %268
    %v270 = vsel %vm266, %v263, -inf
    %271 = vmax.xlane.f32.xlu0 %v270
    %v272 = vpop.xlane.xlu0 %271
    %v273 = vsub.f32 %v258, %v269
    %v274 = vsub.f32 %v263, %v272
    %v275 = vmul.f32 %v273, 1.442695
    %v276 = vpow.pop %v275
    %v277 = vmul.f32 %v274, 1.442695
    %v278 = vpow.pop %v277
    %v279 = vsel %vm266, %v276, 0.0
    %280 = vadd.xlane.f32.xlu0 %v279
    %v281 = vpop.xlane.xlu0 %280
    %v282 = vsel %vm266, %v278, 0.0
    %283 = vadd.xlane.f32.xlu0 %v282
    %v284 = vpop.xlane.xlu0 %283
    %v285 = vrcp.pop %v281
    %v286 = vrcp.pop %v284
    %v287 = vmul.f32 %v276, %v285
    %v288 = vmul.f32 %v278, %v286
    %289 = vrot.lane.b32.xlu0 %v164, 64
    %v290 = vpop.permute.xlu0 %289
    %291 = vrot.lane.b32.xlu0 %v169, 64
    %v292 = vpop.permute.xlu0 %291
    %v296 = vsel %vm266, %v287, 0
    %v299 = vsel %vm266, %v288, 0
    %301 = vmatprep.subr.mxu0 0.0
    %302 = vmatpush1.msra.mxu0 0.0
    %303 = vmatprep.subr.mxu0 0.0
    %304 = vmatpush1.msra.mxu0 0.0
    %305 = vmatprep.subr.mxu0 0.0
    %306 = vmatpush1.msra.mxu0 0.0
    %307 = vmatprep.subr.mxu0 0.0
    %308 = vmatpush1.msra.mxu0 0.0
    %309 = vmatprep.subr.mxu0 0.0
    %310 = vmatpush1.msra.mxu0 0.0
    %311 = vmatprep.subr.mxu0 0.0
    %312 = vmatpush1.msra.mxu0 0.0
    %313 = vmatprep.subr.mxu0 0.0
    %314 = vmatpush1.msra.mxu0 0.0
    %315 = vmatprep.subr.mxu0 0.0
    %316 = vmatpush1.msra.mxu0 0.0
    %317 = vmatprep.subr.mxu0 0.0
    %318 = vmatpush1.msra.mxu0 0.0
    %319 = vmatprep.subr.mxu0 0.0
    %320 = vmatpush1.msra.mxu0 0.0
    %321 = vmatprep.subr.mxu0 0.0
    %322 = vmatpush1.msra.mxu0 0.0
    %323 = vmatprep.subr.mxu0 0.0
    %324 = vmatpush1.msra.mxu0 0.0
    %325 = vmatprep.subr.mxu0 0.0
    %326 = vmatpush1.msra.mxu0 0.0
    %327 = vmatprep.subr.mxu0 0.0
    %328 = vmatpush1.msra.mxu0 0.0
    %329 = vmatprep.subr.mxu0 0.0
    %330 = vmatpush1.msra.mxu0 %v292
    %331 = vmatprep.subr.mxu0 0.0
    %332 = vmatpush1.msra.mxu0 %v290
    %333 = vmatprep.subr.mxu0 0.0
    %334 = vmatpush2.msra.mxu0 0.0
    %335 = vmatprep.subr.mxu0 0.0
    %336 = vmatpush2.msra.mxu0 0.0
    %337 = vmatprep.subr.mxu0 0.0
    %338 = vmatpush2.msra.mxu0 0.0
    %339 = vmatprep.subr.mxu0 0.0
    %340 = vmatpush2.msra.mxu0 0.0
    %341 = vmatprep.subr.mxu0 0.0
    %342 = vmatpush2.msra.mxu0 0.0
    %343 = vmatprep.subr.mxu0 0.0
    %344 = vmatpush2.msra.mxu0 0.0
    %345 = vmatprep.subr.mxu0 0.0
    %346 = vmatpush2.msra.mxu0 0.0
    %347 = vmatprep.subr.mxu0 0.0
    %348 = vmatpush2.msra.mxu0 0.0
    %349 = vmatprep.subr.mxu0 0.0
    %350 = vmatpush2.msra.mxu0 0.0
    %351 = vmatprep.subr.mxu0 0.0
    %352 = vmatpush2.msra.mxu0 0.0
    %353 = vmatprep.subr.mxu0 0.0
    %354 = vmatpush2.msra.mxu0 0.0
    %355 = vmatprep.subr.mxu0 0.0
    %356 = vmatpush2.msra.mxu0 0.0
    %357 = vmatprep.subr.mxu0 0.0
    %358 = vmatpush2.msra.mxu0 0.0
    %359 = vmatprep.subr.mxu0 0.0
    %360 = vmatpush2.msra.mxu0 0.0
    %361 = vmatprep.subr.mxu0 0.0
    %362 = vmatpush2.msra.mxu0 0.0
    %363 = vmatprep.subr.mxu0 0.0
    %364 = vmatpush2.msra.mxu0 0.0
    %365 = vmatprep.mubr.f32.mxu0 0.0
    %366 = vmatmul.mubr.f32.gmra.mxu0 %v296
    %v367 = vpop.f32.mrf.mxu0
    %v368 = vadd.f32 0.0, %v367
    %v369 = vpop.f32.mrf.mxu0
    %370 = vmatprep.mubr.f32.mxu0 0.0
    %371 = vmatmul.mubr.f32.gmra.mxu0 %v299
    %v372 = vpop.f32.mrf.mxu0
    %v373 = vadd.f32 0.0, %v372
    %v374 = vpop.f32.mrf.mxu0
    %375 = vdwg.mxu0
    %376 = vrot.lane.b32.xlu0 %v172, 120
    %v377 = vpop.permute.xlu0 %376
    %378 = vrot.lane.b32.xlu0 %v173, 120
    %v379 = vpop.permute.xlu0 %378
    %380 = vrot.lane.b32.xlu0 %v164, 88
    %v381 = vpop.permute.xlu0 %380
    %382 = vrot.lane.b32.xlu0 %v169, 88
    %v383 = vpop.permute.xlu0 %382
    %v384 = vsel %vm180, %v377, 0
    %v386 = vsel %vm180, %v379, 0
    %v388 = vsel %vm180, %v381, 0
    %v390 = vsel %vm180, %v383, 0
    %392 = vmatprep.subr.mxu0 0.0
    %393 = vmatpush1.xpose.msra.mxu0 0.0
    %394 = vmatprep.subr.mxu0 0.0
    %395 = vmatpush1.xpose.msra.mxu0 0.0
    %396 = vmatprep.subr.mxu0 0.0
    %397 = vmatpush1.xpose.msra.mxu0 0.0
    %398 = vmatprep.subr.mxu0 0.0
    %399 = vmatpush1.xpose.msra.mxu0 0.0
    %400 = vmatprep.subr.mxu0 0.0
    %401 = vmatpush1.xpose.msra.mxu0 0.0
    %402 = vmatprep.subr.mxu0 0.0
    %403 = vmatpush1.xpose.msra.mxu0 0.0
    %404 = vmatprep.subr.mxu0 0.0
    %405 = vmatpush1.xpose.msra.mxu0 0.0
    %406 = vmatprep.subr.mxu0 0.0
    %407 = vmatpush1.xpose.msra.mxu0 0.0
    %408 = vmatprep.subr.mxu0 0.0
    %409 = vmatpush1.xpose.msra.mxu0 0.0
    %410 = vmatprep.subr.mxu0 0.0
    %411 = vmatpush1.xpose.msra.mxu0 0.0
    %412 = vmatprep.subr.mxu0 0.0
    %413 = vmatpush1.xpose.msra.mxu0 0.0
    %414 = vmatprep.subr.mxu0 0.0
    %415 = vmatpush1.xpose.msra.mxu0 0.0
    %416 = vmatprep.subr.mxu0 0.0
    %417 = vmatpush1.xpose.msra.mxu0 0.0
    %418 = vmatprep.subr.mxu0 0.0
    %419 = vmatpush1.xpose.msra.mxu0 0.0
    %420 = vmatprep.subr.mxu0 0.0
    %421 = vmatpush1.xpose.msra.mxu0 %v390
    %422 = vmatprep.subr.mxu0 0.0
    %423 = vmatpush1.xpose.msra.mxu0 %v388
    %424 = vmatprep.subr.mxu0 0.0
    %425 = vmatpush2.xpose.msra.mxu0 0.0
    %426 = vmatprep.subr.mxu0 0.0
    %427 = vmatpush2.xpose.msra.mxu0 0.0
    %428 = vmatprep.subr.mxu0 0.0
    %429 = vmatpush2.xpose.msra.mxu0 0.0
    %430 = vmatprep.subr.mxu0 0.0
    %431 = vmatpush2.xpose.msra.mxu0 0.0
    %432 = vmatprep.subr.mxu0 0.0
    %433 = vmatpush2.xpose.msra.mxu0 0.0
    %434 = vmatprep.subr.mxu0 0.0
    %435 = vmatpush2.xpose.msra.mxu0 0.0
    %436 = vmatprep.subr.mxu0 0.0
    %437 = vmatpush2.xpose.msra.mxu0 0.0
    %438 = vmatprep.subr.mxu0 0.0
    %439 = vmatpush2.xpose.msra.mxu0 0.0
    %440 = vmatprep.subr.mxu0 0.0
    %441 = vmatpush2.xpose.msra.mxu0 0.0
    %442 = vmatprep.subr.mxu0 0.0
    %443 = vmatpush2.xpose.msra.mxu0 0.0
    %444 = vmatprep.subr.mxu0 0.0
    %445 = vmatpush2.xpose.msra.mxu0 0.0
    %446 = vmatprep.subr.mxu0 0.0
    %447 = vmatpush2.xpose.msra.mxu0 0.0
    %448 = vmatprep.subr.mxu0 0.0
    %449 = vmatpush2.xpose.msra.mxu0 0.0
    %450 = vmatprep.subr.mxu0 0.0
    %451 = vmatpush2.xpose.msra.mxu0 0.0
    %452 = vmatprep.subr.mxu0 0.0
    %453 = vmatpush2.xpose.msra.mxu0 0.0
    %454 = vmatprep.subr.mxu0 0.0
    %455 = vmatpush2.xpose.msra.mxu0 0.0
    %456 = vmatprep.mubr.f32.mxu0 0.0
    %457 = vmatmul.mubr.f32.gmra.mxu0 %v384
    %v458 = vpop.f32.mrf.mxu0
    %v459 = vadd.f32 %v72, %v458
    %v460 = vpop.f32.mrf.mxu0
    %461 = vmatprep.mubr.f32.mxu0 0.0
    %462 = vmatmul.mubr.f32.gmra.mxu0 %v386
    %v463 = vpop.f32.mrf.mxu0
    %v464 = vadd.f32 %v73, %v463
    %v465 = vpop.f32.mrf.mxu0
    %466 = vdwg.mxu0
    %v467 = vsel %vm266, %v459, -inf
    %468 = vmax.xlane.f32.xlu0 %v467
    %v469 = vpop.xlane.xlu0 %468
    %v470 = vsel %vm266, %v464, -inf
    %471 = vmax.xlane.f32.xlu0 %v470
    %v472 = vpop.xlane.xlu0 %471
    %v473 = vsub.f32 %v459, %v469
    %v474 = vsub.f32 %v464, %v472
    %v475 = vmul.f32 %v473, 1.442695
    %v476 = vpow.pop %v475
    %v477 = vmul.f32 %v474, 1.442695
    %v478 = vpow.pop %v477
    %v479 = vsel %vm266, %v476, 0.0
    %480 = vadd.xlane.f32.xlu0 %v479
    %v481 = vpop.xlane.xlu0 %480
    %v482 = vsel %vm266, %v478, 0.0
    %483 = vadd.xlane.f32.xlu0 %v482
    %v484 = vpop.xlane.xlu0 %483
    %v485 = vrcp.pop %v481
    %v486 = vrcp.pop %v484
    %v487 = vmul.f32 %v476, %v485
    %v488 = vmul.f32 %v478, %v486
    %489 = vrot.lane.b32.xlu0 %v164, 56
    %v490 = vpop.permute.xlu0 %489
    %491 = vrot.lane.b32.xlu0 %v169, 56
    %v492 = vpop.permute.xlu0 %491
    %v496 = vsel %vm266, %v487, 0
    %v499 = vsel %vm266, %v488, 0
    %501 = vmatprep.subr.mxu0 0.0
    %502 = vmatpush1.msra.mxu0 0.0
    %503 = vmatprep.subr.mxu0 0.0
    %504 = vmatpush1.msra.mxu0 0.0
    %505 = vmatprep.subr.mxu0 0.0
    %506 = vmatpush1.msra.mxu0 0.0
    %507 = vmatprep.subr.mxu0 0.0
    %508 = vmatpush1.msra.mxu0 0.0
    %509 = vmatprep.subr.mxu0 0.0
    %510 = vmatpush1.msra.mxu0 0.0
    %511 = vmatprep.subr.mxu0 0.0
    %512 = vmatpush1.msra.mxu0 0.0
    %513 = vmatprep.subr.mxu0 0.0
    %514 = vmatpush1.msra.mxu0 0.0
    %515 = vmatprep.subr.mxu0 0.0
    %516 = vmatpush1.msra.mxu0 0.0
    %517 = vmatprep.subr.mxu0 0.0
    %518 = vmatpush1.msra.mxu0 0.0
    %519 = vmatprep.subr.mxu0 0.0
    %520 = vmatpush1.msra.mxu0 0.0
    %521 = vmatprep.subr.mxu0 0.0
    %522 = vmatpush1.msra.mxu0 0.0
    %523 = vmatprep.subr.mxu0 0.0
    %524 = vmatpush1.msra.mxu0 0.0
    %525 = vmatprep.subr.mxu0 0.0
    %526 = vmatpush1.msra.mxu0 0.0
    %527 = vmatprep.subr.mxu0 0.0
    %528 = vmatpush1.msra.mxu0 0.0
    %529 = vmatprep.subr.mxu0 0.0
    %530 = vmatpush1.msra.mxu0 %v492
    %531 = vmatprep.subr.mxu0 0.0
    %532 = vmatpush1.msra.mxu0 %v490
    %533 = vmatprep.subr.mxu0 0.0
    %534 = vmatpush2.msra.mxu0 0.0
    %535 = vmatprep.subr.mxu0 0.0
    %536 = vmatpush2.msra.mxu0 0.0
    %537 = vmatprep.subr.mxu0 0.0
    %538 = vmatpush2.msra.mxu0 0.0
    %539 = vmatprep.subr.mxu0 0.0
    %540 = vmatpush2.msra.mxu0 0.0
    %541 = vmatprep.subr.mxu0 0.0
    %542 = vmatpush2.msra.mxu0 0.0
    %543 = vmatprep.subr.mxu0 0.0
    %544 = vmatpush2.msra.mxu0 0.0
    %545 = vmatprep.subr.mxu0 0.0
    %546 = vmatpush2.msra.mxu0 0.0
    %547 = vmatprep.subr.mxu0 0.0
    %548 = vmatpush2.msra.mxu0 0.0
    %549 = vmatprep.subr.mxu0 0.0
    %550 = vmatpush2.msra.mxu0 0.0
    %551 = vmatprep.subr.mxu0 0.0
    %552 = vmatpush2.msra.mxu0 0.0
    %553 = vmatprep.subr.mxu0 0.0
    %554 = vmatpush2.msra.mxu0 0.0
    %555 = vmatprep.subr.mxu0 0.0
    %556 = vmatpush2.msra.mxu0 0.0
    %557 = vmatprep.subr.mxu0 0.0
    %558 = vmatpush2.msra.mxu0 0.0
    %559 = vmatprep.subr.mxu0 0.0
    %560 = vmatpush2.msra.mxu0 0.0
    %561 = vmatprep.subr.mxu0 0.0
    %562 = vmatpush2.msra.mxu0 0.0
    %563 = vmatprep.subr.mxu0 0.0
    %564 = vmatpush2.msra.mxu0 0.0
    %565 = vmatprep.mubr.f32.mxu0 0.0
    %566 = vmatmul.mubr.f32.gmra.mxu0 %v496
    %v567 = vpop.f32.mrf.mxu0
    %v568 = vadd.f32 0.0, %v567
    %v569 = vpop.f32.mrf.mxu0
    %570 = vmatprep.mubr.f32.mxu0 0.0
    %571 = vmatmul.mubr.f32.gmra.mxu0 %v499
    %v572 = vpop.f32.mrf.mxu0
    %v573 = vadd.f32 0.0, %v572
    %v574 = vpop.f32.mrf.mxu0
    %575 = vdwg.mxu0
    %v577 = vsel %vm180, %v568, 0
    %v580 = vsel %vm180, %v573, 0
    %582 = vmatprep.subr.mxu0 0.0
    %583 = vmatpush1.msra.mxu0 0.0
    %584 = vmatprep.subr.mxu0 0.0
    %585 = vmatpush1.msra.mxu0 0.0
    %586 = vmatprep.subr.mxu0 0.0
    %587 = vmatpush1.msra.mxu0 0.0
    %588 = vmatprep.subr.mxu0 0.0
    %589 = vmatpush1.msra.mxu0 0.0
    %590 = vmatprep.subr.mxu0 0.0
    %591 = vmatpush1.msra.mxu0 0.0
    %592 = vmatprep.subr.mxu0 0.0
    %593 = vmatpush1.msra.mxu0 0.0
    %594 = vmatprep.subr.mxu0 0.0
    %595 = vmatpush1.msra.mxu0 0.0
    %596 = vmatprep.subr.mxu0 0.0
    %597 = vmatpush1.msra.mxu0 0.0
    %598 = vmatprep.subr.mxu0 0.0
    %599 = vmatpush1.msra.mxu0 0.0
    %600 = vmatprep.subr.mxu0 0.0
    %601 = vmatpush1.msra.mxu0 0.0
    %602 = vmatprep.subr.mxu0 0.0
    %603 = vmatpush1.msra.mxu0 0.0
    %604 = vmatprep.subr.mxu0 0.0
    %605 = vmatpush1.msra.mxu0 0.0
    %606 = vmatprep.subr.mxu0 0.0
    %607 = vmatpush1.msra.mxu0 0.0
    %608 = vmatprep.subr.mxu0 0.0
    %609 = vmatpush1.msra.mxu0 0.0
    %610 = vmatprep.subr.mxu0 0.0
    %611 = vmatpush1.msra.mxu0 0.0
    %612 = vmatprep.subr.mxu0 0.0
    %613 = vmatpush1.msra.mxu0 %v80
    %614 = vmatprep.subr.mxu0 0.0
    %615 = vmatpush2.msra.mxu0 0.0
    %616 = vmatprep.subr.mxu0 0.0
    %617 = vmatpush2.msra.mxu0 0.0
    %618 = vmatprep.subr.mxu0 0.0
    %619 = vmatpush2.msra.mxu0 0.0
    %620 = vmatprep.subr.mxu0 0.0
    %621 = vmatpush2.msra.mxu0 0.0
    %622 = vmatprep.subr.mxu0 0.0
    %623 = vmatpush2.msra.mxu0 0.0
    %624 = vmatprep.subr.mxu0 0.0
    %625 = vmatpush2.msra.mxu0 0.0
    %626 = vmatprep.subr.mxu0 0.0
    %627 = vmatpush2.msra.mxu0 0.0
    %628 = vmatprep.subr.mxu0 0.0
    %629 = vmatpush2.msra.mxu0 0.0
    %630 = vmatprep.subr.mxu0 0.0
    %631 = vmatpush2.msra.mxu0 0.0
    %632 = vmatprep.subr.mxu0 0.0
    %633 = vmatpush2.msra.mxu0 0.0
    %634 = vmatprep.subr.mxu0 0.0
    %635 = vmatpush2.msra.mxu0 0.0
    %636 = vmatprep.subr.mxu0 0.0
    %637 = vmatpush2.msra.mxu0 0.0
    %638 = vmatprep.subr.mxu0 0.0
    %639 = vmatpush2.msra.mxu0 0.0
    %640 = vmatprep.subr.mxu0 0.0
    %641 = vmatpush2.msra.mxu0 0.0
    %642 = vmatprep.subr.mxu0 0.0
    %643 = vmatpush2.msra.mxu0 0.0
    %644 = vmatprep.subr.mxu0 0.0
    %645 = vmatpush2.msra.mxu0 0.0
    %646 = vmatprep.mubr.f32.mxu0 0.0
    %647 = vmatmul.mubr.f32.gmra.mxu0 %v577
    %v648 = vpop.f32.mrf.mxu0
    %v649 = vadd.f32 0.0, %v648
    %v650 = vpop.f32.mrf.mxu0
    %651 = vmatprep.mubr.f32.mxu0 0.0
    %652 = vmatmul.mubr.f32.gmra.mxu0 %v580
    %v653 = vpop.f32.mrf.mxu0
    %v654 = vadd.f32 0.0, %v653
    %v655 = vpop.f32.mrf.mxu0
    %656 = vdwg.mxu0
    %v658 = vsel %vm180, %v368, 0
    %v661 = vsel %vm180, %v373, 0
    %663 = vmatprep.subr.mxu0 0.0
    %664 = vmatpush1.msra.mxu0 0.0
    %665 = vmatprep.subr.mxu0 0.0
    %666 = vmatpush1.msra.mxu0 0.0
    %667 = vmatprep.subr.mxu0 0.0
    %668 = vmatpush1.msra.mxu0 0.0
    %669 = vmatprep.subr.mxu0 0.0
    %670 = vmatpush1.msra.mxu0 0.0
    %671 = vmatprep.subr.mxu0 0.0
    %672 = vmatpush1.msra.mxu0 0.0
    %673 = vmatprep.subr.mxu0 0.0
    %674 = vmatpush1.msra.mxu0 0.0
    %675 = vmatprep.subr.mxu0 0.0
    %676 = vmatpush1.msra.mxu0 0.0
    %677 = vmatprep.subr.mxu0 0.0
    %678 = vmatpush1.msra.mxu0 0.0
    %679 = vmatprep.subr.mxu0 0.0
    %680 = vmatpush1.msra.mxu0 0.0
    %681 = vmatprep.subr.mxu0 0.0
    %682 = vmatpush1.msra.mxu0 0.0
    %683 = vmatprep.subr.mxu0 0.0
    %684 = vmatpush1.msra.mxu0 0.0
    %685 = vmatprep.subr.mxu0 0.0
    %686 = vmatpush1.msra.mxu0 0.0
    %687 = vmatprep.subr.mxu0 0.0
    %688 = vmatpush1.msra.mxu0 0.0
    %689 = vmatprep.subr.mxu0 0.0
    %690 = vmatpush1.msra.mxu0 0.0
    %691 = vmatprep.subr.mxu0 0.0
    %692 = vmatpush1.msra.mxu0 0.0
    %693 = vmatprep.subr.mxu0 0.0
    %694 = vmatpush1.msra.mxu0 %v79
    %695 = vmatprep.subr.mxu0 0.0
    %696 = vmatpush2.msra.mxu0 0.0
    %697 = vmatprep.subr.mxu0 0.0
    %698 = vmatpush2.msra.mxu0 0.0
    %699 = vmatprep.subr.mxu0 0.0
    %700 = vmatpush2.msra.mxu0 0.0
    %701 = vmatprep.subr.mxu0 0.0
    %702 = vmatpush2.msra.mxu0 0.0
    %703 = vmatprep.subr.mxu0 0.0
    %704 = vmatpush2.msra.mxu0 0.0
    %705 = vmatprep.subr.mxu0 0.0
    %706 = vmatpush2.msra.mxu0 0.0
    %707 = vmatprep.subr.mxu0 0.0
    %708 = vmatpush2.msra.mxu0 0.0
    %709 = vmatprep.subr.mxu0 0.0
    %710 = vmatpush2.msra.mxu0 0.0
    %711 = vmatprep.subr.mxu0 0.0
    %712 = vmatpush2.msra.mxu0 0.0
    %713 = vmatprep.subr.mxu0 0.0
    %714 = vmatpush2.msra.mxu0 0.0
    %715 = vmatprep.subr.mxu0 0.0
    %716 = vmatpush2.msra.mxu0 0.0
    %717 = vmatprep.subr.mxu0 0.0
    %718 = vmatpush2.msra.mxu0 0.0
    %719 = vmatprep.subr.mxu0 0.0
    %720 = vmatpush2.msra.mxu0 0.0
    %721 = vmatprep.subr.mxu0 0.0
    %722 = vmatpush2.msra.mxu0 0.0
    %723 = vmatprep.subr.mxu0 0.0
    %724 = vmatpush2.msra.mxu0 0.0
    %725 = vmatprep.subr.mxu0 0.0
    %726 = vmatpush2.msra.mxu0 0.0
    %727 = vmatprep.mubr.f32.mxu0 0.0
    %728 = vmatmul.mubr.f32.gmra.mxu0 %v658
    %v729 = vpop.f32.mrf.mxu0
    %v730 = vadd.f32 %v649, %v729
    %v731 = vpop.f32.mrf.mxu0
    %732 = vmatprep.mubr.f32.mxu0 0.0
    %733 = vmatmul.mubr.f32.gmra.mxu0 %v661
    %v734 = vpop.f32.mrf.mxu0
    %v735 = vadd.f32 %v654, %v734
    %v736 = vpop.f32.mrf.mxu0
    %737 = vdwg.mxu0
    %738 = vrot.lane.b32.xlu0 %v172, 112
    %v739 = vpop.permute.xlu0 %738
    %740 = vrot.lane.b32.xlu0 %v173, 112
    %v741 = vpop.permute.xlu0 %740
    %742 = vrot.lane.b32.xlu0 %v164, 80
    %v743 = vpop.permute.xlu0 %742
    %744 = vrot.lane.b32.xlu0 %v169, 80
    %v745 = vpop.permute.xlu0 %744
    %v746 = vsel %vm180, %v739, 0
    %v748 = vsel %vm180, %v741, 0
    %v750 = vsel %vm180, %v743, 0
    %v752 = vsel %vm180, %v745, 0
    %754 = vmatprep.subr.mxu0 0.0
    %755 = vmatpush1.xpose.msra.mxu0 0.0
    %756 = vmatprep.subr.mxu0 0.0
    %757 = vmatpush1.xpose.msra.mxu0 0.0
    %758 = vmatprep.subr.mxu0 0.0
    %759 = vmatpush1.xpose.msra.mxu0 0.0
    %760 = vmatprep.subr.mxu0 0.0
    %761 = vmatpush1.xpose.msra.mxu0 0.0
    %762 = vmatprep.subr.mxu0 0.0
    %763 = vmatpush1.xpose.msra.mxu0 0.0
    %764 = vmatprep.subr.mxu0 0.0
    %765 = vmatpush1.xpose.msra.mxu0 0.0
    %766 = vmatprep.subr.mxu0 0.0
    %767 = vmatpush1.xpose.msra.mxu0 0.0
    %768 = vmatprep.subr.mxu0 0.0
    %769 = vmatpush1.xpose.msra.mxu0 0.0
    %770 = vmatprep.subr.mxu0 0.0
    %771 = vmatpush1.xpose.msra.mxu0 0.0
    %772 = vmatprep.subr.mxu0 0.0
    %773 = vmatpush1.xpose.msra.mxu0 0.0
    %774 = vmatprep.subr.mxu0 0.0
    %775 = vmatpush1.xpose.msra.mxu0 0.0
    %776 = vmatprep.subr.mxu0 0.0
    %777 = vmatpush1.xpose.msra.mxu0 0.0
    %778 = vmatprep.subr.mxu0 0.0
    %779 = vmatpush1.xpose.msra.mxu0 0.0
    %780 = vmatprep.subr.mxu0 0.0
    %781 = vmatpush1.xpose.msra.mxu0 0.0
    %782 = vmatprep.subr.mxu0 0.0
    %783 = vmatpush1.xpose.msra.mxu0 %v752
    %784 = vmatprep.subr.mxu0 0.0
    %785 = vmatpush1.xpose.msra.mxu0 %v750
    %786 = vmatprep.subr.mxu0 0.0
    %787 = vmatpush2.xpose.msra.mxu0 0.0
    %788 = vmatprep.subr.mxu0 0.0
    %789 = vmatpush2.xpose.msra.mxu0 0.0
    %790 = vmatprep.subr.mxu0 0.0
    %791 = vmatpush2.xpose.msra.mxu0 0.0
    %792 = vmatprep.subr.mxu0 0.0
    %793 = vmatpush2.xpose.msra.mxu0 0.0
    %794 = vmatprep.subr.mxu0 0.0
    %795 = vmatpush2.xpose.msra.mxu0 0.0
    %796 = vmatprep.subr.mxu0 0.0
    %797 = vmatpush2.xpose.msra.mxu0 0.0
    %798 = vmatprep.subr.mxu0 0.0
    %799 = vmatpush2.xpose.msra.mxu0 0.0
    %800 = vmatprep.subr.mxu0 0.0
    %801 = vmatpush2.xpose.msra.mxu0 0.0
    %802 = vmatprep.subr.mxu0 0.0
    %803 = vmatpush2.xpose.msra.mxu0 0.0
    %804 = vmatprep.subr.mxu0 0.0
    %805 = vmatpush2.xpose.msra.mxu0 0.0
    %806 = vmatprep.subr.mxu0 0.0
    %807 = vmatpush2.xpose.msra.mxu0 0.0
    %808 = vmatprep.subr.mxu0 0.0
    %809 = vmatpush2.xpose.msra.mxu0 0.0
    %810 = vmatprep.subr.mxu0 0.0
    %811 = vmatpush2.xpose.msra.mxu0 0.0
    %812 = vmatprep.subr.mxu0 0.0
    %813 = vmatpush2.xpose.msra.mxu0 0.0
    %814 = vmatprep.subr.mxu0 0.0
    %815 = vmatpush2.xpose.msra.mxu0 0.0
    %816 = vmatprep.subr.mxu0 0.0
    %817 = vmatpush2.xpose.msra.mxu0 0.0
    %818 = vmatprep.mubr.f32.mxu0 0.0
    %819 = vmatmul.mubr.f32.gmra.mxu0 %v746
    %v820 = vpop.f32.mrf.mxu0
    %v821 = vadd.f32 %v72, %v820
    %v822 = vpop.f32.mrf.mxu0
    %823 = vmatprep.mubr.f32.mxu0 0.0
    %824 = vmatmul.mubr.f32.gmra.mxu0 %v748
    %v825 = vpop.f32.mrf.mxu0
    %v826 = vadd.f32 %v73, %v825
    %v827 = vpop.f32.mrf.mxu0
    %828 = vdwg.mxu0
    %v829 = vsel %vm266, %v821, -inf
    %830 = vmax.xlane.f32.xlu0 %v829
    %v831 = vpop.xlane.xlu0 %830
    %v832 = vsel %vm266, %v826, -inf
    %833 = vmax.xlane.f32.xlu0 %v832
    %v834 = vpop.xlane.xlu0 %833
    %v835 = vsub.f32 %v821, %v831
    %v836 = vsub.f32 %v826, %v834
    %v837 = vmul.f32 %v835, 1.442695
    %v838 = vpow.pop %v837
    %v839 = vmul.f32 %v836, 1.442695
    %v840 = vpow.pop %v839
    %v841 = vsel %vm266, %v838, 0.0
    %842 = vadd.xlane.f32.xlu0 %v841
    %v843 = vpop.xlane.xlu0 %842
    %v844 = vsel %vm266, %v840, 0.0
    %845 = vadd.xlane.f32.xlu0 %v844
    %v846 = vpop.xlane.xlu0 %845
    %v847 = vrcp.pop %v843
    %v848 = vrcp.pop %v846
    %v849 = vmul.f32 %v838, %v847
    %v850 = vmul.f32 %v840, %v848
    %851 = vrot.lane.b32.xlu0 %v164, 48
    %v852 = vpop.permute.xlu0 %851
    %853 = vrot.lane.b32.xlu0 %v169, 48
    %v854 = vpop.permute.xlu0 %853
    %v858 = vsel %vm266, %v849, 0
    %v861 = vsel %vm266, %v850, 0
    %863 = vmatprep.subr.mxu0 0.0
    %864 = vmatpush1.msra.mxu0 0.0
    %865 = vmatprep.subr.mxu0 0.0
    %866 = vmatpush1.msra.mxu0 0.0
    %867 = vmatprep.subr.mxu0 0.0
    %868 = vmatpush1.msra.mxu0 0.0
    %869 = vmatprep.subr.mxu0 0.0
    %870 = vmatpush1.msra.mxu0 0.0
    %871 = vmatprep.subr.mxu0 0.0
    %872 = vmatpush1.msra.mxu0 0.0
    %873 = vmatprep.subr.mxu0 0.0
    %874 = vmatpush1.msra.mxu0 0.0
    %875 = vmatprep.subr.mxu0 0.0
    %876 = vmatpush1.msra.mxu0 0.0
    %877 = vmatprep.subr.mxu0 0.0
    %878 = vmatpush1.msra.mxu0 0.0
    %879 = vmatprep.subr.mxu0 0.0
    %880 = vmatpush1.msra.mxu0 0.0
    %881 = vmatprep.subr.mxu0 0.0
    %882 = vmatpush1.msra.mxu0 0.0
    %883 = vmatprep.subr.mxu0 0.0
    %884 = vmatpush1.msra.mxu0 0.0
    %885 = vmatprep.subr.mxu0 0.0
    %886 = vmatpush1.msra.mxu0 0.0
    %887 = vmatprep.subr.mxu0 0.0
    %888 = vmatpush1.msra.mxu0 0.0
    %889 = vmatprep.subr.mxu0 0.0
    %890 = vmatpush1.msra.mxu0 0.0
    %891 = vmatprep.subr.mxu0 0.0
    %892 = vmatpush1.msra.mxu0 %v854
    %893 = vmatprep.subr.mxu0 0.0
    %894 = vmatpush1.msra.mxu0 %v852
    %895 = vmatprep.subr.mxu0 0.0
    %896 = vmatpush2.msra.mxu0 0.0
    %897 = vmatprep.subr.mxu0 0.0
    %898 = vmatpush2.msra.mxu0 0.0
    %899 = vmatprep.subr.mxu0 0.0
    %900 = vmatpush2.msra.mxu0 0.0
    %901 = vmatprep.subr.mxu0 0.0
    %902 = vmatpush2.msra.mxu0 0.0
    %903 = vmatprep.subr.mxu0 0.0
    %904 = vmatpush2.msra.mxu0 0.0
    %905 = vmatprep.subr.mxu0 0.0
    %906 = vmatpush2.msra.mxu0 0.0
    %907 = vmatprep.subr.mxu0 0.0
    %908 = vmatpush2.msra.mxu0 0.0
    %909 = vmatprep.subr.mxu0 0.0
    %910 = vmatpush2.msra.mxu0 0.0
    %911 = vmatprep.subr.mxu0 0.0
    %912 = vmatpush2.msra.mxu0 0.0
    %913 = vmatprep.subr.mxu0 0.0
    %914 = vmatpush2.msra.mxu0 0.0
    %915 = vmatprep.subr.mxu0 0.0
    %916 = vmatpush2.msra.mxu0 0.0
    %917 = vmatprep.subr.mxu0 0.0
    %918 = vmatpush2.msra.mxu0 0.0
    %919 = vmatprep.subr.mxu0 0.0
    %920 = vmatpush2.msra.mxu0 0.0
    %921 = vmatprep.subr.mxu0 0.0
    %922 = vmatpush2.msra.mxu0 0.0
    %923 = vmatprep.subr.mxu0 0.0
    %924 = vmatpush2.msra.mxu0 0.0
    %925 = vmatprep.subr.mxu0 0.0
    %926 = vmatpush2.msra.mxu0 0.0
    %927 = vmatprep.mubr.f32.mxu0 0.0
    %928 = vmatmul.mubr.f32.gmra.mxu0 %v858
    %v929 = vpop.f32.mrf.mxu0
    %v930 = vadd.f32 0.0, %v929
    %v931 = vpop.f32.mrf.mxu0
    %932 = vmatprep.mubr.f32.mxu0 0.0
    %933 = vmatmul.mubr.f32.gmra.mxu0 %v861
    %v934 = vpop.f32.mrf.mxu0
    %v935 = vadd.f32 0.0, %v934
    %v936 = vpop.f32.mrf.mxu0
    %937 = vdwg.mxu0
    %v939 = vsel %vm180, %v930, 0
    %v942 = vsel %vm180, %v935, 0
    %944 = vmatprep.subr.mxu0 0.0
    %945 = vmatpush1.msra.mxu0 0.0
    %946 = vmatprep.subr.mxu0 0.0
    %947 = vmatpush1.msra.mxu0 0.0
    %948 = vmatprep.subr.mxu0 0.0
    %949 = vmatpush1.msra.mxu0 0.0
    %950 = vmatprep.subr.mxu0 0.0
    %951 = vmatpush1.msra.mxu0 0.0
    %952 = vmatprep.subr.mxu0 0.0
    %953 = vmatpush1.msra.mxu0 0.0
    %954 = vmatprep.subr.mxu0 0.0
    %955 = vmatpush1.msra.mxu0 0.0
    %956 = vmatprep.subr.mxu0 0.0
    %957 = vmatpush1.msra.mxu0 0.0
    %958 = vmatprep.subr.mxu0 0.0
    %959 = vmatpush1.msra.mxu0 0.0
    %960 = vmatprep.subr.mxu0 0.0
    %961 = vmatpush1.msra.mxu0 0.0
    %962 = vmatprep.subr.mxu0 0.0
    %963 = vmatpush1.msra.mxu0 0.0
    %964 = vmatprep.subr.mxu0 0.0
    %965 = vmatpush1.msra.mxu0 0.0
    %966 = vmatprep.subr.mxu0 0.0
    %967 = vmatpush1.msra.mxu0 0.0
    %968 = vmatprep.subr.mxu0 0.0
    %969 = vmatpush1.msra.mxu0 0.0
    %970 = vmatprep.subr.mxu0 0.0
    %971 = vmatpush1.msra.mxu0 0.0
    %972 = vmatprep.subr.mxu0 0.0
    %973 = vmatpush1.msra.mxu0 0.0
    %974 = vmatprep.subr.mxu0 0.0
    %975 = vmatpush1.msra.mxu0 %v81
    %976 = vmatprep.subr.mxu0 0.0
    %977 = vmatpush2.msra.mxu0 0.0
    %978 = vmatprep.subr.mxu0 0.0
    %979 = vmatpush2.msra.mxu0 0.0
    %980 = vmatprep.subr.mxu0 0.0
    %981 = vmatpush2.msra.mxu0 0.0
    %982 = vmatprep.subr.mxu0 0.0
    %983 = vmatpush2.msra.mxu0 0.0
    %984 = vmatprep.subr.mxu0 0.0
    %985 = vmatpush2.msra.mxu0 0.0
    %986 = vmatprep.subr.mxu0 0.0
    %987 = vmatpush2.msra.mxu0 0.0
    %988 = vmatprep.subr.mxu0 0.0
    %989 = vmatpush2.msra.mxu0 0.0
    %990 = vmatprep.subr.mxu0 0.0
    %991 = vmatpush2.msra.mxu0 0.0
    %992 = vmatprep.subr.mxu0 0.0
    %993 = vmatpush2.msra.mxu0 0.0
    %994 = vmatprep.subr.mxu0 0.0
    %995 = vmatpush2.msra.mxu0 0.0
    %996 = vmatprep.subr.mxu0 0.0
    %997 = vmatpush2.msra.mxu0 0.0
    %998 = vmatprep.subr.mxu0 0.0
    %999 = vmatpush2.msra.mxu0 0.0
    %1000 = vmatprep.subr.mxu0 0.0
    %1001 = vmatpush2.msra.mxu0 0.0
    %1002 = vmatprep.subr.mxu0 0.0
    %1003 = vmatpush2.msra.mxu0 0.0
    %1004 = vmatprep.subr.mxu0 0.0
    %1005 = vmatpush2.msra.mxu0 0.0
    %1006 = vmatprep.subr.mxu0 0.0
    %1007 = vmatpush2.msra.mxu0 0.0
    %1008 = vmatprep.mubr.f32.mxu0 0.0
    %1009 = vmatmul.mubr.f32.gmra.mxu0 %v939
    %v1010 = vpop.f32.mrf.mxu0
    %v1011 = vadd.f32 0.0, %v1010
    %v1012 = vpop.f32.mrf.mxu0
    %1013 = vmatprep.mubr.f32.mxu0 0.0
    %1014 = vmatmul.mubr.f32.gmra.mxu0 %v942
    %v1015 = vpop.f32.mrf.mxu0
    %v1016 = vadd.f32 0.0, %v1015
    %v1017 = vpop.f32.mrf.mxu0
    %1018 = vdwg.mxu0
    %v1019 = vadd.f32 %v730, %v1011
    %v1020 = vadd.f32 %v735, %v1016
    %1021 = vrot.lane.b32.xlu0 %v172, 104
    %v1022 = vpop.permute.xlu0 %1021
    %1023 = vrot.lane.b32.xlu0 %v173, 104
    %v1024 = vpop.permute.xlu0 %1023
    %1025 = vrot.lane.b32.xlu0 %v164, 72
    %v1026 = vpop.permute.xlu0 %1025
    %1027 = vrot.lane.b32.xlu0 %v169, 72
    %v1028 = vpop.permute.xlu0 %1027
    %v1029 = vsel %vm180, %v1022, 0
    %v1031 = vsel %vm180, %v1024, 0
    %v1033 = vsel %vm180, %v1026, 0
    %v1035 = vsel %vm180, %v1028, 0
    %1037 = vmatprep.subr.mxu0 0.0
    %1038 = vmatpush1.xpose.msra.mxu0 0.0
    %1039 = vmatprep.subr.mxu0 0.0
    %1040 = vmatpush1.xpose.msra.mxu0 0.0
    %1041 = vmatprep.subr.mxu0 0.0
    %1042 = vmatpush1.xpose.msra.mxu0 0.0
    %1043 = vmatprep.subr.mxu0 0.0
    %1044 = vmatpush1.xpose.msra.mxu0 0.0
    %1045 = vmatprep.subr.mxu0 0.0
    %1046 = vmatpush1.xpose.msra.mxu0 0.0
    %1047 = vmatprep.subr.mxu0 0.0
    %1048 = vmatpush1.xpose.msra.mxu0 0.0
    %1049 = vmatprep.subr.mxu0 0.0
    %1050 = vmatpush1.xpose.msra.mxu0 0.0
    %1051 = vmatprep.subr.mxu0 0.0
    %1052 = vmatpush1.xpose.msra.mxu0 0.0
    %1053 = vmatprep.subr.mxu0 0.0
    %1054 = vmatpush1.xpose.msra.mxu0 0.0
    %1055 = vmatprep.subr.mxu0 0.0
    %1056 = vmatpush1.xpose.msra.mxu0 0.0
    %1057 = vmatprep.subr.mxu0 0.0
    %1058 = vmatpush1.xpose.msra.mxu0 0.0
    %1059 = vmatprep.subr.mxu0 0.0
    %1060 = vmatpush1.xpose.msra.mxu0 0.0
    %1061 = vmatprep.subr.mxu0 0.0
    %1062 = vmatpush1.xpose.msra.mxu0 0.0
    %1063 = vmatprep.subr.mxu0 0.0
    %1064 = vmatpush1.xpose.msra.mxu0 0.0
    %1065 = vmatprep.subr.mxu0 0.0
    %1066 = vmatpush1.xpose.msra.mxu0 %v1035
    %1067 = vmatprep.subr.mxu0 0.0
    %1068 = vmatpush1.xpose.msra.mxu0 %v1033
    %1069 = vmatprep.subr.mxu0 0.0
    %1070 = vmatpush2.xpose.msra.mxu0 0.0
    %1071 = vmatprep.subr.mxu0 0.0
    %1072 = vmatpush2.xpose.msra.mxu0 0.0
    %1073 = vmatprep.subr.mxu0 0.0
    %1074 = vmatpush2.xpose.msra.mxu0 0.0
    %1075 = vmatprep.subr.mxu0 0.0
    %1076 = vmatpush2.xpose.msra.mxu0 0.0
    %1077 = vmatprep.subr.mxu0 0.0
    %1078 = vmatpush2.xpose.msra.mxu0 0.0
    %1079 = vmatprep.subr.mxu0 0.0
    %1080 = vmatpush2.xpose.msra.mxu0 0.0
    %1081 = vmatprep.subr.mxu0 0.0
    %1082 = vmatpush2.xpose.msra.mxu0 0.0
    %1083 = vmatprep.subr.mxu0 0.0
    %1084 = vmatpush2.xpose.msra.mxu0 0.0
    %1085 = vmatprep.subr.mxu0 0.0
    %1086 = vmatpush2.xpose.msra.mxu0 0.0
    %1087 = vmatprep.subr.mxu0 0.0
    %1088 = vmatpush2.xpose.msra.mxu0 0.0
    %1089 = vmatprep.subr.mxu0 0.0
    %1090 = vmatpush2.xpose.msra.mxu0 0.0
    %1091 = vmatprep.subr.mxu0 0.0
    %1092 = vmatpush2.xpose.msra.mxu0 0.0
    %1093 = vmatprep.subr.mxu0 0.0
    %1094 = vmatpush2.xpose.msra.mxu0 0.0
    %1095 = vmatprep.subr.mxu0 0.0
    %1096 = vmatpush2.xpose.msra.mxu0 0.0
    %1097 = vmatprep.subr.mxu0 0.0
    %1098 = vmatpush2.xpose.msra.mxu0 0.0
    %1099 = vmatprep.subr.mxu0 0.0
    %1100 = vmatpush2.xpose.msra.mxu0 0.0
    %1101 = vmatprep.mubr.f32.mxu0 0.0
    %1102 = vmatmul.mubr.f32.gmra.mxu0 %v1029
    %v1103 = vpop.f32.mrf.mxu0
    %v1104 = vadd.f32 %v72, %v1103
    %v1105 = vpop.f32.mrf.mxu0
    %1106 = vmatprep.mubr.f32.mxu0 0.0
    %1107 = vmatmul.mubr.f32.gmra.mxu0 %v1031
    %v1108 = vpop.f32.mrf.mxu0
    %v1109 = vadd.f32 %v73, %v1108
    %v1110 = vpop.f32.mrf.mxu0
    %1111 = vdwg.mxu0
    %v1112 = vsel %vm266, %v1104, -inf
    %1113 = vmax.xlane.f32.xlu0 %v1112
    %v1114 = vpop.xlane.xlu0 %1113
    %v1115 = vsel %vm266, %v1109, -inf
    %1116 = vmax.xlane.f32.xlu0 %v1115
    %v1117 = vpop.xlane.xlu0 %1116
    %v1118 = vsub.f32 %v1104, %v1114
    %v1119 = vsub.f32 %v1109, %v1117
    %v1120 = vmul.f32 %v1118, 1.442695
    %v1121 = vpow.pop %v1120
    %v1122 = vmul.f32 %v1119, 1.442695
    %v1123 = vpow.pop %v1122
    %v1124 = vsel %vm266, %v1121, 0.0
    %1125 = vadd.xlane.f32.xlu0 %v1124
    %v1126 = vpop.xlane.xlu0 %1125
    %v1127 = vsel %vm266, %v1123, 0.0
    %1128 = vadd.xlane.f32.xlu0 %v1127
    %v1129 = vpop.xlane.xlu0 %1128
    %v1130 = vrcp.pop %v1126
    %v1131 = vrcp.pop %v1129
    %v1132 = vmul.f32 %v1121, %v1130
    %v1133 = vmul.f32 %v1123, %v1131
    %1134 = vrot.lane.b32.xlu0 %v164, 40
    %v1135 = vpop.permute.xlu0 %1134
    %1136 = vrot.lane.b32.xlu0 %v169, 40
    %v1137 = vpop.permute.xlu0 %1136
    %v1141 = vsel %vm266, %v1132, 0
    %v1144 = vsel %vm266, %v1133, 0
    %1146 = vmatprep.subr.mxu0 0.0
    %1147 = vmatpush1.msra.mxu0 0.0
    %1148 = vmatprep.subr.mxu0 0.0
    %1149 = vmatpush1.msra.mxu0 0.0
    %1150 = vmatprep.subr.mxu0 0.0
    %1151 = vmatpush1.msra.mxu0 0.0
    %1152 = vmatprep.subr.mxu0 0.0
    %1153 = vmatpush1.msra.mxu0 0.0
    %1154 = vmatprep.subr.mxu0 0.0
    %1155 = vmatpush1.msra.mxu0 0.0
    %1156 = vmatprep.subr.mxu0 0.0
    %1157 = vmatpush1.msra.mxu0 0.0
    %1158 = vmatprep.subr.mxu0 0.0
    %1159 = vmatpush1.msra.mxu0 0.0
    %1160 = vmatprep.subr.mxu0 0.0
    %1161 = vmatpush1.msra.mxu0 0.0
    %1162 = vmatprep.subr.mxu0 0.0
    %1163 = vmatpush1.msra.mxu0 0.0
    %1164 = vmatprep.subr.mxu0 0.0
    %1165 = vmatpush1.msra.mxu0 0.0
    %1166 = vmatprep.subr.mxu0 0.0
    %1167 = vmatpush1.msra.mxu0 0.0
    %1168 = vmatprep.subr.mxu0 0.0
    %1169 = vmatpush1.msra.mxu0 0.0
    %1170 = vmatprep.subr.mxu0 0.0
    %1171 = vmatpush1.msra.mxu0 0.0
    %1172 = vmatprep.subr.mxu0 0.0
    %1173 = vmatpush1.msra.mxu0 0.0
    %1174 = vmatprep.subr.mxu0 0.0
    %1175 = vmatpush1.msra.mxu0 %v1137
    %1176 = vmatprep.subr.mxu0 0.0
    %1177 = vmatpush1.msra.mxu0 %v1135
    %1178 = vmatprep.subr.mxu0 0.0
    %1179 = vmatpush2.msra.mxu0 0.0
    %1180 = vmatprep.subr.mxu0 0.0
    %1181 = vmatpush2.msra.mxu0 0.0
    %1182 = vmatprep.subr.mxu0 0.0
    %1183 = vmatpush2.msra.mxu0 0.0
    %1184 = vmatprep.subr.mxu0 0.0
    %1185 = vmatpush2.msra.mxu0 0.0
    %1186 = vmatprep.subr.mxu0 0.0
    %1187 = vmatpush2.msra.mxu0 0.0
    %1188 = vmatprep.subr.mxu0 0.0
    %1189 = vmatpush2.msra.mxu0 0.0
    %1190 = vmatprep.subr.mxu0 0.0
    %1191 = vmatpush2.msra.mxu0 0.0
    %1192 = vmatprep.subr.mxu0 0.0
    %1193 = vmatpush2.msra.mxu0 0.0
    %1194 = vmatprep.subr.mxu0 0.0
    %1195 = vmatpush2.msra.mxu0 0.0
    %1196 = vmatprep.subr.mxu0 0.0
    %1197 = vmatpush2.msra.mxu0 0.0
    %1198 = vmatprep.subr.mxu0 0.0
    %1199 = vmatpush2.msra.mxu0 0.0
    %1200 = vmatprep.subr.mxu0 0.0
    %1201 = vmatpush2.msra.mxu0 0.0
    %1202 = vmatprep.subr.mxu0 0.0
    %1203 = vmatpush2.msra.mxu0 0.0
    %1204 = vmatprep.subr.mxu0 0.0
    %1205 = vmatpush2.msra.mxu0 0.0
    %1206 = vmatprep.subr.mxu0 0.0
    %1207 = vmatpush2.msra.mxu0 0.0
    %1208 = vmatprep.subr.mxu0 0.0
    %1209 = vmatpush2.msra.mxu0 0.0
    %1210 = vmatprep.mubr.f32.mxu0 0.0
    %1211 = vmatmul.mubr.f32.gmra.mxu0 %v1141
    %v1212 = vpop.f32.mrf.mxu0
    %v1213 = vadd.f32 0.0, %v1212
    %v1214 = vpop.f32.mrf.mxu0
    %1215 = vmatprep.mubr.f32.mxu0 0.0
    %1216 = vmatmul.mubr.f32.gmra.mxu0 %v1144
    %v1217 = vpop.f32.mrf.mxu0
    %v1218 = vadd.f32 0.0, %v1217
    %v1219 = vpop.f32.mrf.mxu0
    %1220 = vdwg.mxu0
    %v1222 = vsel %vm180, %v1213, 0
    %v1225 = vsel %vm180, %v1218, 0
    %1227 = vmatprep.subr.mxu0 0.0
    %1228 = vmatpush1.msra.mxu0 0.0
    %1229 = vmatprep.subr.mxu0 0.0
    %1230 = vmatpush1.msra.mxu0 0.0
    %1231 = vmatprep.subr.mxu0 0.0
    %1232 = vmatpush1.msra.mxu0 0.0
    %1233 = vmatprep.subr.mxu0 0.0
    %1234 = vmatpush1.msra.mxu0 0.0
    %1235 = vmatprep.subr.mxu0 0.0
    %1236 = vmatpush1.msra.mxu0 0.0
    %1237 = vmatprep.subr.mxu0 0.0
    %1238 = vmatpush1.msra.mxu0 0.0
    %1239 = vmatprep.subr.mxu0 0.0
    %1240 = vmatpush1.msra.mxu0 0.0
    %1241 = vmatprep.subr.mxu0 0.0
    %1242 = vmatpush1.msra.mxu0 0.0
    %1243 = vmatprep.subr.mxu0 0.0
    %1244 = vmatpush1.msra.mxu0 0.0
    %1245 = vmatprep.subr.mxu0 0.0
    %1246 = vmatpush1.msra.mxu0 0.0
    %1247 = vmatprep.subr.mxu0 0.0
    %1248 = vmatpush1.msra.mxu0 0.0
    %1249 = vmatprep.subr.mxu0 0.0
    %1250 = vmatpush1.msra.mxu0 0.0
    %1251 = vmatprep.subr.mxu0 0.0
    %1252 = vmatpush1.msra.mxu0 0.0
    %1253 = vmatprep.subr.mxu0 0.0
    %1254 = vmatpush1.msra.mxu0 0.0
    %1255 = vmatprep.subr.mxu0 0.0
    %1256 = vmatpush1.msra.mxu0 0.0
    %1257 = vmatprep.subr.mxu0 0.0
    %1258 = vmatpush1.msra.mxu0 %v82
    %1259 = vmatprep.subr.mxu0 0.0
    %1260 = vmatpush2.msra.mxu0 0.0
    %1261 = vmatprep.subr.mxu0 0.0
    %1262 = vmatpush2.msra.mxu0 0.0
    %1263 = vmatprep.subr.mxu0 0.0
    %1264 = vmatpush2.msra.mxu0 0.0
    %1265 = vmatprep.subr.mxu0 0.0
    %1266 = vmatpush2.msra.mxu0 0.0
    %1267 = vmatprep.subr.mxu0 0.0
    %1268 = vmatpush2.msra.mxu0 0.0
    %1269 = vmatprep.subr.mxu0 0.0
    %1270 = vmatpush2.msra.mxu0 0.0
    %1271 = vmatprep.subr.mxu0 0.0
    %1272 = vmatpush2.msra.mxu0 0.0
    %1273 = vmatprep.subr.mxu0 0.0
    %1274 = vmatpush2.msra.mxu0 0.0
    %1275 = vmatprep.subr.mxu0 0.0
    %1276 = vmatpush2.msra.mxu0 0.0
    %1277 = vmatprep.subr.mxu0 0.0
    %1278 = vmatpush2.msra.mxu0 0.0
    %1279 = vmatprep.subr.mxu0 0.0
    %1280 = vmatpush2.msra.mxu0 0.0
    %1281 = vmatprep.subr.mxu0 0.0
    %1282 = vmatpush2.msra.mxu0 0.0
    %1283 = vmatprep.subr.mxu0 0.0
    %1284 = vmatpush2.msra.mxu0 0.0
    %1285 = vmatprep.subr.mxu0 0.0
    %1286 = vmatpush2.msra.mxu0 0.0
    %1287 = vmatprep.subr.mxu0 0.0
    %1288 = vmatpush2.msra.mxu0 0.0
    %1289 = vmatprep.subr.mxu0 0.0
    %1290 = vmatpush2.msra.mxu0 0.0
    %1291 = vmatprep.mubr.f32.mxu0 0.0
    %1292 = vmatmul.mubr.f32.gmra.mxu0 %v1222
    %v1293 = vpop.f32.mrf.mxu0
    %v1294 = vadd.f32 0.0, %v1293
    %v1295 = vpop.f32.mrf.mxu0
    %1296 = vmatprep.mubr.f32.mxu0 0.0
    %1297 = vmatmul.mubr.f32.gmra.mxu0 %v1225
    %v1298 = vpop.f32.mrf.mxu0
    %v1299 = vadd.f32 0.0, %v1298
    %v1300 = vpop.f32.mrf.mxu0
    %1301 = vdwg.mxu0
    %v1302 = vadd.f32 %v1019, %v1294
    %v1303 = vadd.f32 %v1020, %v1299
    %v1305 = vlaneseq
    %v1306 = vshrl.u32 %v1305, 7
    %v1307 = vsub.s32 0, %v1306
    %v1308 = vrot.slane %v83, %v1307
    %v1310 = vadd.f32 %v1302, %v1308
    %v1311 = vadd.f32 %v1303, %v1308
    %v1312 = vadd.f32 %v70, %v1310
    %v1313 = vadd.f32 %v71, %v1311
    %v1314 = vld [vmem:[%s6] sm:$0x1]
    %v1315 = vld [vmem:[%s7] sm:$0x1]
    %v1316 = vsel %vm90, %v1312, 0.0
    %1317 = vadd.xlane.f32.xlu0 %v1316
    %v1318 = vpop.xlane.xlu0 %1317
    %v1319 = vsel %vm90, %v1313, 0.0
    %1320 = vadd.xlane.f32.xlu0 %v1319
    %v1321 = vpop.xlane.xlu0 %1320
    %v1322 = vrcp.pop 32.0
    %v1323 = vmul.f32 %v1318, %v1322
    %v1324 = vmul.f32 %v1321, %v1322
    %v1325 = vsub.f32 %v1312, %v1323
    %v1326 = vsub.f32 %v1313, %v1324
    %v1327 = vmul.f32 %v1325, %v1325
    %v1328 = vmul.f32 %v1326, %v1326
    %v1329 = vsel %vm90, %v1327, 0.0
    %1330 = vadd.xlane.f32.xlu0 %v1329
    %v1331 = vpop.xlane.xlu0 %1330
    %v1332 = vsel %vm90, %v1328, 0.0
    %1333 = vadd.xlane.f32.xlu0 %v1332
    %v1334 = vpop.xlane.xlu0 %1333
    %v1335 = vmul.f32 %v1331, %v1322
    %v1336 = vmul.f32 %v1334, %v1322
    %v1337 = vadd.f32 %v1335, 1e-05
    %v1338 = vadd.f32 %v1336, 1e-05
    %v1339 = vrsqrt.pop %v1337
    %v1340 = vrsqrt.pop %v1338
    %v1341 = vmul.f32 %v1325, %v1339
    %v1342 = vmul.f32 %v1326, %v1340
    %v1344 = vlaneseq
    %v1345 = vshrl.u32 %v1344, 7
    %v1346 = vsub.s32 0, %v1345
    %v1347 = vrot.slane %v1314, %v1346
    %v1349 = vmul.f32 %v1341, %v1347
    %v1350 = vmul.f32 %v1342, %v1347
    %v1352 = vlaneseq
    %v1353 = vshrl.u32 %v1352, 7
    %v1354 = vsub.s32 0, %v1353
    %v1355 = vrot.slane %v1315, %v1354
    %v1357 = vadd.f32 %v1349, %v1355
    %v1358 = vadd.f32 %v1350, %v1355
    %v1359 = vld [vmem:[%s8] sm:$0xff]
    %v1360 = vld [vmem:[%s8 + $0x8] sm:$0xff]
    %v1361 = vld [vmem:[%s8 + $0x10] sm:$0xff]
    %v1362 = vld [vmem:[%s8 + $0x18] sm:$0xff]
    %v1364 = vsel %vm90, %v1357, 0
    %v1367 = vsel %vm90, %v1358, 0
    %1369 = vmatprep.subr.mxu0 0.0
    %1370 = vmatpush1.msra.mxu0 0.0
    %1371 = vmatprep.subr.mxu0 0.0
    %1372 = vmatpush1.msra.mxu0 0.0
    %1373 = vmatprep.subr.mxu0 0.0
    %1374 = vmatpush1.msra.mxu0 0.0
    %1375 = vmatprep.subr.mxu0 0.0
    %1376 = vmatpush1.msra.mxu0 0.0
    %1377 = vmatprep.subr.mxu0 0.0
    %1378 = vmatpush1.msra.mxu0 0.0
    %1379 = vmatprep.subr.mxu0 0.0
    %1380 = vmatpush1.msra.mxu0 0.0
    %1381 = vmatprep.subr.mxu0 0.0
    %1382 = vmatpush1.msra.mxu0 0.0
    %1383 = vmatprep.subr.mxu0 0.0
    %1384 = vmatpush1.msra.mxu0 0.0
    %1385 = vmatprep.subr.mxu0 0.0
    %1386 = vmatpush1.msra.mxu0 0.0
    %1387 = vmatprep.subr.mxu0 0.0
    %1388 = vmatpush1.msra.mxu0 0.0
    %1389 = vmatprep.subr.mxu0 0.0
    %1390 = vmatpush1.msra.mxu0 0.0
    %1391 = vmatprep.subr.mxu0 0.0
    %1392 = vmatpush1.msra.mxu0 0.0
    %1393 = vmatprep.subr.mxu0 0.0
    %1394 = vmatpush1.msra.mxu0 %v1362
    %1395 = vmatprep.subr.mxu0 0.0
    %1396 = vmatpush1.msra.mxu0 %v1361
    %1397 = vmatprep.subr.mxu0 0.0
    %1398 = vmatpush1.msra.mxu0 %v1360
    %1399 = vmatprep.subr.mxu0 0.0
    %1400 = vmatpush1.msra.mxu0 %v1359
    %1401 = vmatprep.subr.mxu0 0.0
    %1402 = vmatpush2.msra.mxu0 0.0
    %1403 = vmatprep.subr.mxu0 0.0
    %1404 = vmatpush2.msra.mxu0 0.0
    %1405 = vmatprep.subr.mxu0 0.0
    %1406 = vmatpush2.msra.mxu0 0.0
    %1407 = vmatprep.subr.mxu0 0.0
    %1408 = vmatpush2.msra.mxu0 0.0
    %1409 = vmatprep.subr.mxu0 0.0
    %1410 = vmatpush2.msra.mxu0 0.0
    %1411 = vmatprep.subr.mxu0 0.0
    %1412 = vmatpush2.msra.mxu0 0.0
    %1413 = vmatprep.subr.mxu0 0.0
    %1414 = vmatpush2.msra.mxu0 0.0
    %1415 = vmatprep.subr.mxu0 0.0
    %1416 = vmatpush2.msra.mxu0 0.0
    %1417 = vmatprep.subr.mxu0 0.0
    %1418 = vmatpush2.msra.mxu0 0.0
    %1419 = vmatprep.subr.mxu0 0.0
    %1420 = vmatpush2.msra.mxu0 0.0
    %1421 = vmatprep.subr.mxu0 0.0
    %1422 = vmatpush2.msra.mxu0 0.0
    %1423 = vmatprep.subr.mxu0 0.0
    %1424 = vmatpush2.msra.mxu0 0.0
    %1425 = vmatprep.subr.mxu0 0.0
    %1426 = vmatpush2.msra.mxu0 0.0
    %1427 = vmatprep.subr.mxu0 0.0
    %1428 = vmatpush2.msra.mxu0 0.0
    %1429 = vmatprep.subr.mxu0 0.0
    %1430 = vmatpush2.msra.mxu0 0.0
    %1431 = vmatprep.subr.mxu0 0.0
    %1432 = vmatpush2.msra.mxu0 0.0
    %1433 = vmatprep.mubr.f32.mxu0 0.0
    %1434 = vmatmul.mubr.f32.gmra.mxu0 %v1364
    %v1435 = vpop.f32.mrf.mxu0
    %v1436 = vadd.f32 0.0, %v1435
    %v1437 = vpop.f32.mrf.mxu0
    %1438 = vmatprep.mubr.f32.mxu0 0.0
    %1439 = vmatmul.mubr.f32.gmra.mxu0 %v1367
    %v1440 = vpop.f32.mrf.mxu0
    %v1441 = vadd.f32 0.0, %v1440
    %v1442 = vpop.f32.mrf.mxu0
    %1443 = vdwg.mxu0
    %v1444 = vmax.f32 %v1436, 0.0
    %v1445 = vmax.f32 %v1441, 0.0
    %v1446 = vld [vmem:[%s9] sm:$0xff]
    %v1447 = vld [vmem:[%s9 + $0x8] sm:$0xff]
    %v1448 = vld [vmem:[%s9 + $0x10] sm:$0xff]
    %v1449 = vld [vmem:[%s9 + $0x18] sm:$0xff]
    %v1450 = vld [vmem:[%s9 + $0x20] sm:$0xff]
    %v1451 = vld [vmem:[%s9 + $0x28] sm:$0xff]
    %v1452 = vld [vmem:[%s9 + $0x30] sm:$0xff]
    %v1453 = vld [vmem:[%s9 + $0x38] sm:$0xff]
    %vm1454 = vcmask 523264
    %v1456 = vsel %vm1454, %v1444, 0
    %v1459 = vsel %vm1454, %v1445, 0
    %1461 = vmatprep.subr.mxu0 0.0
    %1462 = vmatpush1.msra.mxu0 0.0
    %1463 = vmatprep.subr.mxu0 0.0
    %1464 = vmatpush1.msra.mxu0 0.0
    %1465 = vmatprep.subr.mxu0 0.0
    %1466 = vmatpush1.msra.mxu0 0.0
    %1467 = vmatprep.subr.mxu0 0.0
    %1468 = vmatpush1.msra.mxu0 0.0
    %1469 = vmatprep.subr.mxu0 0.0
    %1470 = vmatpush1.msra.mxu0 0.0
    %1471 = vmatprep.subr.mxu0 0.0
    %1472 = vmatpush1.msra.mxu0 0.0
    %1473 = vmatprep.subr.mxu0 0.0
    %1474 = vmatpush1.msra.mxu0 0.0
    %1475 = vmatprep.subr.mxu0 0.0
    %1476 = vmatpush1.msra.mxu0 0.0
    %1477 = vmatprep.subr.mxu0 0.0
    %1478 = vmatpush1.msra.mxu0 %v1453
    %1479 = vmatprep.subr.mxu0 0.0
    %1480 = vmatpush1.msra.mxu0 %v1452
    %1481 = vmatprep.subr.mxu0 0.0
    %1482 = vmatpush1.msra.mxu0 %v1451
    %1483 = vmatprep.subr.mxu0 0.0
    %1484 = vmatpush1.msra.mxu0 %v1450
    %1485 = vmatprep.subr.mxu0 0.0
    %1486 = vmatpush1.msra.mxu0 %v1449
    %1487 = vmatprep.subr.mxu0 0.0
    %1488 = vmatpush1.msra.mxu0 %v1448
    %1489 = vmatprep.subr.mxu0 0.0
    %1490 = vmatpush1.msra.mxu0 %v1447
    %1491 = vmatprep.subr.mxu0 0.0
    %1492 = vmatpush1.msra.mxu0 %v1446
    %1493 = vmatprep.subr.mxu0 0.0
    %1494 = vmatpush2.msra.mxu0 0.0
    %1495 = vmatprep.subr.mxu0 0.0
    %1496 = vmatpush2.msra.mxu0 0.0
    %1497 = vmatprep.subr.mxu0 0.0
    %1498 = vmatpush2.msra.mxu0 0.0
    %1499 = vmatprep.subr.mxu0 0.0
    %1500 = vmatpush2.msra.mxu0 0.0
    %1501 = vmatprep.subr.mxu0 0.0
    %1502 = vmatpush2.msra.mxu0 0.0
    %1503 = vmatprep.subr.mxu0 0.0
    %1504 = vmatpush2.msra.mxu0 0.0
    %1505 = vmatprep.subr.mxu0 0.0
    %1506 = vmatpush2.msra.mxu0 0.0
    %1507 = vmatprep.subr.mxu0 0.0
    %1508 = vmatpush2.msra.mxu0 0.0
    %1509 = vmatprep.subr.mxu0 0.0
    %1510 = vmatpush2.msra.mxu0 0.0
    %1511 = vmatprep.subr.mxu0 0.0
    %1512 = vmatpush2.msra.mxu0 0.0
    %1513 = vmatprep.subr.mxu0 0.0
    %1514 = vmatpush2.msra.mxu0 0.0
    %1515 = vmatprep.subr.mxu0 0.0
    %1516 = vmatpush2.msra.mxu0 0.0
    %1517 = vmatprep.subr.mxu0 0.0
    %1518 = vmatpush2.msra.mxu0 0.0
    %1519 = vmatprep.subr.mxu0 0.0
    %1520 = vmatpush2.msra.mxu0 0.0
    %1521 = vmatprep.subr.mxu0 0.0
    %1522 = vmatpush2.msra.mxu0 0.0
    %1523 = vmatprep.subr.mxu0 0.0
    %1524 = vmatpush2.msra.mxu0 0.0
    %1525 = vmatprep.mubr.f32.mxu0 0.0
    %1526 = vmatmul.mubr.f32.gmra.mxu0 %v1456
    %v1527 = vpop.f32.mrf.mxu0
    %v1528 = vadd.f32 0.0, %v1527
    %v1529 = vpop.f32.mrf.mxu0
    %1530 = vmatprep.mubr.f32.mxu0 0.0
    %1531 = vmatmul.mubr.f32.gmra.mxu0 %v1459
    %v1532 = vpop.f32.mrf.mxu0
    %v1533 = vadd.f32 0.0, %v1532
    %v1534 = vpop.f32.mrf.mxu0
    %1535 = vdwg.mxu0
    %v1536 = vadd.f32 %v1357, %v1528
    %v1537 = vadd.f32 %v1358, %v1533
    %v1538 = vld [vmem:[%s10] sm:$0x1]
    %v1539 = vld [vmem:[%s11] sm:$0x1]
    %v1540 = vsel %vm90, %v1536, 0.0
    %1541 = vadd.xlane.f32.xlu0 %v1540
    %v1542 = vpop.xlane.xlu0 %1541
    %v1543 = vsel %vm90, %v1537, 0.0
    %1544 = vadd.xlane.f32.xlu0 %v1543
    %v1545 = vpop.xlane.xlu0 %1544
    %v1546 = vmul.f32 %v1542, %v1322
    %v1547 = vmul.f32 %v1545, %v1322
    %v1548 = vsub.f32 %v1536, %v1546
    %v1549 = vsub.f32 %v1537, %v1547
    %v1550 = vmul.f32 %v1548, %v1548
    %v1551 = vmul.f32 %v1549, %v1549
    %v1552 = vsel %vm90, %v1550, 0.0
    %1553 = vadd.xlane.f32.xlu0 %v1552
    %v1554 = vpop.xlane.xlu0 %1553
    %v1555 = vsel %vm90, %v1551, 0.0
    %1556 = vadd.xlane.f32.xlu0 %v1555
    %v1557 = vpop.xlane.xlu0 %1556
    %v1558 = vmul.f32 %v1554, %v1322
    %v1559 = vmul.f32 %v1557, %v1322
    %v1560 = vadd.f32 %v1558, 1e-05
    %v1561 = vadd.f32 %v1559, 1e-05
    %v1562 = vrsqrt.pop %v1560
    %v1563 = vrsqrt.pop %v1561
    %v1564 = vmul.f32 %v1548, %v1562
    %v1565 = vmul.f32 %v1549, %v1563
    %v1567 = vlaneseq
    %v1568 = vshrl.u32 %v1567, 7
    %v1569 = vsub.s32 0, %v1568
    %v1570 = vrot.slane %v1538, %v1569
    %v1572 = vmul.f32 %v1564, %v1570
    %v1573 = vmul.f32 %v1565, %v1570
    %v1575 = vlaneseq
    %v1576 = vshrl.u32 %v1575, 7
    %v1577 = vsub.s32 0, %v1576
    %v1578 = vrot.slane %v1539, %v1577
    %v1580 = vadd.f32 %v1572, %v1578
    %v1581 = vadd.f32 %v1573, %v1578
    %s1582 = scalar_lea.vmem %s2, 32
    %v1583 = vld [vmem:[%s1582] sm:$0xff]
    %v1584 = vld [vmem:[%s1582 + $0x8] sm:$0xff]
    %v1585 = vld [vmem:[%s1582 + $0x10] sm:$0xff]
    %v1586 = vld [vmem:[%s1582 + $0x18] sm:$0xff]
    %s1587 = scalar_lea.vmem %s3, 1
    %v1588 = vld [vmem:[%s1587] sm:$0x1]
    %s1589 = scalar_lea.vmem %s4, 32
    %v1590 = vld [vmem:[%s1589] sm:$0xff]
    %v1591 = vld [vmem:[%s1589 + $0x8] sm:$0xff]
    %v1592 = vld [vmem:[%s1589 + $0x10] sm:$0xff]
    %v1593 = vld [vmem:[%s1589 + $0x18] sm:$0xff]
    %s1594 = scalar_lea.vmem %s5, 1
    %v1595 = vld [vmem:[%s1594] sm:$0x1]
    %v1597 = vlaneseq
    %v1598 = vshrl.u32 %v1597, 7
    %v1599 = vsub.s32 0, %v1598
    %v1600 = vrot.slane %v1588, %v1599
    %v1603 = vsel %vm90, %v1580, 0
    %v1606 = vsel %vm90, %v1581, 0
    %1608 = vmatprep.subr.mxu0 0.0
    %1609 = vmatpush1.msra.mxu0 0.0
    %1610 = vmatprep.subr.mxu0 0.0
    %1611 = vmatpush1.msra.mxu0 0.0
    %1612 = vmatprep.subr.mxu0 0.0
    %1613 = vmatpush1.msra.mxu0 0.0
    %1614 = vmatprep.subr.mxu0 0.0
    %1615 = vmatpush1.msra.mxu0 0.0
    %1616 = vmatprep.subr.mxu0 0.0
    %1617 = vmatpush1.msra.mxu0 0.0
    %1618 = vmatprep.subr.mxu0 0.0
    %1619 = vmatpush1.msra.mxu0 0.0
    %1620 = vmatprep.subr.mxu0 0.0
    %1621 = vmatpush1.msra.mxu0 0.0
    %1622 = vmatprep.subr.mxu0 0.0
    %1623 = vmatpush1.msra.mxu0 0.0
    %1624 = vmatprep.subr.mxu0 0.0
    %1625 = vmatpush1.msra.mxu0 0.0
    %1626 = vmatprep.subr.mxu0 0.0
    %1627 = vmatpush1.msra.mxu0 0.0
    %1628 = vmatprep.subr.mxu0 0.0
    %1629 = vmatpush1.msra.mxu0 0.0
    %1630 = vmatprep.subr.mxu0 0.0
    %1631 = vmatpush1.msra.mxu0 0.0
    %1632 = vmatprep.subr.mxu0 0.0
    %1633 = vmatpush1.msra.mxu0 %v1586
    %1634 = vmatprep.subr.mxu0 0.0
    %1635 = vmatpush1.msra.mxu0 %v1585
    %1636 = vmatprep.subr.mxu0 0.0
    %1637 = vmatpush1.msra.mxu0 %v1584
    %1638 = vmatprep.subr.mxu0 0.0
    %1639 = vmatpush1.msra.mxu0 %v1583
    %1640 = vmatprep.subr.mxu0 0.0
    %1641 = vmatpush2.msra.mxu0 0.0
    %1642 = vmatprep.subr.mxu0 0.0
    %1643 = vmatpush2.msra.mxu0 0.0
    %1644 = vmatprep.subr.mxu0 0.0
    %1645 = vmatpush2.msra.mxu0 0.0
    %1646 = vmatprep.subr.mxu0 0.0
    %1647 = vmatpush2.msra.mxu0 0.0
    %1648 = vmatprep.subr.mxu0 0.0
    %1649 = vmatpush2.msra.mxu0 0.0
    %1650 = vmatprep.subr.mxu0 0.0
    %1651 = vmatpush2.msra.mxu0 0.0
    %1652 = vmatprep.subr.mxu0 0.0
    %1653 = vmatpush2.msra.mxu0 0.0
    %1654 = vmatprep.subr.mxu0 0.0
    %1655 = vmatpush2.msra.mxu0 0.0
    %1656 = vmatprep.subr.mxu0 0.0
    %1657 = vmatpush2.msra.mxu0 0.0
    %1658 = vmatprep.subr.mxu0 0.0
    %1659 = vmatpush2.msra.mxu0 0.0
    %1660 = vmatprep.subr.mxu0 0.0
    %1661 = vmatpush2.msra.mxu0 0.0
    %1662 = vmatprep.subr.mxu0 0.0
    %1663 = vmatpush2.msra.mxu0 0.0
    %1664 = vmatprep.subr.mxu0 0.0
    %1665 = vmatpush2.msra.mxu0 0.0
    %1666 = vmatprep.subr.mxu0 0.0
    %1667 = vmatpush2.msra.mxu0 0.0
    %1668 = vmatprep.subr.mxu0 0.0
    %1669 = vmatpush2.msra.mxu0 0.0
    %1670 = vmatprep.subr.mxu0 0.0
    %1671 = vmatpush2.msra.mxu0 0.0
    %1672 = vmatprep.mubr.f32.mxu0 0.0
    %1673 = vmatmul.mubr.f32.gmra.mxu0 %v1603
    %v1674 = vpop.f32.mrf.mxu0
    %v1675 = vadd.f32 %v1600, %v1674
    %v1676 = vpop.f32.mrf.mxu0
    %1677 = vmatprep.mubr.f32.mxu0 0.0
    %1678 = vmatmul.mubr.f32.gmra.mxu0 %v1606
    %v1679 = vpop.f32.mrf.mxu0
    %v1680 = vadd.f32 %v1600, %v1679
    %v1681 = vpop.f32.mrf.mxu0
    %1682 = vdwg.mxu0
    %v1683 = vmul.f32 %v1675, 0.35355338
    %v1684 = vmul.f32 %v1680, 0.35355338
    %1687 = vrot.lane.b32.xlu0 %v1675, 96
    %v1688 = vpop.permute.xlu0 %1687
    %1689 = vrot.lane.b32.xlu0 %v1680, 96
    %v1690 = vpop.permute.xlu0 %1689
    %v1692 = vsel %vm180, %v1683, 0
    %v1695 = vsel %vm180, %v1684, 0
    %v1697 = vsel %vm180, %v1688, 0
    %v1699 = vsel %vm180, %v1690, 0
    %1701 = vmatprep.subr.mxu0 0.0
    %1702 = vmatpush1.xpose.msra.mxu0 0.0
    %1703 = vmatprep.subr.mxu0 0.0
    %1704 = vmatpush1.xpose.msra.mxu0 0.0
    %1705 = vmatprep.subr.mxu0 0.0
    %1706 = vmatpush1.xpose.msra.mxu0 0.0
    %1707 = vmatprep.subr.mxu0 0.0
    %1708 = vmatpush1.xpose.msra.mxu0 0.0
    %1709 = vmatprep.subr.mxu0 0.0
    %1710 = vmatpush1.xpose.msra.mxu0 0.0
    %1711 = vmatprep.subr.mxu0 0.0
    %1712 = vmatpush1.xpose.msra.mxu0 0.0
    %1713 = vmatprep.subr.mxu0 0.0
    %1714 = vmatpush1.xpose.msra.mxu0 0.0
    %1715 = vmatprep.subr.mxu0 0.0
    %1716 = vmatpush1.xpose.msra.mxu0 0.0
    %1717 = vmatprep.subr.mxu0 0.0
    %1718 = vmatpush1.xpose.msra.mxu0 0.0
    %1719 = vmatprep.subr.mxu0 0.0
    %1720 = vmatpush1.xpose.msra.mxu0 0.0
    %1721 = vmatprep.subr.mxu0 0.0
    %1722 = vmatpush1.xpose.msra.mxu0 0.0
    %1723 = vmatprep.subr.mxu0 0.0
    %1724 = vmatpush1.xpose.msra.mxu0 0.0
    %1725 = vmatprep.subr.mxu0 0.0
    %1726 = vmatpush1.xpose.msra.mxu0 0.0
    %1727 = vmatprep.subr.mxu0 0.0
    %1728 = vmatpush1.xpose.msra.mxu0 0.0
    %1729 = vmatprep.subr.mxu0 0.0
    %1730 = vmatpush1.xpose.msra.mxu0 %v1699
    %1731 = vmatprep.subr.mxu0 0.0
    %1732 = vmatpush1.xpose.msra.mxu0 %v1697
    %1733 = vmatprep.subr.mxu0 0.0
    %1734 = vmatpush2.xpose.msra.mxu0 0.0
    %1735 = vmatprep.subr.mxu0 0.0
    %1736 = vmatpush2.xpose.msra.mxu0 0.0
    %1737 = vmatprep.subr.mxu0 0.0
    %1738 = vmatpush2.xpose.msra.mxu0 0.0
    %1739 = vmatprep.subr.mxu0 0.0
    %1740 = vmatpush2.xpose.msra.mxu0 0.0
    %1741 = vmatprep.subr.mxu0 0.0
    %1742 = vmatpush2.xpose.msra.mxu0 0.0
    %1743 = vmatprep.subr.mxu0 0.0
    %1744 = vmatpush2.xpose.msra.mxu0 0.0
    %1745 = vmatprep.subr.mxu0 0.0
    %1746 = vmatpush2.xpose.msra.mxu0 0.0
    %1747 = vmatprep.subr.mxu0 0.0
    %1748 = vmatpush2.xpose.msra.mxu0 0.0
    %1749 = vmatprep.subr.mxu0 0.0
    %1750 = vmatpush2.xpose.msra.mxu0 0.0
    %1751 = vmatprep.subr.mxu0 0.0
    %1752 = vmatpush2.xpose.msra.mxu0 0.0
    %1753 = vmatprep.subr.mxu0 0.0
    %1754 = vmatpush2.xpose.msra.mxu0 0.0
    %1755 = vmatprep.subr.mxu0 0.0
    %1756 = vmatpush2.xpose.msra.mxu0 0.0
    %1757 = vmatprep.subr.mxu0 0.0
    %1758 = vmatpush2.xpose.msra.mxu0 0.0
    %1759 = vmatprep.subr.mxu0 0.0
    %1760 = vmatpush2.xpose.msra.mxu0 0.0
    %1761 = vmatprep.subr.mxu0 0.0
    %1762 = vmatpush2.xpose.msra.mxu0 0.0
    %1763 = vmatprep.subr.mxu0 0.0
    %1764 = vmatpush2.xpose.msra.mxu0 0.0
    %1765 = vmatprep.mubr.f32.mxu0 0.0
    %1766 = vmatmul.mubr.f32.gmra.mxu0 %v1692
    %v1767 = vpop.f32.mrf.mxu0
    %v1768 = vadd.f32 %v72, %v1767
    %v1769 = vpop.f32.mrf.mxu0
    %1770 = vmatprep.mubr.f32.mxu0 0.0
    %1771 = vmatmul.mubr.f32.gmra.mxu0 %v1695
    %v1772 = vpop.f32.mrf.mxu0
    %v1773 = vadd.f32 %v73, %v1772
    %v1774 = vpop.f32.mrf.mxu0
    %1775 = vdwg.mxu0
    %v1776 = vsel %vm266, %v1768, -inf
    %1777 = vmax.xlane.f32.xlu0 %v1776
    %v1778 = vpop.xlane.xlu0 %1777
    %v1779 = vsel %vm266, %v1773, -inf
    %1780 = vmax.xlane.f32.xlu0 %v1779
    %v1781 = vpop.xlane.xlu0 %1780
    %v1782 = vsub.f32 %v1768, %v1778
    %v1783 = vsub.f32 %v1773, %v1781
    %v1784 = vmul.f32 %v1782, 1.442695
    %v1785 = vpow.pop %v1784
    %v1786 = vmul.f32 %v1783, 1.442695
    %v1787 = vpow.pop %v1786
    %v1788 = vsel %vm266, %v1785, 0.0
    %1789 = vadd.xlane.f32.xlu0 %v1788
    %v1790 = vpop.xlane.xlu0 %1789
    %v1791 = vsel %vm266, %v1787, 0.0
    %1792 = vadd.xlane.f32.xlu0 %v1791
    %v1793 = vpop.xlane.xlu0 %1792
    %v1794 = vrcp.pop %v1790
    %v1795 = vrcp.pop %v1793
    %v1796 = vmul.f32 %v1785, %v1794
    %v1797 = vmul.f32 %v1787, %v1795
    %1798 = vrot.lane.b32.xlu0 %v1675, 64
    %v1799 = vpop.permute.xlu0 %1798
    %1800 = vrot.lane.b32.xlu0 %v1680, 64
    %v1801 = vpop.permute.xlu0 %1800
    %v1805 = vsel %vm266, %v1796, 0
    %v1808 = vsel %vm266, %v1797, 0
    %1810 = vmatprep.subr.mxu0 0.0
    %1811 = vmatpush1.msra.mxu0 0.0
    %1812 = vmatprep.subr.mxu0 0.0
    %1813 = vmatpush1.msra.mxu0 0.0
    %1814 = vmatprep.subr.mxu0 0.0
    %1815 = vmatpush1.msra.mxu0 0.0
    %1816 = vmatprep.subr.mxu0 0.0
    %1817 = vmatpush1.msra.mxu0 0.0
    %1818 = vmatprep.subr.mxu0 0.0
    %1819 = vmatpush1.msra.mxu0 0.0
    %1820 = vmatprep.subr.mxu0 0.0
    %1821 = vmatpush1.msra.mxu0 0.0
    %1822 = vmatprep.subr.mxu0 0.0
    %1823 = vmatpush1.msra.mxu0 0.0
    %1824 = vmatprep.subr.mxu0 0.0
    %1825 = vmatpush1.msra.mxu0 0.0
    %1826 = vmatprep.subr.mxu0 0.0
    %1827 = vmatpush1.msra.mxu0 0.0
    %1828 = vmatprep.subr.mxu0 0.0
    %1829 = vmatpush1.msra.mxu0 0.0
    %1830 = vmatprep.subr.mxu0 0.0
    %1831 = vmatpush1.msra.mxu0 0.0
    %1832 = vmatprep.subr.mxu0 0.0
    %1833 = vmatpush1.msra.mxu0 0.0
    %1834 = vmatprep.subr.mxu0 0.0
    %1835 = vmatpush1.msra.mxu0 0.0
    %1836 = vmatprep.subr.mxu0 0.0
    %1837 = vmatpush1.msra.mxu0 0.0
    %1838 = vmatprep.subr.mxu0 0.0
    %1839 = vmatpush1.msra.mxu0 %v1801
    %1840 = vmatprep.subr.mxu0 0.0
    %1841 = vmatpush1.msra.mxu0 %v1799
    %1842 = vmatprep.subr.mxu0 0.0
    %1843 = vmatpush2.msra.mxu0 0.0
    %1844 = vmatprep.subr.mxu0 0.0
    %1845 = vmatpush2.msra.mxu0 0.0
    %1846 = vmatprep.subr.mxu0 0.0
    %1847 = vmatpush2.msra.mxu0 0.0
    %1848 = vmatprep.subr.mxu0 0.0
    %1849 = vmatpush2.msra.mxu0 0.0
    %1850 = vmatprep.subr.mxu0 0.0
    %1851 = vmatpush2.msra.mxu0 0.0
    %1852 = vmatprep.subr.mxu0 0.0
    %1853 = vmatpush2.msra.mxu0 0.0
    %1854 = vmatprep.subr.mxu0 0.0
    %1855 = vmatpush2.msra.mxu0 0.0
    %1856 = vmatprep.subr.mxu0 0.0
    %1857 = vmatpush2.msra.mxu0 0.0
    %1858 = vmatprep.subr.mxu0 0.0
    %1859 = vmatpush2.msra.mxu0 0.0
    %1860 = vmatprep.subr.mxu0 0.0
    %1861 = vmatpush2.msra.mxu0 0.0
    %1862 = vmatprep.subr.mxu0 0.0
    %1863 = vmatpush2.msra.mxu0 0.0
    %1864 = vmatprep.subr.mxu0 0.0
    %1865 = vmatpush2.msra.mxu0 0.0
    %1866 = vmatprep.subr.mxu0 0.0
    %1867 = vmatpush2.msra.mxu0 0.0
    %1868 = vmatprep.subr.mxu0 0.0
    %1869 = vmatpush2.msra.mxu0 0.0
    %1870 = vmatprep.subr.mxu0 0.0
    %1871 = vmatpush2.msra.mxu0 0.0
    %1872 = vmatprep.subr.mxu0 0.0
    %1873 = vmatpush2.msra.mxu0 0.0
    %1874 = vmatprep.mubr.f32.mxu0 0.0
    %1875 = vmatmul.mubr.f32.gmra.mxu0 %v1805
    %v1876 = vpop.f32.mrf.mxu0
    %v1877 = vadd.f32 0.0, %v1876
    %v1878 = vpop.f32.mrf.mxu0
    %1879 = vmatprep.mubr.f32.mxu0 0.0
    %1880 = vmatmul.mubr.f32.gmra.mxu0 %v1808
    %v1881 = vpop.f32.mrf.mxu0
    %v1882 = vadd.f32 0.0, %v1881
    %v1883 = vpop.f32.mrf.mxu0
    %1884 = vdwg.mxu0
    %1885 = vrot.lane.b32.xlu0 %v1683, 120
    %v1886 = vpop.permute.xlu0 %1885
    %1887 = vrot.lane.b32.xlu0 %v1684, 120
    %v1888 = vpop.permute.xlu0 %1887
    %1889 = vrot.lane.b32.xlu0 %v1675, 88
    %v1890 = vpop.permute.xlu0 %1889
    %1891 = vrot.lane.b32.xlu0 %v1680, 88
    %v1892 = vpop.permute.xlu0 %1891
    %v1893 = vsel %vm180, %v1886, 0
    %v1895 = vsel %vm180, %v1888, 0
    %v1897 = vsel %vm180, %v1890, 0
    %v1899 = vsel %vm180, %v1892, 0
    %1901 = vmatprep.subr.mxu0 0.0
    %1902 = vmatpush1.xpose.msra.mxu0 0.0
    %1903 = vmatprep.subr.mxu0 0.0
    %1904 = vmatpush1.xpose.msra.mxu0 0.0
    %1905 = vmatprep.subr.mxu0 0.0
    %1906 = vmatpush1.xpose.msra.mxu0 0.0
    %1907 = vmatprep.subr.mxu0 0.0
    %1908 = vmatpush1.xpose.msra.mxu0 0.0
    %1909 = vmatprep.subr.mxu0 0.0
    %1910 = vmatpush1.xpose.msra.mxu0 0.0
    %1911 = vmatprep.subr.mxu0 0.0
    %1912 = vmatpush1.xpose.msra.mxu0 0.0
    %1913 = vmatprep.subr.mxu0 0.0
    %1914 = vmatpush1.xpose.msra.mxu0 0.0
    %1915 = vmatprep.subr.mxu0 0.0
    %1916 = vmatpush1.xpose.msra.mxu0 0.0
    %1917 = vmatprep.subr.mxu0 0.0
    %1918 = vmatpush1.xpose.msra.mxu0 0.0
    %1919 = vmatprep.subr.mxu0 0.0
    %1920 = vmatpush1.xpose.msra.mxu0 0.0
    %1921 = vmatprep.subr.mxu0 0.0
    %1922 = vmatpush1.xpose.msra.mxu0 0.0
    %1923 = vmatprep.subr.mxu0 0.0
    %1924 = vmatpush1.xpose.msra.mxu0 0.0
    %1925 = vmatprep.subr.mxu0 0.0
    %1926 = vmatpush1.xpose.msra.mxu0 0.0
    %1927 = vmatprep.subr.mxu0 0.0
    %1928 = vmatpush1.xpose.msra.mxu0 0.0
    %1929 = vmatprep.subr.mxu0 0.0
    %1930 = vmatpush1.xpose.msra.mxu0 %v1899
    %1931 = vmatprep.subr.mxu0 0.0
    %1932 = vmatpush1.xpose.msra.mxu0 %v1897
    %1933 = vmatprep.subr.mxu0 0.0
    %1934 = vmatpush2.xpose.msra.mxu0 0.0
    %1935 = vmatprep.subr.mxu0 0.0
    %1936 = vmatpush2.xpose.msra.mxu0 0.0
    %1937 = vmatprep.subr.mxu0 0.0
    %1938 = vmatpush2.xpose.msra.mxu0 0.0
    %1939 = vmatprep.subr.mxu0 0.0
    %1940 = vmatpush2.xpose.msra.mxu0 0.0
    %1941 = vmatprep.subr.mxu0 0.0
    %1942 = vmatpush2.xpose.msra.mxu0 0.0
    %1943 = vmatprep.subr.mxu0 0.0
    %1944 = vmatpush2.xpose.msra.mxu0 0.0
    %1945 = vmatprep.subr.mxu0 0.0
    %1946 = vmatpush2.xpose.msra.mxu0 0.0
    %1947 = vmatprep.subr.mxu0 0.0
    %1948 = vmatpush2.xpose.msra.mxu0 0.0
    %1949 = vmatprep.subr.mxu0 0.0
    %1950 = vmatpush2.xpose.msra.mxu0 0.0
    %1951 = vmatprep.subr.mxu0 0.0
    %1952 = vmatpush2.xpose.msra.mxu0 0.0
    %1953 = vmatprep.subr.mxu0 0.0
    %1954 = vmatpush2.xpose.msra.mxu0 0.0
    %1955 = vmatprep.subr.mxu0 0.0
    %1956 = vmatpush2.xpose.msra.mxu0 0.0
    %1957 = vmatprep.subr.mxu0 0.0
    %1958 = vmatpush2.xpose.msra.mxu0 0.0
    %1959 = vmatprep.subr.mxu0 0.0
    %1960 = vmatpush2.xpose.msra.mxu0 0.0
    %1961 = vmatprep.subr.mxu0 0.0
    %1962 = vmatpush2.xpose.msra.mxu0 0.0
    %1963 = vmatprep.subr.mxu0 0.0
    %1964 = vmatpush2.xpose.msra.mxu0 0.0
    %1965 = vmatprep.mubr.f32.mxu0 0.0
    %1966 = vmatmul.mubr.f32.gmra.mxu0 %v1893
    %v1967 = vpop.f32.mrf.mxu0
    %v1968 = vadd.f32 %v72, %v1967
    %v1969 = vpop.f32.mrf.mxu0
    %1970 = vmatprep.mubr.f32.mxu0 0.0
    %1971 = vmatmul.mubr.f32.gmra.mxu0 %v1895
    %v1972 = vpop.f32.mrf.mxu0
    %v1973 = vadd.f32 %v73, %v1972
    %v1974 = vpop.f32.mrf.mxu0
    %1975 = vdwg.mxu0
    %v1976 = vsel %vm266, %v1968, -inf
    %1977 = vmax.xlane.f32.xlu0 %v1976
    %v1978 = vpop.xlane.xlu0 %1977
    %v1979 = vsel %vm266, %v1973, -inf
    %1980 = vmax.xlane.f32.xlu0 %v1979
    %v1981 = vpop.xlane.xlu0 %1980
    %v1982 = vsub.f32 %v1968, %v1978
    %v1983 = vsub.f32 %v1973, %v1981
    %v1984 = vmul.f32 %v1982, 1.442695
    %v1985 = vpow.pop %v1984
    %v1986 = vmul.f32 %v1983, 1.442695
    %v1987 = vpow.pop %v1986
    %v1988 = vsel %vm266, %v1985, 0.0
    %1989 = vadd.xlane.f32.xlu0 %v1988
    %v1990 = vpop.xlane.xlu0 %1989
    %v1991 = vsel %vm266, %v1987, 0.0
    %1992 = vadd.xlane.f32.xlu0 %v1991
    %v1993 = vpop.xlane.xlu0 %1992
    %v1994 = vrcp.pop %v1990
    %v1995 = vrcp.pop %v1993
    %v1996 = vmul.f32 %v1985, %v1994
    %v1997 = vmul.f32 %v1987, %v1995
    %1998 = vrot.lane.b32.xlu0 %v1675, 56
    %v1999 = vpop.permute.xlu0 %1998
    %2000 = vrot.lane.b32.xlu0 %v1680, 56
    %v2001 = vpop.permute.xlu0 %2000
    %v2005 = vsel %vm266, %v1996, 0
    %v2008 = vsel %vm266, %v1997, 0
    %2010 = vmatprep.subr.mxu0 0.0
    %2011 = vmatpush1.msra.mxu0 0.0
    %2012 = vmatprep.subr.mxu0 0.0
    %2013 = vmatpush1.msra.mxu0 0.0
    %2014 = vmatprep.subr.mxu0 0.0
    %2015 = vmatpush1.msra.mxu0 0.0
    %2016 = vmatprep.subr.mxu0 0.0
    %2017 = vmatpush1.msra.mxu0 0.0
    %2018 = vmatprep.subr.mxu0 0.0
    %2019 = vmatpush1.msra.mxu0 0.0
    %2020 = vmatprep.subr.mxu0 0.0
    %2021 = vmatpush1.msra.mxu0 0.0
    %2022 = vmatprep.subr.mxu0 0.0
    %2023 = vmatpush1.msra.mxu0 0.0
    %2024 = vmatprep.subr.mxu0 0.0
    %2025 = vmatpush1.msra.mxu0 0.0
    %2026 = vmatprep.subr.mxu0 0.0
    %2027 = vmatpush1.msra.mxu0 0.0
    %2028 = vmatprep.subr.mxu0 0.0
    %2029 = vmatpush1.msra.mxu0 0.0
    %2030 = vmatprep.subr.mxu0 0.0
    %2031 = vmatpush1.msra.mxu0 0.0
    %2032 = vmatprep.subr.mxu0 0.0
    %2033 = vmatpush1.msra.mxu0 0.0
    %2034 = vmatprep.subr.mxu0 0.0
    %2035 = vmatpush1.msra.mxu0 0.0
    %2036 = vmatprep.subr.mxu0 0.0
    %2037 = vmatpush1.msra.mxu0 0.0
    %2038 = vmatprep.subr.mxu0 0.0
    %2039 = vmatpush1.msra.mxu0 %v2001
    %2040 = vmatprep.subr.mxu0 0.0
    %2041 = vmatpush1.msra.mxu0 %v1999
    %2042 = vmatprep.subr.mxu0 0.0
    %2043 = vmatpush2.msra.mxu0 0.0
    %2044 = vmatprep.subr.mxu0 0.0
    %2045 = vmatpush2.msra.mxu0 0.0
    %2046 = vmatprep.subr.mxu0 0.0
    %2047 = vmatpush2.msra.mxu0 0.0
    %2048 = vmatprep.subr.mxu0 0.0
    %2049 = vmatpush2.msra.mxu0 0.0
    %2050 = vmatprep.subr.mxu0 0.0
    %2051 = vmatpush2.msra.mxu0 0.0
    %2052 = vmatprep.subr.mxu0 0.0
    %2053 = vmatpush2.msra.mxu0 0.0
    %2054 = vmatprep.subr.mxu0 0.0
    %2055 = vmatpush2.msra.mxu0 0.0
    %2056 = vmatprep.subr.mxu0 0.0
    %2057 = vmatpush2.msra.mxu0 0.0
    %2058 = vmatprep.subr.mxu0 0.0
    %2059 = vmatpush2.msra.mxu0 0.0
    %2060 = vmatprep.subr.mxu0 0.0
    %2061 = vmatpush2.msra.mxu0 0.0
    %2062 = vmatprep.subr.mxu0 0.0
    %2063 = vmatpush2.msra.mxu0 0.0
    %2064 = vmatprep.subr.mxu0 0.0
    %2065 = vmatpush2.msra.mxu0 0.0
    %2066 = vmatprep.subr.mxu0 0.0
    %2067 = vmatpush2.msra.mxu0 0.0
    %2068 = vmatprep.subr.mxu0 0.0
    %2069 = vmatpush2.msra.mxu0 0.0
    %2070 = vmatprep.subr.mxu0 0.0
    %2071 = vmatpush2.msra.mxu0 0.0
    %2072 = vmatprep.subr.mxu0 0.0
    %2073 = vmatpush2.msra.mxu0 0.0
    %2074 = vmatprep.mubr.f32.mxu0 0.0
    %2075 = vmatmul.mubr.f32.gmra.mxu0 %v2005
    %v2076 = vpop.f32.mrf.mxu0
    %v2077 = vadd.f32 0.0, %v2076
    %v2078 = vpop.f32.mrf.mxu0
    %2079 = vmatprep.mubr.f32.mxu0 0.0
    %2080 = vmatmul.mubr.f32.gmra.mxu0 %v2008
    %v2081 = vpop.f32.mrf.mxu0
    %v2082 = vadd.f32 0.0, %v2081
    %v2083 = vpop.f32.mrf.mxu0
    %2084 = vdwg.mxu0
    %v2086 = vsel %vm180, %v2077, 0
    %v2089 = vsel %vm180, %v2082, 0
    %2091 = vmatprep.subr.mxu0 0.0
    %2092 = vmatpush1.msra.mxu0 0.0
    %2093 = vmatprep.subr.mxu0 0.0
    %2094 = vmatpush1.msra.mxu0 0.0
    %2095 = vmatprep.subr.mxu0 0.0
    %2096 = vmatpush1.msra.mxu0 0.0
    %2097 = vmatprep.subr.mxu0 0.0
    %2098 = vmatpush1.msra.mxu0 0.0
    %2099 = vmatprep.subr.mxu0 0.0
    %2100 = vmatpush1.msra.mxu0 0.0
    %2101 = vmatprep.subr.mxu0 0.0
    %2102 = vmatpush1.msra.mxu0 0.0
    %2103 = vmatprep.subr.mxu0 0.0
    %2104 = vmatpush1.msra.mxu0 0.0
    %2105 = vmatprep.subr.mxu0 0.0
    %2106 = vmatpush1.msra.mxu0 0.0
    %2107 = vmatprep.subr.mxu0 0.0
    %2108 = vmatpush1.msra.mxu0 0.0
    %2109 = vmatprep.subr.mxu0 0.0
    %2110 = vmatpush1.msra.mxu0 0.0
    %2111 = vmatprep.subr.mxu0 0.0
    %2112 = vmatpush1.msra.mxu0 0.0
    %2113 = vmatprep.subr.mxu0 0.0
    %2114 = vmatpush1.msra.mxu0 0.0
    %2115 = vmatprep.subr.mxu0 0.0
    %2116 = vmatpush1.msra.mxu0 0.0
    %2117 = vmatprep.subr.mxu0 0.0
    %2118 = vmatpush1.msra.mxu0 0.0
    %2119 = vmatprep.subr.mxu0 0.0
    %2120 = vmatpush1.msra.mxu0 0.0
    %2121 = vmatprep.subr.mxu0 0.0
    %2122 = vmatpush1.msra.mxu0 %v1591
    %2123 = vmatprep.subr.mxu0 0.0
    %2124 = vmatpush2.msra.mxu0 0.0
    %2125 = vmatprep.subr.mxu0 0.0
    %2126 = vmatpush2.msra.mxu0 0.0
    %2127 = vmatprep.subr.mxu0 0.0
    %2128 = vmatpush2.msra.mxu0 0.0
    %2129 = vmatprep.subr.mxu0 0.0
    %2130 = vmatpush2.msra.mxu0 0.0
    %2131 = vmatprep.subr.mxu0 0.0
    %2132 = vmatpush2.msra.mxu0 0.0
    %2133 = vmatprep.subr.mxu0 0.0
    %2134 = vmatpush2.msra.mxu0 0.0
    %2135 = vmatprep.subr.mxu0 0.0
    %2136 = vmatpush2.msra.mxu0 0.0
    %2137 = vmatprep.subr.mxu0 0.0
    %2138 = vmatpush2.msra.mxu0 0.0
    %2139 = vmatprep.subr.mxu0 0.0
    %2140 = vmatpush2.msra.mxu0 0.0
    %2141 = vmatprep.subr.mxu0 0.0
    %2142 = vmatpush2.msra.mxu0 0.0
    %2143 = vmatprep.subr.mxu0 0.0
    %2144 = vmatpush2.msra.mxu0 0.0
    %2145 = vmatprep.subr.mxu0 0.0
    %2146 = vmatpush2.msra.mxu0 0.0
    %2147 = vmatprep.subr.mxu0 0.0
    %2148 = vmatpush2.msra.mxu0 0.0
    %2149 = vmatprep.subr.mxu0 0.0
    %2150 = vmatpush2.msra.mxu0 0.0
    %2151 = vmatprep.subr.mxu0 0.0
    %2152 = vmatpush2.msra.mxu0 0.0
    %2153 = vmatprep.subr.mxu0 0.0
    %2154 = vmatpush2.msra.mxu0 0.0
    %2155 = vmatprep.mubr.f32.mxu0 0.0
    %2156 = vmatmul.mubr.f32.gmra.mxu0 %v2086
    %v2157 = vpop.f32.mrf.mxu0
    %v2158 = vadd.f32 0.0, %v2157
    %v2159 = vpop.f32.mrf.mxu0
    %2160 = vmatprep.mubr.f32.mxu0 0.0
    %2161 = vmatmul.mubr.f32.gmra.mxu0 %v2089
    %v2162 = vpop.f32.mrf.mxu0
    %v2163 = vadd.f32 0.0, %v2162
    %v2164 = vpop.f32.mrf.mxu0
    %2165 = vdwg.mxu0
    %v2167 = vsel %vm180, %v1877, 0
    %v2170 = vsel %vm180, %v1882, 0
    %2172 = vmatprep.subr.mxu0 0.0
    %2173 = vmatpush1.msra.mxu0 0.0
    %2174 = vmatprep.subr.mxu0 0.0
    %2175 = vmatpush1.msra.mxu0 0.0
    %2176 = vmatprep.subr.mxu0 0.0
    %2177 = vmatpush1.msra.mxu0 0.0
    %2178 = vmatprep.subr.mxu0 0.0
    %2179 = vmatpush1.msra.mxu0 0.0
    %2180 = vmatprep.subr.mxu0 0.0
    %2181 = vmatpush1.msra.mxu0 0.0
    %2182 = vmatprep.subr.mxu0 0.0
    %2183 = vmatpush1.msra.mxu0 0.0
    %2184 = vmatprep.subr.mxu0 0.0
    %2185 = vmatpush1.msra.mxu0 0.0
    %2186 = vmatprep.subr.mxu0 0.0
    %2187 = vmatpush1.msra.mxu0 0.0
    %2188 = vmatprep.subr.mxu0 0.0
    %2189 = vmatpush1.msra.mxu0 0.0
    %2190 = vmatprep.subr.mxu0 0.0
    %2191 = vmatpush1.msra.mxu0 0.0
    %2192 = vmatprep.subr.mxu0 0.0
    %2193 = vmatpush1.msra.mxu0 0.0
    %2194 = vmatprep.subr.mxu0 0.0
    %2195 = vmatpush1.msra.mxu0 0.0
    %2196 = vmatprep.subr.mxu0 0.0
    %2197 = vmatpush1.msra.mxu0 0.0
    %2198 = vmatprep.subr.mxu0 0.0
    %2199 = vmatpush1.msra.mxu0 0.0
    %2200 = vmatprep.subr.mxu0 0.0
    %2201 = vmatpush1.msra.mxu0 0.0
    %2202 = vmatprep.subr.mxu0 0.0
    %2203 = vmatpush1.msra.mxu0 %v1590
    %2204 = vmatprep.subr.mxu0 0.0
    %2205 = vmatpush2.msra.mxu0 0.0
    %2206 = vmatprep.subr.mxu0 0.0
    %2207 = vmatpush2.msra.mxu0 0.0
    %2208 = vmatprep.subr.mxu0 0.0
    %2209 = vmatpush2.msra.mxu0 0.0
    %2210 = vmatprep.subr.mxu0 0.0
    %2211 = vmatpush2.msra.mxu0 0.0
    %2212 = vmatprep.subr.mxu0 0.0
    %2213 = vmatpush2.msra.mxu0 0.0
    %2214 = vmatprep.subr.mxu0 0.0
    %2215 = vmatpush2.msra.mxu0 0.0
    %2216 = vmatprep.subr.mxu0 0.0
    %2217 = vmatpush2.msra.mxu0 0.0
    %2218 = vmatprep.subr.mxu0 0.0
    %2219 = vmatpush2.msra.mxu0 0.0
    %2220 = vmatprep.subr.mxu0 0.0
    %2221 = vmatpush2.msra.mxu0 0.0
    %2222 = vmatprep.subr.mxu0 0.0
    %2223 = vmatpush2.msra.mxu0 0.0
    %2224 = vmatprep.subr.mxu0 0.0
    %2225 = vmatpush2.msra.mxu0 0.0
    %2226 = vmatprep.subr.mxu0 0.0
    %2227 = vmatpush2.msra.mxu0 0.0
    %2228 = vmatprep.subr.mxu0 0.0
    %2229 = vmatpush2.msra.mxu0 0.0
    %2230 = vmatprep.subr.mxu0 0.0
    %2231 = vmatpush2.msra.mxu0 0.0
    %2232 = vmatprep.subr.mxu0 0.0
    %2233 = vmatpush2.msra.mxu0 0.0
    %2234 = vmatprep.subr.mxu0 0.0
    %2235 = vmatpush2.msra.mxu0 0.0
    %2236 = vmatprep.mubr.f32.mxu0 0.0
    %2237 = vmatmul.mubr.f32.gmra.mxu0 %v2167
    %v2238 = vpop.f32.mrf.mxu0
    %v2239 = vadd.f32 %v2158, %v2238
    %v2240 = vpop.f32.mrf.mxu0
    %2241 = vmatprep.mubr.f32.mxu0 0.0
    %2242 = vmatmul.mubr.f32.gmra.mxu0 %v2170
    %v2243 = vpop.f32.mrf.mxu0
    %v2244 = vadd.f32 %v2163, %v2243
    %v2245 = vpop.f32.mrf.mxu0
    %2246 = vdwg.mxu0
    %2247 = vrot.lane.b32.xlu0 %v1683, 112
    %v2248 = vpop.permute.xlu0 %2247
    %2249 = vrot.lane.b32.xlu0 %v1684, 112
    %v2250 = vpop.permute.xlu0 %2249
    %2251 = vrot.lane.b32.xlu0 %v1675, 80
    %v2252 = vpop.permute.xlu0 %2251
    %2253 = vrot.lane.b32.xlu0 %v1680, 80
    %v2254 = vpop.permute.xlu0 %2253
    %v2255 = vsel %vm180, %v2248, 0
    %v2257 = vsel %vm180, %v2250, 0
    %v2259 = vsel %vm180, %v2252, 0
    %v2261 = vsel %vm180, %v2254, 0
    %2263 = vmatprep.subr.mxu0 0.0
    %2264 = vmatpush1.xpose.msra.mxu0 0.0
    %2265 = vmatprep.subr.mxu0 0.0
    %2266 = vmatpush1.xpose.msra.mxu0 0.0
    %2267 = vmatprep.subr.mxu0 0.0
    %2268 = vmatpush1.xpose.msra.mxu0 0.0
    %2269 = vmatprep.subr.mxu0 0.0
    %2270 = vmatpush1.xpose.msra.mxu0 0.0
    %2271 = vmatprep.subr.mxu0 0.0
    %2272 = vmatpush1.xpose.msra.mxu0 0.0
    %2273 = vmatprep.subr.mxu0 0.0
    %2274 = vmatpush1.xpose.msra.mxu0 0.0
    %2275 = vmatprep.subr.mxu0 0.0
    %2276 = vmatpush1.xpose.msra.mxu0 0.0
    %2277 = vmatprep.subr.mxu0 0.0
    %2278 = vmatpush1.xpose.msra.mxu0 0.0
    %2279 = vmatprep.subr.mxu0 0.0
    %2280 = vmatpush1.xpose.msra.mxu0 0.0
    %2281 = vmatprep.subr.mxu0 0.0
    %2282 = vmatpush1.xpose.msra.mxu0 0.0
    %2283 = vmatprep.subr.mxu0 0.0
    %2284 = vmatpush1.xpose.msra.mxu0 0.0
    %2285 = vmatprep.subr.mxu0 0.0
    %2286 = vmatpush1.xpose.msra.mxu0 0.0
    %2287 = vmatprep.subr.mxu0 0.0
    %2288 = vmatpush1.xpose.msra.mxu0 0.0
    %2289 = vmatprep.subr.mxu0 0.0
    %2290 = vmatpush1.xpose.msra.mxu0 0.0
    %2291 = vmatprep.subr.mxu0 0.0
    %2292 = vmatpush1.xpose.msra.mxu0 %v2261
    %2293 = vmatprep.subr.mxu0 0.0
    %2294 = vmatpush1.xpose.msra.mxu0 %v2259
    %2295 = vmatprep.subr.mxu0 0.0
    %2296 = vmatpush2.xpose.msra.mxu0 0.0
    %2297 = vmatprep.subr.mxu0 0.0
    %2298 = vmatpush2.xpose.msra.mxu0 0.0
    %2299 = vmatprep.subr.mxu0 0.0
    %2300 = vmatpush2.xpose.msra.mxu0 0.0
    %2301 = vmatprep.subr.mxu0 0.0
    %2302 = vmatpush2.xpose.msra.mxu0 0.0
    %2303 = vmatprep.subr.mxu0 0.0
    %2304 = vmatpush2.xpose.msra.mxu0 0.0
    %2305 = vmatprep.subr.mxu0 0.0
    %2306 = vmatpush2.xpose.msra.mxu0 0.0
    %2307 = vmatprep.subr.mxu0 0.0
    %2308 = vmatpush2.xpose.msra.mxu0 0.0
    %2309 = vmatprep.subr.mxu0 0.0
    %2310 = vmatpush2.xpose.msra.mxu0 0.0
    %2311 = vmatprep.subr.mxu0 0.0
    %2312 = vmatpush2.xpose.msra.mxu0 0.0
    %2313 = vmatprep.subr.mxu0 0.0
    %2314 = vmatpush2.xpose.msra.mxu0 0.0
    %2315 = vmatprep.subr.mxu0 0.0
    %2316 = vmatpush2.xpose.msra.mxu0 0.0
    %2317 = vmatprep.subr.mxu0 0.0
    %2318 = vmatpush2.xpose.msra.mxu0 0.0
    %2319 = vmatprep.subr.mxu0 0.0
    %2320 = vmatpush2.xpose.msra.mxu0 0.0
    %2321 = vmatprep.subr.mxu0 0.0
    %2322 = vmatpush2.xpose.msra.mxu0 0.0
    %2323 = vmatprep.subr.mxu0 0.0
    %2324 = vmatpush2.xpose.msra.mxu0 0.0
    %2325 = vmatprep.subr.mxu0 0.0
    %2326 = vmatpush2.xpose.msra.mxu0 0.0
    %2327 = vmatprep.mubr.f32.mxu0 0.0
    %2328 = vmatmul.mubr.f32.gmra.mxu0 %v2255
    %v2329 = vpop.f32.mrf.mxu0
    %v2330 = vadd.f32 %v72, %v2329
    %v2331 = vpop.f32.mrf.mxu0
    %2332 = vmatprep.mubr.f32.mxu0 0.0
    %2333 = vmatmul.mubr.f32.gmra.mxu0 %v2257
    %v2334 = vpop.f32.mrf.mxu0
    %v2335 = vadd.f32 %v73, %v2334
    %v2336 = vpop.f32.mrf.mxu0
    %2337 = vdwg.mxu0
    %v2338 = vsel %vm266, %v2330, -inf
    %2339 = vmax.xlane.f32.xlu0 %v2338
    %v2340 = vpop.xlane.xlu0 %2339
    %v2341 = vsel %vm266, %v2335, -inf
    %2342 = vmax.xlane.f32.xlu0 %v2341
    %v2343 = vpop.xlane.xlu0 %2342
    %v2344 = vsub.f32 %v2330, %v2340
    %v2345 = vsub.f32 %v2335, %v2343
    %v2346 = vmul.f32 %v2344, 1.442695
    %v2347 = vpow.pop %v2346
    %v2348 = vmul.f32 %v2345, 1.442695
    %v2349 = vpow.pop %v2348
    %v2350 = vsel %vm266, %v2347, 0.0
    %2351 = vadd.xlane.f32.xlu0 %v2350
    %v2352 = vpop.xlane.xlu0 %2351
    %v2353 = vsel %vm266, %v2349, 0.0
    %2354 = vadd.xlane.f32.xlu0 %v2353
    %v2355 = vpop.xlane.xlu0 %2354
    %v2356 = vrcp.pop %v2352
    %v2357 = vrcp.pop %v2355
    %v2358 = vmul.f32 %v2347, %v2356
    %v2359 = vmul.f32 %v2349, %v2357
    %2360 = vrot.lane.b32.xlu0 %v1675, 48
    %v2361 = vpop.permute.xlu0 %2360
    %2362 = vrot.lane.b32.xlu0 %v1680, 48
    %v2363 = vpop.permute.xlu0 %2362
    %v2367 = vsel %vm266, %v2358, 0
    %v2370 = vsel %vm266, %v2359, 0
    %2372 = vmatprep.subr.mxu0 0.0
    %2373 = vmatpush1.msra.mxu0 0.0
    %2374 = vmatprep.subr.mxu0 0.0
    %2375 = vmatpush1.msra.mxu0 0.0
    %2376 = vmatprep.subr.mxu0 0.0
    %2377 = vmatpush1.msra.mxu0 0.0
    %2378 = vmatprep.subr.mxu0 0.0
    %2379 = vmatpush1.msra.mxu0 0.0
    %2380 = vmatprep.subr.mxu0 0.0
    %2381 = vmatpush1.msra.mxu0 0.0
    %2382 = vmatprep.subr.mxu0 0.0
    %2383 = vmatpush1.msra.mxu0 0.0
    %2384 = vmatprep.subr.mxu0 0.0
    %2385 = vmatpush1.msra.mxu0 0.0
    %2386 = vmatprep.subr.mxu0 0.0
    %2387 = vmatpush1.msra.mxu0 0.0
    %2388 = vmatprep.subr.mxu0 0.0
    %2389 = vmatpush1.msra.mxu0 0.0
    %2390 = vmatprep.subr.mxu0 0.0
    %2391 = vmatpush1.msra.mxu0 0.0
    %2392 = vmatprep.subr.mxu0 0.0
    %2393 = vmatpush1.msra.mxu0 0.0
    %2394 = vmatprep.subr.mxu0 0.0
    %2395 = vmatpush1.msra.mxu0 0.0
    %2396 = vmatprep.subr.mxu0 0.0
    %2397 = vmatpush1.msra.mxu0 0.0
    %2398 = vmatprep.subr.mxu0 0.0
    %2399 = vmatpush1.msra.mxu0 0.0
    %2400 = vmatprep.subr.mxu0 0.0
    %2401 = vmatpush1.msra.mxu0 %v2363
    %2402 = vmatprep.subr.mxu0 0.0
    %2403 = vmatpush1.msra.mxu0 %v2361
    %2404 = vmatprep.subr.mxu0 0.0
    %2405 = vmatpush2.msra.mxu0 0.0
    %2406 = vmatprep.subr.mxu0 0.0
    %2407 = vmatpush2.msra.mxu0 0.0
    %2408 = vmatprep.subr.mxu0 0.0
    %2409 = vmatpush2.msra.mxu0 0.0
    %2410 = vmatprep.subr.mxu0 0.0
    %2411 = vmatpush2.msra.mxu0 0.0
    %2412 = vmatprep.subr.mxu0 0.0
    %2413 = vmatpush2.msra.mxu0 0.0
    %2414 = vmatprep.subr.mxu0 0.0
    %2415 = vmatpush2.msra.mxu0 0.0
    %2416 = vmatprep.subr.mxu0 0.0
    %2417 = vmatpush2.msra.mxu0 0.0
    %2418 = vmatprep.subr.mxu0 0.0
    %2419 = vmatpush2.msra.mxu0 0.0
    %2420 = vmatprep.subr.mxu0 0.0
    %2421 = vmatpush2.msra.mxu0 0.0
    %2422 = vmatprep.subr.mxu0 0.0
    %2423 = vmatpush2.msra.mxu0 0.0
    %2424 = vmatprep.subr.mxu0 0.0
    %2425 = vmatpush2.msra.mxu0 0.0
    %2426 = vmatprep.subr.mxu0 0.0
    %2427 = vmatpush2.msra.mxu0 0.0
    %2428 = vmatprep.subr.mxu0 0.0
    %2429 = vmatpush2.msra.mxu0 0.0
    %2430 = vmatprep.subr.mxu0 0.0
    %2431 = vmatpush2.msra.mxu0 0.0
    %2432 = vmatprep.subr.mxu0 0.0
    %2433 = vmatpush2.msra.mxu0 0.0
    %2434 = vmatprep.subr.mxu0 0.0
    %2435 = vmatpush2.msra.mxu0 0.0
    %2436 = vmatprep.mubr.f32.mxu0 0.0
    %2437 = vmatmul.mubr.f32.gmra.mxu0 %v2367
    %v2438 = vpop.f32.mrf.mxu0
    %v2439 = vadd.f32 0.0, %v2438
    %v2440 = vpop.f32.mrf.mxu0
    %2441 = vmatprep.mubr.f32.mxu0 0.0
    %2442 = vmatmul.mubr.f32.gmra.mxu0 %v2370
    %v2443 = vpop.f32.mrf.mxu0
    %v2444 = vadd.f32 0.0, %v2443
    %v2445 = vpop.f32.mrf.mxu0
    %2446 = vdwg.mxu0
    %v2448 = vsel %vm180, %v2439, 0
    %v2451 = vsel %vm180, %v2444, 0
    %2453 = vmatprep.subr.mxu0 0.0
    %2454 = vmatpush1.msra.mxu0 0.0
    %2455 = vmatprep.subr.mxu0 0.0
    %2456 = vmatpush1.msra.mxu0 0.0
    %2457 = vmatprep.subr.mxu0 0.0
    %2458 = vmatpush1.msra.mxu0 0.0
    %2459 = vmatprep.subr.mxu0 0.0
    %2460 = vmatpush1.msra.mxu0 0.0
    %2461 = vmatprep.subr.mxu0 0.0
    %2462 = vmatpush1.msra.mxu0 0.0
    %2463 = vmatprep.subr.mxu0 0.0
    %2464 = vmatpush1.msra.mxu0 0.0
    %2465 = vmatprep.subr.mxu0 0.0
    %2466 = vmatpush1.msra.mxu0 0.0
    %2467 = vmatprep.subr.mxu0 0.0
    %2468 = vmatpush1.msra.mxu0 0.0
    %2469 = vmatprep.subr.mxu0 0.0
    %2470 = vmatpush1.msra.mxu0 0.0
    %2471 = vmatprep.subr.mxu0 0.0
    %2472 = vmatpush1.msra.mxu0 0.0
    %2473 = vmatprep.subr.mxu0 0.0
    %2474 = vmatpush1.msra.mxu0 0.0
    %2475 = vmatprep.subr.mxu0 0.0
    %2476 = vmatpush1.msra.mxu0 0.0
    %2477 = vmatprep.subr.mxu0 0.0
    %2478 = vmatpush1.msra.mxu0 0.0
    %2479 = vmatprep.subr.mxu0 0.0
    %2480 = vmatpush1.msra.mxu0 0.0
    %2481 = vmatprep.subr.mxu0 0.0
    %2482 = vmatpush1.msra.mxu0 0.0
    %2483 = vmatprep.subr.mxu0 0.0
    %2484 = vmatpush1.msra.mxu0 %v1592
    %2485 = vmatprep.subr.mxu0 0.0
    %2486 = vmatpush2.msra.mxu0 0.0
    %2487 = vmatprep.subr.mxu0 0.0
    %2488 = vmatpush2.msra.mxu0 0.0
    %2489 = vmatprep.subr.mxu0 0.0
    %2490 = vmatpush2.msra.mxu0 0.0
    %2491 = vmatprep.subr.mxu0 0.0
    %2492 = vmatpush2.msra.mxu0 0.0
    %2493 = vmatprep.subr.mxu0 0.0
    %2494 = vmatpush2.msra.mxu0 0.0
    %2495 = vmatprep.subr.mxu0 0.0
    %2496 = vmatpush2.msra.mxu0 0.0
    %2497 = vmatprep.subr.mxu0 0.0
    %2498 = vmatpush2.msra.mxu0 0.0
    %2499 = vmatprep.subr.mxu0 0.0
    %2500 = vmatpush2.msra.mxu0 0.0
    %2501 = vmatprep.subr.mxu0 0.0
    %2502 = vmatpush2.msra.mxu0 0.0
    %2503 = vmatprep.subr.mxu0 0.0
    %2504 = vmatpush2.msra.mxu0 0.0
    %2505 = vmatprep.subr.mxu0 0.0
    %2506 = vmatpush2.msra.mxu0 0.0
    %2507 = vmatprep.subr.mxu0 0.0
    %2508 = vmatpush2.msra.mxu0 0.0
    %2509 = vmatprep.subr.mxu0 0.0
    %2510 = vmatpush2.msra.mxu0 0.0
    %2511 = vmatprep.subr.mxu0 0.0
    %2512 = vmatpush2.msra.mxu0 0.0
    %2513 = vmatprep.subr.mxu0 0.0
    %2514 = vmatpush2.msra.mxu0 0.0
    %2515 = vmatprep.subr.mxu0 0.0
    %2516 = vmatpush2.msra.mxu0 0.0
    %2517 = vmatprep.mubr.f32.mxu0 0.0
    %2518 = vmatmul.mubr.f32.gmra.mxu0 %v2448
    %v2519 = vpop.f32.mrf.mxu0
    %v2520 = vadd.f32 0.0, %v2519
    %v2521 = vpop.f32.mrf.mxu0
    %2522 = vmatprep.mubr.f32.mxu0 0.0
    %2523 = vmatmul.mubr.f32.gmra.mxu0 %v2451
    %v2524 = vpop.f32.mrf.mxu0
    %v2525 = vadd.f32 0.0, %v2524
    %v2526 = vpop.f32.mrf.mxu0
    %2527 = vdwg.mxu0
    %v2528 = vadd.f32 %v2239, %v2520
    %v2529 = vadd.f32 %v2244, %v2525
    %2530 = vrot.lane.b32.xlu0 %v1683, 104
    %v2531 = vpop.permute.xlu0 %2530
    %2532 = vrot.lane.b32.xlu0 %v1684, 104
    %v2533 = vpop.permute.xlu0 %2532
    %2534 = vrot.lane.b32.xlu0 %v1675, 72
    %v2535 = vpop.permute.xlu0 %2534
    %2536 = vrot.lane.b32.xlu0 %v1680, 72
    %v2537 = vpop.permute.xlu0 %2536
    %v2538 = vsel %vm180, %v2531, 0
    %v2540 = vsel %vm180, %v2533, 0
    %v2542 = vsel %vm180, %v2535, 0
    %v2544 = vsel %vm180, %v2537, 0
    %2546 = vmatprep.subr.mxu0 0.0
    %2547 = vmatpush1.xpose.msra.mxu0 0.0
    %2548 = vmatprep.subr.mxu0 0.0
    %2549 = vmatpush1.xpose.msra.mxu0 0.0
    %2550 = vmatprep.subr.mxu0 0.0
    %2551 = vmatpush1.xpose.msra.mxu0 0.0
    %2552 = vmatprep.subr.mxu0 0.0
    %2553 = vmatpush1.xpose.msra.mxu0 0.0
    %2554 = vmatprep.subr.mxu0 0.0
    %2555 = vmatpush1.xpose.msra.mxu0 0.0
    %2556 = vmatprep.subr.mxu0 0.0
    %2557 = vmatpush1.xpose.msra.mxu0 0.0
    %2558 = vmatprep.subr.mxu0 0.0
    %2559 = vmatpush1.xpose.msra.mxu0 0.0
    %2560 = vmatprep.subr.mxu0 0.0
    %2561 = vmatpush1.xpose.msra.mxu0 0.0
    %2562 = vmatprep.subr.mxu0 0.0
    %2563 = vmatpush1.xpose.msra.mxu0 0.0
    %2564 = vmatprep.subr.mxu0 0.0
    %2565 = vmatpush1.xpose.msra.mxu0 0.0
    %2566 = vmatprep.subr.mxu0 0.0
    %2567 = vmatpush1.xpose.msra.mxu0 0.0
    %2568 = vmatprep.subr.mxu0 0.0
    %2569 = vmatpush1.xpose.msra.mxu0 0.0
    %2570 = vmatprep.subr.mxu0 0.0
    %2571 = vmatpush1.xpose.msra.mxu0 0.0
    %2572 = vmatprep.subr.mxu0 0.0
    %2573 = vmatpush1.xpose.msra.mxu0 0.0
    %2574 = vmatprep.subr.mxu0 0.0
    %2575 = vmatpush1.xpose.msra.mxu0 %v2544
    %2576 = vmatprep.subr.mxu0 0.0
    %2577 = vmatpush1.xpose.msra.mxu0 %v2542
    %2578 = vmatprep.subr.mxu0 0.0
    %2579 = vmatpush2.xpose.msra.mxu0 0.0
    %2580 = vmatprep.subr.mxu0 0.0
    %2581 = vmatpush2.xpose.msra.mxu0 0.0
    %2582 = vmatprep.subr.mxu0 0.0
    %2583 = vmatpush2.xpose.msra.mxu0 0.0
    %2584 = vmatprep.subr.mxu0 0.0
    %2585 = vmatpush2.xpose.msra.mxu0 0.0
    %2586 = vmatprep.subr.mxu0 0.0
    %2587 = vmatpush2.xpose.msra.mxu0 0.0
    %2588 = vmatprep.subr.mxu0 0.0
    %2589 = vmatpush2.xpose.msra.mxu0 0.0
    %2590 = vmatprep.subr.mxu0 0.0
    %2591 = vmatpush2.xpose.msra.mxu0 0.0
    %2592 = vmatprep.subr.mxu0 0.0
    %2593 = vmatpush2.xpose.msra.mxu0 0.0
    %2594 = vmatprep.subr.mxu0 0.0
    %2595 = vmatpush2.xpose.msra.mxu0 0.0
    %2596 = vmatprep.subr.mxu0 0.0
    %2597 = vmatpush2.xpose.msra.mxu0 0.0
    %2598 = vmatprep.subr.mxu0 0.0
    %2599 = vmatpush2.xpose.msra.mxu0 0.0
    %2600 = vmatprep.subr.mxu0 0.0
    %2601 = vmatpush2.xpose.msra.mxu0 0.0
    %2602 = vmatprep.subr.mxu0 0.0
    %2603 = vmatpush2.xpose.msra.mxu0 0.0
    %2604 = vmatprep.subr.mxu0 0.0
    %2605 = vmatpush2.xpose.msra.mxu0 0.0
    %2606 = vmatprep.subr.mxu0 0.0
    %2607 = vmatpush2.xpose.msra.mxu0 0.0
    %2608 = vmatprep.subr.mxu0 0.0
    %2609 = vmatpush2.xpose.msra.mxu0 0.0
    %2610 = vmatprep.mubr.f32.mxu0 0.0
    %2611 = vmatmul.mubr.f32.gmra.mxu0 %v2538
    %v2612 = vpop.f32.mrf.mxu0
    %v2613 = vadd.f32 %v72, %v2612
    %v2614 = vpop.f32.mrf.mxu0
    %2615 = vmatprep.mubr.f32.mxu0 0.0
    %2616 = vmatmul.mubr.f32.gmra.mxu0 %v2540
    %v2617 = vpop.f32.mrf.mxu0
    %v2618 = vadd.f32 %v73, %v2617
    %v2619 = vpop.f32.mrf.mxu0
    %2620 = vdwg.mxu0
    %v2621 = vsel %vm266, %v2613, -inf
    %2622 = vmax.xlane.f32.xlu0 %v2621
    %v2623 = vpop.xlane.xlu0 %2622
    %v2624 = vsel %vm266, %v2618, -inf
    %2625 = vmax.xlane.f32.xlu0 %v2624
    %v2626 = vpop.xlane.xlu0 %2625
    %v2627 = vsub.f32 %v2613, %v2623
    %v2628 = vsub.f32 %v2618, %v2626
    %v2629 = vmul.f32 %v2627, 1.442695
    %v2630 = vpow.pop %v2629
    %v2631 = vmul.f32 %v2628, 1.442695
    %v2632 = vpow.pop %v2631
    %v2633 = vsel %vm266, %v2630, 0.0
    %2634 = vadd.xlane.f32.xlu0 %v2633
    %v2635 = vpop.xlane.xlu0 %2634
    %v2636 = vsel %vm266, %v2632, 0.0
    %2637 = vadd.xlane.f32.xlu0 %v2636
    %v2638 = vpop.xlane.xlu0 %2637
    %v2639 = vrcp.pop %v2635
    %v2640 = vrcp.pop %v2638
    %v2641 = vmul.f32 %v2630, %v2639
    %v2642 = vmul.f32 %v2632, %v2640
    %2643 = vrot.lane.b32.xlu0 %v1675, 40
    %v2644 = vpop.permute.xlu0 %2643
    %2645 = vrot.lane.b32.xlu0 %v1680, 40
    %v2646 = vpop.permute.xlu0 %2645
    %v2650 = vsel %vm266, %v2641, 0
    %v2653 = vsel %vm266, %v2642, 0
    %2655 = vmatprep.subr.mxu0 0.0
    %2656 = vmatpush1.msra.mxu0 0.0
    %2657 = vmatprep.subr.mxu0 0.0
    %2658 = vmatpush1.msra.mxu0 0.0
    %2659 = vmatprep.subr.mxu0 0.0
    %2660 = vmatpush1.msra.mxu0 0.0
    %2661 = vmatprep.subr.mxu0 0.0
    %2662 = vmatpush1.msra.mxu0 0.0
    %2663 = vmatprep.subr.mxu0 0.0
    %2664 = vmatpush1.msra.mxu0 0.0
    %2665 = vmatprep.subr.mxu0 0.0
    %2666 = vmatpush1.msra.mxu0 0.0
    %2667 = vmatprep.subr.mxu0 0.0
    %2668 = vmatpush1.msra.mxu0 0.0
    %2669 = vmatprep.subr.mxu0 0.0
    %2670 = vmatpush1.msra.mxu0 0.0
    %2671 = vmatprep.subr.mxu0 0.0
    %2672 = vmatpush1.msra.mxu0 0.0
    %2673 = vmatprep.subr.mxu0 0.0
    %2674 = vmatpush1.msra.mxu0 0.0
    %2675 = vmatprep.subr.mxu0 0.0
    %2676 = vmatpush1.msra.mxu0 0.0
    %2677 = vmatprep.subr.mxu0 0.0
    %2678 = vmatpush1.msra.mxu0 0.0
    %2679 = vmatprep.subr.mxu0 0.0
    %2680 = vmatpush1.msra.mxu0 0.0
    %2681 = vmatprep.subr.mxu0 0.0
    %2682 = vmatpush1.msra.mxu0 0.0
    %2683 = vmatprep.subr.mxu0 0.0
    %2684 = vmatpush1.msra.mxu0 %v2646
    %2685 = vmatprep.subr.mxu0 0.0
    %2686 = vmatpush1.msra.mxu0 %v2644
    %2687 = vmatprep.subr.mxu0 0.0
    %2688 = vmatpush2.msra.mxu0 0.0
    %2689 = vmatprep.subr.mxu0 0.0
    %2690 = vmatpush2.msra.mxu0 0.0
    %2691 = vmatprep.subr.mxu0 0.0
    %2692 = vmatpush2.msra.mxu0 0.0
    %2693 = vmatprep.subr.mxu0 0.0
    %2694 = vmatpush2.msra.mxu0 0.0
    %2695 = vmatprep.subr.mxu0 0.0
    %2696 = vmatpush2.msra.mxu0 0.0
    %2697 = vmatprep.subr.mxu0 0.0
    %2698 = vmatpush2.msra.mxu0 0.0
    %2699 = vmatprep.subr.mxu0 0.0
    %2700 = vmatpush2.msra.mxu0 0.0
    %2701 = vmatprep.subr.mxu0 0.0
    %2702 = vmatpush2.msra.mxu0 0.0
    %2703 = vmatprep.subr.mxu0 0.0
    %2704 = vmatpush2.msra.mxu0 0.0
    %2705 = vmatprep.subr.mxu0 0.0
    %2706 = vmatpush2.msra.mxu0 0.0
    %2707 = vmatprep.subr.mxu0 0.0
    %2708 = vmatpush2.msra.mxu0 0.0
    %2709 = vmatprep.subr.mxu0 0.0
    %2710 = vmatpush2.msra.mxu0 0.0
    %2711 = vmatprep.subr.mxu0 0.0
    %2712 = vmatpush2.msra.mxu0 0.0
    %2713 = vmatprep.subr.mxu0 0.0
    %2714 = vmatpush2.msra.mxu0 0.0
    %2715 = vmatprep.subr.mxu0 0.0
    %2716 = vmatpush2.msra.mxu0 0.0
    %2717 = vmatprep.subr.mxu0 0.0
    %2718 = vmatpush2.msra.mxu0 0.0
    %2719 = vmatprep.mubr.f32.mxu0 0.0
    %2720 = vmatmul.mubr.f32.gmra.mxu0 %v2650
    %v2721 = vpop.f32.mrf.mxu0
    %v2722 = vadd.f32 0.0, %v2721
    %v2723 = vpop.f32.mrf.mxu0
    %2724 = vmatprep.mubr.f32.mxu0 0.0
    %2725 = vmatmul.mubr.f32.gmra.mxu0 %v2653
    %v2726 = vpop.f32.mrf.mxu0
    %v2727 = vadd.f32 0.0, %v2726
    %v2728 = vpop.f32.mrf.mxu0
    %2729 = vdwg.mxu0
    %v2731 = vsel %vm180, %v2722, 0
    %v2734 = vsel %vm180, %v2727, 0
    %2736 = vmatprep.subr.mxu0 0.0
    %2737 = vmatpush1.msra.mxu0 0.0
    %2738 = vmatprep.subr.mxu0 0.0
    %2739 = vmatpush1.msra.mxu0 0.0
    %2740 = vmatprep.subr.mxu0 0.0
    %2741 = vmatpush1.msra.mxu0 0.0
    %2742 = vmatprep.subr.mxu0 0.0
    %2743 = vmatpush1.msra.mxu0 0.0
    %2744 = vmatprep.subr.mxu0 0.0
    %2745 = vmatpush1.msra.mxu0 0.0
    %2746 = vmatprep.subr.mxu0 0.0
    %2747 = vmatpush1.msra.mxu0 0.0
    %2748 = vmatprep.subr.mxu0 0.0
    %2749 = vmatpush1.msra.mxu0 0.0
    %2750 = vmatprep.subr.mxu0 0.0
    %2751 = vmatpush1.msra.mxu0 0.0
    %2752 = vmatprep.subr.mxu0 0.0
    %2753 = vmatpush1.msra.mxu0 0.0
    %2754 = vmatprep.subr.mxu0 0.0
    %2755 = vmatpush1.msra.mxu0 0.0
    %2756 = vmatprep.subr.mxu0 0.0
    %2757 = vmatpush1.msra.mxu0 0.0
    %2758 = vmatprep.subr.mxu0 0.0
    %2759 = vmatpush1.msra.mxu0 0.0
    %2760 = vmatprep.subr.mxu0 0.0
    %2761 = vmatpush1.msra.mxu0 0.0
    %2762 = vmatprep.subr.mxu0 0.0
    %2763 = vmatpush1.msra.mxu0 0.0
    %2764 = vmatprep.subr.mxu0 0.0
    %2765 = vmatpush1.msra.mxu0 0.0
    %2766 = vmatprep.subr.mxu0 0.0
    %2767 = vmatpush1.msra.mxu0 %v1593
    %2768 = vmatprep.subr.mxu0 0.0
    %2769 = vmatpush2.msra.mxu0 0.0
    %2770 = vmatprep.subr.mxu0 0.0
    %2771 = vmatpush2.msra.mxu0 0.0
    %2772 = vmatprep.subr.mxu0 0.0
    %2773 = vmatpush2.msra.mxu0 0.0
    %2774 = vmatprep.subr.mxu0 0.0
    %2775 = vmatpush2.msra.mxu0 0.0
    %2776 = vmatprep.subr.mxu0 0.0
    %2777 = vmatpush2.msra.mxu0 0.0
    %2778 = vmatprep.subr.mxu0 0.0
    %2779 = vmatpush2.msra.mxu0 0.0
    %2780 = vmatprep.subr.mxu0 0.0
    %2781 = vmatpush2.msra.mxu0 0.0
    %2782 = vmatprep.subr.mxu0 0.0
    %2783 = vmatpush2.msra.mxu0 0.0
    %2784 = vmatprep.subr.mxu0 0.0
    %2785 = vmatpush2.msra.mxu0 0.0
    %2786 = vmatprep.subr.mxu0 0.0
    %2787 = vmatpush2.msra.mxu0 0.0
    %2788 = vmatprep.subr.mxu0 0.0
    %2789 = vmatpush2.msra.mxu0 0.0
    %2790 = vmatprep.subr.mxu0 0.0
    %2791 = vmatpush2.msra.mxu0 0.0
    %2792 = vmatprep.subr.mxu0 0.0
    %2793 = vmatpush2.msra.mxu0 0.0
    %2794 = vmatprep.subr.mxu0 0.0
    %2795 = vmatpush2.msra.mxu0 0.0
    %2796 = vmatprep.subr.mxu0 0.0
    %2797 = vmatpush2.msra.mxu0 0.0
    %2798 = vmatprep.subr.mxu0 0.0
    %2799 = vmatpush2.msra.mxu0 0.0
    %2800 = vmatprep.mubr.f32.mxu0 0.0
    %2801 = vmatmul.mubr.f32.gmra.mxu0 %v2731
    %v2802 = vpop.f32.mrf.mxu0
    %v2803 = vadd.f32 0.0, %v2802
    %v2804 = vpop.f32.mrf.mxu0
    %2805 = vmatprep.mubr.f32.mxu0 0.0
    %2806 = vmatmul.mubr.f32.gmra.mxu0 %v2734
    %v2807 = vpop.f32.mrf.mxu0
    %v2808 = vadd.f32 0.0, %v2807
    %v2809 = vpop.f32.mrf.mxu0
    %2810 = vdwg.mxu0
    %v2811 = vadd.f32 %v2528, %v2803
    %v2812 = vadd.f32 %v2529, %v2808
    %v2814 = vlaneseq
    %v2815 = vshrl.u32 %v2814, 7
    %v2816 = vsub.s32 0, %v2815
    %v2817 = vrot.slane %v1595, %v2816
    %v2819 = vadd.f32 %v2811, %v2817
    %v2820 = vadd.f32 %v2812, %v2817
    %v2821 = vadd.f32 %v1580, %v2819
    %v2822 = vadd.f32 %v1581, %v2820
    %s2823 = scalar_lea.vmem %s6, 1
    %v2824 = vld [vmem:[%s2823] sm:$0x1]
    %s2825 = scalar_lea.vmem %s7, 1
    %v2826 = vld [vmem:[%s2825] sm:$0x1]
    %v2827 = vsel %vm90, %v2821, 0.0
    %2828 = vadd.xlane.f32.xlu0 %v2827
    %v2829 = vpop.xlane.xlu0 %2828
    %v2830 = vsel %vm90, %v2822, 0.0
    %2831 = vadd.xlane.f32.xlu0 %v2830
    %v2832 = vpop.xlane.xlu0 %2831
    %v2833 = vmul.f32 %v2829, %v1322
    %v2834 = vmul.f32 %v2832, %v1322
    %v2835 = vsub.f32 %v2821, %v2833
    %v2836 = vsub.f32 %v2822, %v2834
    %v2837 = vmul.f32 %v2835, %v2835
    %v2838 = vmul.f32 %v2836, %v2836
    %v2839 = vsel %vm90, %v2837, 0.0
    %2840 = vadd.xlane.f32.xlu0 %v2839
    %v2841 = vpop.xlane.xlu0 %2840
    %v2842 = vsel %vm90, %v2838, 0.0
    %2843 = vadd.xlane.f32.xlu0 %v2842
    %v2844 = vpop.xlane.xlu0 %2843
    %v2845 = vmul.f32 %v2841, %v1322
    %v2846 = vmul.f32 %v2844, %v1322
    %v2847 = vadd.f32 %v2845, 1e-05
    %v2848 = vadd.f32 %v2846, 1e-05
    %v2849 = vrsqrt.pop %v2847
    %v2850 = vrsqrt.pop %v2848
    %v2851 = vmul.f32 %v2835, %v2849
    %v2852 = vmul.f32 %v2836, %v2850
    %v2854 = vlaneseq
    %v2855 = vshrl.u32 %v2854, 7
    %v2856 = vsub.s32 0, %v2855
    %v2857 = vrot.slane %v2824, %v2856
    %v2859 = vmul.f32 %v2851, %v2857
    %v2860 = vmul.f32 %v2852, %v2857
    %v2862 = vlaneseq
    %v2863 = vshrl.u32 %v2862, 7
    %v2864 = vsub.s32 0, %v2863
    %v2865 = vrot.slane %v2826, %v2864
    %v2867 = vadd.f32 %v2859, %v2865
    %v2868 = vadd.f32 %v2860, %v2865
    %s2869 = scalar_lea.vmem %s8, 32
    %v2870 = vld [vmem:[%s2869] sm:$0xff]
    %v2871 = vld [vmem:[%s2869 + $0x8] sm:$0xff]
    %v2872 = vld [vmem:[%s2869 + $0x10] sm:$0xff]
    %v2873 = vld [vmem:[%s2869 + $0x18] sm:$0xff]
    %v2875 = vsel %vm90, %v2867, 0
    %v2878 = vsel %vm90, %v2868, 0
    %2880 = vmatprep.subr.mxu0 0.0
    %2881 = vmatpush1.msra.mxu0 0.0
    %2882 = vmatprep.subr.mxu0 0.0
    %2883 = vmatpush1.msra.mxu0 0.0
    %2884 = vmatprep.subr.mxu0 0.0
    %2885 = vmatpush1.msra.mxu0 0.0
    %2886 = vmatprep.subr.mxu0 0.0
    %2887 = vmatpush1.msra.mxu0 0.0
    %2888 = vmatprep.subr.mxu0 0.0
    %2889 = vmatpush1.msra.mxu0 0.0
    %2890 = vmatprep.subr.mxu0 0.0
    %2891 = vmatpush1.msra.mxu0 0.0
    %2892 = vmatprep.subr.mxu0 0.0
    %2893 = vmatpush1.msra.mxu0 0.0
    %2894 = vmatprep.subr.mxu0 0.0
    %2895 = vmatpush1.msra.mxu0 0.0
    %2896 = vmatprep.subr.mxu0 0.0
    %2897 = vmatpush1.msra.mxu0 0.0
    %2898 = vmatprep.subr.mxu0 0.0
    %2899 = vmatpush1.msra.mxu0 0.0
    %2900 = vmatprep.subr.mxu0 0.0
    %2901 = vmatpush1.msra.mxu0 0.0
    %2902 = vmatprep.subr.mxu0 0.0
    %2903 = vmatpush1.msra.mxu0 0.0
    %2904 = vmatprep.subr.mxu0 0.0
    %2905 = vmatpush1.msra.mxu0 %v2873
    %2906 = vmatprep.subr.mxu0 0.0
    %2907 = vmatpush1.msra.mxu0 %v2872
    %2908 = vmatprep.subr.mxu0 0.0
    %2909 = vmatpush1.msra.mxu0 %v2871
    %2910 = vmatprep.subr.mxu0 0.0
    %2911 = vmatpush1.msra.mxu0 %v2870
    %2912 = vmatprep.subr.mxu0 0.0
    %2913 = vmatpush2.msra.mxu0 0.0
    %2914 = vmatprep.subr.mxu0 0.0
    %2915 = vmatpush2.msra.mxu0 0.0
    %2916 = vmatprep.subr.mxu0 0.0
    %2917 = vmatpush2.msra.mxu0 0.0
    %2918 = vmatprep.subr.mxu0 0.0
    %2919 = vmatpush2.msra.mxu0 0.0
    %2920 = vmatprep.subr.mxu0 0.0
    %2921 = vmatpush2.msra.mxu0 0.0
    %2922 = vmatprep.subr.mxu0 0.0
    %2923 = vmatpush2.msra.mxu0 0.0
    %2924 = vmatprep.subr.mxu0 0.0
    %2925 = vmatpush2.msra.mxu0 0.0
    %2926 = vmatprep.subr.mxu0 0.0
    %2927 = vmatpush2.msra.mxu0 0.0
    %2928 = vmatprep.subr.mxu0 0.0
    %2929 = vmatpush2.msra.mxu0 0.0
    %2930 = vmatprep.subr.mxu0 0.0
    %2931 = vmatpush2.msra.mxu0 0.0
    %2932 = vmatprep.subr.mxu0 0.0
    %2933 = vmatpush2.msra.mxu0 0.0
    %2934 = vmatprep.subr.mxu0 0.0
    %2935 = vmatpush2.msra.mxu0 0.0
    %2936 = vmatprep.subr.mxu0 0.0
    %2937 = vmatpush2.msra.mxu0 0.0
    %2938 = vmatprep.subr.mxu0 0.0
    %2939 = vmatpush2.msra.mxu0 0.0
    %2940 = vmatprep.subr.mxu0 0.0
    %2941 = vmatpush2.msra.mxu0 0.0
    %2942 = vmatprep.subr.mxu0 0.0
    %2943 = vmatpush2.msra.mxu0 0.0
    %2944 = vmatprep.mubr.f32.mxu0 0.0
    %2945 = vmatmul.mubr.f32.gmra.mxu0 %v2875
    %v2946 = vpop.f32.mrf.mxu0
    %v2947 = vadd.f32 0.0, %v2946
    %v2948 = vpop.f32.mrf.mxu0
    %2949 = vmatprep.mubr.f32.mxu0 0.0
    %2950 = vmatmul.mubr.f32.gmra.mxu0 %v2878
    %v2951 = vpop.f32.mrf.mxu0
    %v2952 = vadd.f32 0.0, %v2951
    %v2953 = vpop.f32.mrf.mxu0
    %2954 = vdwg.mxu0
    %v2955 = vmax.f32 %v2947, 0.0
    %v2956 = vmax.f32 %v2952, 0.0
    %s2957 = scalar_lea.vmem %s9, 64
    %v2958 = vld [vmem:[%s2957] sm:$0xff]
    %v2959 = vld [vmem:[%s2957 + $0x8] sm:$0xff]
    %v2960 = vld [vmem:[%s2957 + $0x10] sm:$0xff]
    %v2961 = vld [vmem:[%s2957 + $0x18] sm:$0xff]
    %v2962 = vld [vmem:[%s2957 + $0x20] sm:$0xff]
    %v2963 = vld [vmem:[%s2957 + $0x28] sm:$0xff]
    %v2964 = vld [vmem:[%s2957 + $0x30] sm:$0xff]
    %v2965 = vld [vmem:[%s2957 + $0x38] sm:$0xff]
    %v2967 = vsel %vm1454, %v2955, 0
    %v2970 = vsel %vm1454, %v2956, 0
    %2972 = vmatprep.subr.mxu0 0.0
    %2973 = vmatpush1.msra.mxu0 0.0
    %2974 = vmatprep.subr.mxu0 0.0
    %2975 = vmatpush1.msra.mxu0 0.0
    %2976 = vmatprep.subr.mxu0 0.0
    %2977 = vmatpush1.msra.mxu0 0.0
    %2978 = vmatprep.subr.mxu0 0.0
    %2979 = vmatpush1.msra.mxu0 0.0
    %2980 = vmatprep.subr.mxu0 0.0
    %2981 = vmatpush1.msra.mxu0 0.0
    %2982 = vmatprep.subr.mxu0 0.0
    %2983 = vmatpush1.msra.mxu0 0.0
    %2984 = vmatprep.subr.mxu0 0.0
    %2985 = vmatpush1.msra.mxu0 0.0
    %2986 = vmatprep.subr.mxu0 0.0
    %2987 = vmatpush1.msra.mxu0 0.0
    %2988 = vmatprep.subr.mxu0 0.0
    %2989 = vmatpush1.msra.mxu0 %v2965
    %2990 = vmatprep.subr.mxu0 0.0
    %2991 = vmatpush1.msra.mxu0 %v2964
    %2992 = vmatprep.subr.mxu0 0.0
    %2993 = vmatpush1.msra.mxu0 %v2963
    %2994 = vmatprep.subr.mxu0 0.0
    %2995 = vmatpush1.msra.mxu0 %v2962
    %2996 = vmatprep.subr.mxu0 0.0
    %2997 = vmatpush1.msra.mxu0 %v2961
    %2998 = vmatprep.subr.mxu0 0.0
    %2999 = vmatpush1.msra.mxu0 %v2960
    %3000 = vmatprep.subr.mxu0 0.0
    %3001 = vmatpush1.msra.mxu0 %v2959
    %3002 = vmatprep.subr.mxu0 0.0
    %3003 = vmatpush1.msra.mxu0 %v2958
    %3004 = vmatprep.subr.mxu0 0.0
    %3005 = vmatpush2.msra.mxu0 0.0
    %3006 = vmatprep.subr.mxu0 0.0
    %3007 = vmatpush2.msra.mxu0 0.0
    %3008 = vmatprep.subr.mxu0 0.0
    %3009 = vmatpush2.msra.mxu0 0.0
    %3010 = vmatprep.subr.mxu0 0.0
    %3011 = vmatpush2.msra.mxu0 0.0
    %3012 = vmatprep.subr.mxu0 0.0
    %3013 = vmatpush2.msra.mxu0 0.0
    %3014 = vmatprep.subr.mxu0 0.0
    %3015 = vmatpush2.msra.mxu0 0.0
    %3016 = vmatprep.subr.mxu0 0.0
    %3017 = vmatpush2.msra.mxu0 0.0
    %3018 = vmatprep.subr.mxu0 0.0
    %3019 = vmatpush2.msra.mxu0 0.0
    %3020 = vmatprep.subr.mxu0 0.0
    %3021 = vmatpush2.msra.mxu0 0.0
    %3022 = vmatprep.subr.mxu0 0.0
    %3023 = vmatpush2.msra.mxu0 0.0
    %3024 = vmatprep.subr.mxu0 0.0
    %3025 = vmatpush2.msra.mxu0 0.0
    %3026 = vmatprep.subr.mxu0 0.0
    %3027 = vmatpush2.msra.mxu0 0.0
    %3028 = vmatprep.subr.mxu0 0.0
    %3029 = vmatpush2.msra.mxu0 0.0
    %3030 = vmatprep.subr.mxu0 0.0
    %3031 = vmatpush2.msra.mxu0 0.0
    %3032 = vmatprep.subr.mxu0 0.0
    %3033 = vmatpush2.msra.mxu0 0.0
    %3034 = vmatprep.subr.mxu0 0.0
    %3035 = vmatpush2.msra.mxu0 0.0
    %3036 = vmatprep.mubr.f32.mxu0 0.0
    %3037 = vmatmul.mubr.f32.gmra.mxu0 %v2967
    %v3038 = vpop.f32.mrf.mxu0
    %v3039 = vadd.f32 0.0, %v3038
    %v3040 = vpop.f32.mrf.mxu0
    %3041 = vmatprep.mubr.f32.mxu0 0.0
    %3042 = vmatmul.mubr.f32.gmra.mxu0 %v2970
    %v3043 = vpop.f32.mrf.mxu0
    %v3044 = vadd.f32 0.0, %v3043
    %v3045 = vpop.f32.mrf.mxu0
    %3046 = vdwg.mxu0
    %v3047 = vadd.f32 %v2867, %v3039
    %v3048 = vadd.f32 %v2868, %v3044
    %s3049 = scalar_lea.vmem %s10, 1
    %v3050 = vld [vmem:[%s3049] sm:$0x1]
    %s3051 = scalar_lea.vmem %s11, 1
    %v3052 = vld [vmem:[%s3051] sm:$0x1]
    %v3053 = vsel %vm90, %v3047, 0.0
    %3054 = vadd.xlane.f32.xlu0 %v3053
    %v3055 = vpop.xlane.xlu0 %3054
    %v3056 = vsel %vm90, %v3048, 0.0
    %3057 = vadd.xlane.f32.xlu0 %v3056
    %v3058 = vpop.xlane.xlu0 %3057
    %v3059 = vmul.f32 %v3055, %v1322
    %v3060 = vmul.f32 %v3058, %v1322
    %v3061 = vsub.f32 %v3047, %v3059
    %v3062 = vsub.f32 %v3048, %v3060
    %v3063 = vmul.f32 %v3061, %v3061
    %v3064 = vmul.f32 %v3062, %v3062
    %v3065 = vsel %vm90, %v3063, 0.0
    %3066 = vadd.xlane.f32.xlu0 %v3065
    %v3067 = vpop.xlane.xlu0 %3066
    %v3068 = vsel %vm90, %v3064, 0.0
    %3069 = vadd.xlane.f32.xlu0 %v3068
    %v3070 = vpop.xlane.xlu0 %3069
    %v3071 = vmul.f32 %v3067, %v1322
    %v3072 = vmul.f32 %v3070, %v1322
    %v3073 = vadd.f32 %v3071, 1e-05
    %v3074 = vadd.f32 %v3072, 1e-05
    %v3075 = vrsqrt.pop %v3073
    %v3076 = vrsqrt.pop %v3074
    %v3077 = vmul.f32 %v3061, %v3075
    %v3078 = vmul.f32 %v3062, %v3076
    %v3080 = vlaneseq
    %v3081 = vshrl.u32 %v3080, 7
    %v3082 = vsub.s32 0, %v3081
    %v3083 = vrot.slane %v3050, %v3082
    %v3085 = vmul.f32 %v3077, %v3083
    %v3086 = vmul.f32 %v3078, %v3083
    %v3088 = vlaneseq
    %v3089 = vshrl.u32 %v3088, 7
    %v3090 = vsub.s32 0, %v3089
    %v3091 = vrot.slane %v3052, %v3090
    %v3093 = vadd.f32 %v3085, %v3091
    %v3094 = vadd.f32 %v3086, %v3091
    %3095 = vst.msk [vmem:[#allocation7] sm:$0xff] %vm90, %v3093
    %3096 = vst.msk [vmem:[#allocation7 + $0x8] sm:$0xff] %vm90, %v3094
    // Predicated region
    $region58: #{tpu_custom_call.1} parent=1 // pred_check
      _
    $region59: #{tpu_custom_call.1} parent=1 // pred_check_branch
      %3098 = sbr.rel (0) target = $region61
    $region60: #{tpu_custom_call.1} parent=1 // pred_region
      %s3100 = ssub.s32 256, 256
      %3101 = vsyncadd [#allocation4], %s3100
      %s3102 = sshll.u32 [#allocation7], 4
      %s3103 = int_to_ptr.vmem [resolvable:$true] %s3102
      %3108 = dma.vmem_to_hbm [thread:$0]  %s3103, 256, %s12, [#allocation4], 128, 128, 8
    $region61: #{tpu_custom_call.1} parent=1 // pred_fallthru
      _
    // Predicated region
    $region62: #{tpu_custom_call.1} parent=1 // pred_check
      _
    $region63: #{tpu_custom_call.1} parent=1 // pred_check_branch
      %3110 = sbr.rel (0) target = $region65
    $region64: #{tpu_custom_call.1} parent=1 // pred_region
      %3111 = dma.done [#allocation4], 256
    $region65: #{tpu_custom_call.1} parent=1 // pred_fallthru
      _
    %3112 = vsyncpa [#allocation3], 1
    %3113 = vsyncpa [#allocation6], 1
    %3114 = vsyncpa [#allocation4], 1

</llo_original>
